<compile_context>
chip_gen: v5e
topology: v5e:2x2
jax: 0.10.0
libtpu: 0.0.40
codegen_flags: <defaults>
</compile_context>

<pallas_src>
import functools

import jax
import jax.numpy as jnp
from jax import lax
from jax.experimental import pallas as pl
from jax.experimental.pallas import tpu as pltpu


# ---------------------------------------------------------------------------
# Pass 1: accumulate sum(grad(x0)^2) over all tiles into a (1,1) output.
# ---------------------------------------------------------------------------
def _normgrad_kernel(x_ref, wm_ref, wmy_ref, M_ref, ss_ref):
    @pl.when((pl.program_id(0) == 0) & (pl.program_id(1) == 0))
    def _():
        ss_ref[...] = jnp.zeros_like(ss_ref)

    x = x_ref[...]                                            # (C, T)
    g = (jnp.dot(M_ref[...], x, preferred_element_type=jnp.float32)
         + wm_ref[...] * x - wmy_ref[...])
    ss_ref[...] += jnp.sum(g * g, keepdims=True)


# ---------------------------------------------------------------------------
# Pass 2: n_grad solver iterations on an independent (C, TILE_N) column slab.
# ---------------------------------------------------------------------------
def _solver_kernel(x_ref, wm_ref, wmy_ref, M_ref, Wg_ref, Wc_ref,
                   x_out_ref, h_out_ref, c_out_ref, zbuf_ref,
                   *, n_grad, dim_state, dim_lstm):
    C, D = dim_state, dim_lstm
    x = x_ref[...]            # (C, T) state
    wm = wm_ref[...]          # (C, T) obs weight * mask^2 * 2/Ntot
    wmy = wmy_ref[...]        # (C, T) wm * yobs
    M = M_ref[...]            # (C, C) reg-path matrix (scale folded in)
    Wg = Wg_ref[...]          # (4D, D+C+1) = [Wgh | Wgx/normgrad | bg]
    Wc = Wc_ref[...]          # (C, D) = Wc / n_grad
    T = x.shape[-1]

    # zbuf rows: [0:D) hidden, [D:D+C) gradient, [D+C] constant 1 (gate bias).
    row = lax.broadcasted_iota(jnp.int32, (D + C + 1, T), 0)
    zbuf_ref[...] = (row == D + C).astype(jnp.float32)

    def sigm(z):  # sigmoid via a single tanh -> one EUP op per gate
        return 0.5 * (jnp.tanh(0.5 * z) + 1.0)

    def body(_, carry):
        x, cell = carry
        # analytic var_cost gradient (normgrad scaling folded into Wg)
        grad = (jnp.dot(M, x, preferred_element_type=jnp.float32)
                + wm * x - wmy)
        zbuf_ref[D:D + C, :] = grad
        # ConvLSTM gates: single matmul over [hidden ; grad ; 1]
        gates = jnp.dot(Wg, zbuf_ref[...], preferred_element_type=jnp.float32)
        in_g = sigm(gates[0 * D:1 * D])
        rem_g = sigm(gates[1 * D:2 * D])
        out_g = sigm(gates[2 * D:3 * D])
        cell_g = jnp.tanh(gates[3 * D:4 * D])
        cell = rem_g * cell + in_g * cell_g
        hidden = out_g * jnp.tanh(cell)
        zbuf_ref[0:D, :] = hidden
        # x_{k+1} = x_k - (1/n_grad) * Wc @ hidden   (1/n_grad folded into Wc)
        x = x - jnp.dot(Wc, hidden, preferred_element_type=jnp.float32)
        return x, cell

    cell0 = jnp.zeros((D, T), jnp.float32)
    x, cell = lax.fori_loop(0, n_grad, body, (x, cell0), unroll=(n_grad <= 8))

    x_out_ref[...] = x
    h_out_ref[...] = zbuf_ref[0:D, :]
    c_out_ref[...] = cell


def _pick_tile(hw):
    for t in (512, 1024, 2048, 256, 128):
        if hw % t == 0:
            return t
    return hw   # small / odd spatial sizes: one full-extent tile per batch


@functools.partial(jax.jit, static_argnames=("n_grad", "dim_lstm"))
def solver_grad_4dvarnn(x0, yobs, mask, params, *, n_grad, dim_lstm):
    A, Wgx, Wgh, bg, Wc, wreg_eff, wobs_eff = params
    B, C, H, W = x0.shape
    HW = H * W
    D = dim_lstm
    ntot = B * HW                       # nansum normalization (NaN-free inputs)
    scale = 2.0 / ntot

    # zero-copy NCHW -> (B, C, H*W)
    x3 = x0.reshape(B, C, HW).astype(jnp.float32)
    y3 = yobs.reshape(B, C, HW).astype(jnp.float32)
    m3 = mask.reshape(B, C, HW).astype(jnp.float32)

    # ---- host-side algebraic pre-folding (tiny, one XLA pass) ----
    ImA = jnp.eye(C, dtype=jnp.float32) - A.astype(jnp.float32)
    M = scale * (ImA.T @ (wreg_eff.astype(jnp.float32)[:, None] * ImA))      # (C,C)
    wm = scale * wobs_eff.astype(jnp.float32)[None, :, None] * (m3 * m3)     # (B,C,HW)
    wmy = wm * y3

    TILE = _pick_tile(HW)
    grid = (B, HW // TILE)

    def slab(ch):
        return pl.BlockSpec((pl.Squeezed(), ch, TILE), lambda b, t: (b, 0, t))

    def whole(shape):
        return pl.BlockSpec(shape, lambda b, t: (0,) * len(shape))

    # ---- pass 1: normgrad = sqrt(mean(grad(x0)^2)) over all B*C*H*W elems ----
    ss = pl.pallas_call(
        _normgrad_kernel,
        grid=grid,
        in_specs=[slab(C), slab(C), slab(C), whole((C, C))],
        out_specs=pl.BlockSpec((1, 1), lambda b, t: (0, 0)),
        out_shape=jax.ShapeDtypeStruct((1, 1), jnp.float32),
        compiler_params=pltpu.CompilerParams(
            dimension_semantics=("arbitrary", "arbitrary")),
    )(x3, wm, wmy, M)
    normgrad = jnp.sqrt(ss[0, 0] / (B * C * HW))
    # NOTE: like the PyTorch original, normgrad == 0 (identically-zero initial
    # gradient) yields non-finite updates; no epsilon clamp to preserve semantics.

    # fold 1/normgrad into the gate-input weight, bias into the last column,
    # and 1/n_grad into the output 1x1 conv.
    Wg_aug = jnp.concatenate(
        [Wgh.astype(jnp.float32),
         Wgx.astype(jnp.float32) / normgrad,
         bg.reshape(4 * D, 1).astype(jnp.float32)], axis=1)    # (4D, D+C+1)
    Wc_eff = Wc.astype(jnp.float32) * (1.0 / n_grad)

    kernel = functools.partial(_solver_kernel, n_grad=n_grad,
                               dim_state=C, dim_lstm=D)
    x_out, h_out, c_out = pl.pallas_call(
        kernel,
        grid=grid,
        in_specs=[slab(C), slab(C), slab(C),
                  whole((C, C)), whole((4 * D, D + C + 1)), whole((C, D))],
        out_specs=(slab(C), slab(D), slab(D)),
        out_shape=(jax.ShapeDtypeStruct((B, C, HW), jnp.float32),
                   jax.ShapeDtypeStruct((B, D, HW), jnp.float32),
                   jax.ShapeDtypeStruct((B, D, HW), jnp.float32)),
        scratch_shapes=[pltpu.VMEM((D + C + 1, TILE), jnp.float32)],
        compiler_params=pltpu.CompilerParams(
            dimension_semantics=("parallel", "parallel")),
    )(x3, wm, wmy, M, Wg_aug, Wc_eff)

    return (x_out.reshape(B, C, H, W), h_out.reshape(B, D, H, W),
            c_out.reshape(B, D, H, W), normgrad)


def reference_solver(x0, yobs, mask, params, *, n_grad, dim_lstm):
    """Pure-JAX reference mirroring the PyTorch module (uses jax.grad for var_cost)."""
    A, Wgx, Wgh, bg, Wc, wreg_eff, wobs_eff = params
    B, C, H, W = x0.shape
    D = dim_lstm
    ntot = B * H * W

    def phi_r(x):
        return jnp.einsum('oc,bchw->bohw', A, x)

    def var_cost(x):
        dx = x - phi_r(x)
        dy = (x - yobs) * mask
        reg = jnp.sum(wreg_eff[None, :, None, None] * dx ** 2) / ntot
        obs = jnp.sum(wobs_eff[None, :, None, None] * dy ** 2) / ntot
        return reg + obs

    grad_fn = jax.grad(var_cost)
    x = x0
    hidden = jnp.zeros((B, D, H, W), jnp.float32)
    cell = jnp.zeros((B, D, H, W), jnp.float32)
    normgrad = jnp.float32(0.0)
    for it in range(n_grad):
        g = grad_fn(x)
        if it == 0:
            normgrad = jnp.sqrt(jnp.mean(g ** 2))
        gn = g / normgrad
        gates = (jnp.einsum('oc,bchw->bohw', Wgx, gn)
                 + jnp.einsum('od,bdhw->bohw', Wgh, hidden)
                 + bg[:, 0][None, :, None, None])
        in_g = jax.nn.sigmoid(gates[:, 0 * D:1 * D])
        rem_g = jax.nn.sigmoid(gates[:, 1 * D:2 * D])
        out_g = jax.nn.sigmoid(gates[:, 2 * D:3 * D])
        cell_g = jnp.tanh(gates[:, 3 * D:4 * D])
        cell = rem_g * cell + in_g * cell_g
        hidden = out_g * jnp.tanh(cell)
        x = x - jnp.einsum('od,bdhw->bohw', Wc, hidden) / n_grad
    return x, hidden, cell, normgrad


if __name__ == "__main__":
    B, C, H, W = 2, 4, 16, 16   # shape_data = (C, H, W)
    D = 16                      # DimLSTM of the ConvLSTM gradient model
    N_GRAD = 5                  # n_iter_grad

    key = jax.random.PRNGKey(0)
    ks = jax.random.split(key, 8)
    x0 = jax.random.normal(ks[0], (B, C, H, W), jnp.float32)
    yobs = jax.random.normal(ks[1], (B, C, H, W), jnp.float32)
    mask = (jax.random.uniform(ks[2], (B, C, H, W)) > 0.3).astype(jnp.float32)

    # deterministic "init" for phi_r / model_Grad weights
    A = 0.1 * jax.random.normal(ks[3], (C, C), jnp.float32)
    Wgx = 0.1 * jax.random.normal(ks[4], (4 * D, C), jnp.float32)
    Wgh = 0.1 * jax.random.normal(ks[5], (4 * D, D), jnp.float32)
    bg = 0.1 * jax.random.normal(ks[6], (4 * D, 1), jnp.float32)
    Wc = 0.1 * jax.random.normal(ks[7], (C, D), jnp.float32)

    # Model_Var_Cost parameters exactly as in its __init__ (eps unused by L2 norm)
    alphaReg = jnp.float32(1.0)
    alphaObs = jnp.float32(1.0)
    WReg = jnp.ones((C,), jnp.float32)
    WObs = jnp.ones((1, C), jnp.float32)
    wreg_eff = alphaReg ** 2 * WReg ** 2
    wobs_eff = alphaObs ** 2 * WObs[0] ** 2

    params = (A, Wgx, Wgh, bg, Wc, wreg_eff, wobs_eff)

    x_out, h_out, c_out, ng = solver_grad_4dvarnn(
        x0, yobs, mask, params, n_grad=N_GRAD, dim_lstm=D)
    jax.block_until_ready((x_out, h_out, c_out, ng))

    # cross-check against the pure-JAX reference (which uses real autodiff)
    xr, hr, cr, ngr = reference_solver(
        x0, yobs, mask, params, n_grad=N_GRAD, dim_lstm=D)

    def _close(a, b):
        a = jnp.asarray(a); b = jnp.asarray(b)
        err = float(jnp.max(jnp.abs(a - b)))
        scale = float(jnp.max(jnp.abs(b))) + 1e-6
        return err <= 2e-2 * scale + 1e-3

    assert x_out.shape == (B, C, H, W)
    assert h_out.shape == (B, D, H, W) and c_out.shape == (B, D, H, W)
    assert _close(x_out, xr) and _close(h_out, hr) and _close(c_out, cr) and _close(ng, ngr)
    print("KERNEL_OK")
</pallas_src>

<mosaic_0001>
module attributes {stable_mosaic.version = 11 : i64} {
  func.func @_solver_kernel(%arg0: i32, %arg1: i32, %arg2: memref<1x4x256xf32, #tpu.memory_space<vmem>>, %arg3: memref<1x4x256xf32, #tpu.memory_space<vmem>>, %arg4: memref<1x4x256xf32, #tpu.memory_space<vmem>>, %arg5: memref<4x4xf32, #tpu.memory_space<vmem>>, %arg6: memref<64x21xf32, #tpu.memory_space<vmem>>, %arg7: memref<4x16xf32, #tpu.memory_space<vmem>>, %arg8: memref<1x4x256xf32, #tpu.memory_space<vmem>>, %arg9: memref<1x16x256xf32, #tpu.memory_space<vmem>>, %arg10: memref<1x16x256xf32, #tpu.memory_space<vmem>>, %arg11: memref<21x256xf32, #tpu.memory_space<vmem>>) attributes {dimension_semantics = [#tpu.dimension_semantics<parallel>, #tpu.dimension_semantics<parallel>], iteration_bounds = array<i64: 2, 1>, scalar_prefetch = 0 : i64, scratch_operands = 1 : i64, tpu.core_type = #tpu.core_type<tc>, window_params = [{transform_indices = @transform_0, window_bounds = array<i64: 1, 4, 256>}, {transform_indices = @transform_1, window_bounds = array<i64: 1, 4, 256>}, {transform_indices = @transform_2, window_bounds = array<i64: 1, 4, 256>}, {pipeline_mode = #tpu.pipeline_mode<synchronous>, transform_indices = @transform_3, window_bounds = array<i64: 4, 4>}, {pipeline_mode = #tpu.pipeline_mode<synchronous>, transform_indices = @transform_4, window_bounds = array<i64: 64, 21>}, {pipeline_mode = #tpu.pipeline_mode<synchronous>, transform_indices = @transform_5, window_bounds = array<i64: 4, 16>}, {transform_indices = @transform_6, window_bounds = array<i64: 1, 4, 256>}, {transform_indices = @transform_7, window_bounds = array<i64: 1, 16, 256>}, {transform_indices = @transform_8, window_bounds = array<i64: 1, 16, 256>}]} {
    %c0 = arith.constant 0 : index
    %c0_0 = arith.constant 0 : index
    %c0_1 = arith.constant 0 : index
    %0 = vector.load %arg2[%c0, %c0_0, %c0_1] : memref<1x4x256xf32, #tpu.memory_space<vmem>>, vector<1x4x256xf32>
    %1 = vector.shape_cast %0 : vector<1x4x256xf32> to vector<4x256xf32>
    %c0_2 = arith.constant 0 : index
    %c0_3 = arith.constant 0 : index
    %c0_4 = arith.constant 0 : index
    %2 = vector.load %arg3[%c0_2, %c0_3, %c0_4] : memref<1x4x256xf32, #tpu.memory_space<vmem>>, vector<1x4x256xf32>
    %3 = vector.shape_cast %2 : vector<1x4x256xf32> to vector<4x256xf32>
    %c0_5 = arith.constant 0 : index
    %c0_6 = arith.constant 0 : index
    %c0_7 = arith.constant 0 : index
    %4 = vector.load %arg4[%c0_5, %c0_6, %c0_7] : memref<1x4x256xf32, #tpu.memory_space<vmem>>, vector<1x4x256xf32>
    %5 = vector.shape_cast %4 : vector<1x4x256xf32> to vector<4x256xf32>
    %c0_8 = arith.constant 0 : index
    %c0_9 = arith.constant 0 : index
    %6 = vector.load %arg5[%c0_8, %c0_9] : memref<4x4xf32, #tpu.memory_space<vmem>>, vector<4x4xf32>
    %c0_10 = arith.constant 0 : index
    %c0_11 = arith.constant 0 : index
    %7 = vector.load %arg6[%c0_10, %c0_11] : memref<64x21xf32, #tpu.memory_space<vmem>>, vector<64x21xf32>
    %c0_12 = arith.constant 0 : index
    %c0_13 = arith.constant 0 : index
    %8 = vector.load %arg7[%c0_12, %c0_13] : memref<4x16xf32, #tpu.memory_space<vmem>>, vector<4x16xf32>
    %9 = tpu.iota {dimensions = array<i32: 0>} : vector<21x256xi32>
    %c20_i32 = arith.constant 20 : i32
    %10 = vector.broadcast %c20_i32 : i32 to vector<21x256xi32>
    %11 = arith.cmpi eq, %9, %10 : vector<21x256xi32>
    %12 = arith.extui %11 : vector<21x256xi1> to vector<21x256xi32>
    %13 = arith.sitofp %12 : vector<21x256xi32> to vector<21x256xf32>
    %c0_14 = arith.constant 0 : index
    %c0_15 = arith.constant 0 : index
    %14 = vector.load %arg11[%c0_14, %c0_15] : memref<21x256xf32, #tpu.memory_space<vmem>>, vector<21x256xf32>
    tpu.vector_store %arg11[%c0_14, %c0_15], %13 {strides = array<i32>} : memref<21x256xf32, #tpu.memory_space<vmem>>, vector<21x256xf32>,
    %cst = arith.constant 0.000000e+00 : f32
    %15 = vector.broadcast %cst : f32 to vector<16x256xf32>
    %c0_i32 = arith.constant 0 : i32
    %cst_16 = arith.constant dense<0.000000e+00> : vector<4x256xf32>
    %16 = tpu.matmul %6, %1, %cst_16 {dimension_numbers = #tpu.dot_dimension_numbers<[1], [0], [0], [1], [0, 0, 1, 1], [], []>} : vector<4x4xf32>, vector<4x256xf32>, vector<4x256xf32> -> vector<4x256xf32>
    %17 = arith.mulf %3, %1 : vector<4x256xf32>
    %18 = arith.addf %16, %17 : vector<4x256xf32>
    %19 = arith.subf %18, %5 : vector<4x256xf32>
    %c16 = arith.constant 16 : index
    %c0_17 = arith.constant 0 : index
    %20 = vector.load %arg11[%c16, %c0_17] : memref<21x256xf32, #tpu.memory_space<vmem>>, vector<4x256xf32>
    tpu.vector_store %arg11[%c16, %c0_17], %19 {strides = array<i32>} : memref<21x256xf32, #tpu.memory_space<vmem>>, vector<4x256xf32>,
    %c0_18 = arith.constant 0 : index
    %c0_19 = arith.constant 0 : index
    %21 = vector.load %arg11[%c0_18, %c0_19] : memref<21x256xf32, #tpu.memory_space<vmem>>, vector<21x256xf32>
    %cst_20 = arith.constant dense<0.000000e+00> : vector<64x256xf32>
    %22 = tpu.matmul %7, %21, %cst_20 {dimension_numbers = #tpu.dot_dimension_numbers<[1], [0], [0], [1], [0, 0, 1, 1], [], []>} : vector<64x21xf32>, vector<21x256xf32>, vector<64x256xf32> -> vector<64x256xf32>
    %23 = vector.extract_strided_slice %22 {offsets = [0, 0], sizes = [16, 256], strides = [1, 1]} : vector<64x256xf32> to vector<16x256xf32>
    %cst_21 = arith.constant 5.000000e-01 : f32
    %24 = vector.broadcast %cst_21 : f32 to vector<16x256xf32>
    %25 = arith.mulf %24, %23 : vector<16x256xf32>
    %26 = math.tanh %25 : vector<16x256xf32>
    %cst_22 = arith.constant 1.000000e+00 : f32
    %27 = vector.broadcast %cst_22 : f32 to vector<16x256xf32>
    %28 = arith.addf %26, %27 : vector<16x256xf32>
    %cst_23 = arith.constant 5.000000e-01 : f32
    %29 = vector.broadcast %cst_23 : f32 to vector<16x256xf32>
    %30 = arith.mulf %29, %28 : vector<16x256xf32>
    %31 = vector.extract_strided_slice %22 {offsets = [16, 0], sizes = [16, 256], strides = [1, 1]} : vector<64x256xf32> to vector<16x256xf32>
    %cst_24 = arith.constant 5.000000e-01 : f32
    %32 = vector.broadcast %cst_24 : f32 to vector<16x256xf32>
    %33 = arith.mulf %32, %31 : vector<16x256xf32>
    %34 = math.tanh %33 : vector<16x256xf32>
    %cst_25 = arith.constant 1.000000e+00 : f32
    %35 = vector.broadcast %cst_25 : f32 to vector<16x256xf32>
    %36 = arith.addf %34, %35 : vector<16x256xf32>
    %cst_26 = arith.constant 5.000000e-01 : f32
    %37 = vector.broadcast %cst_26 : f32 to vector<16x256xf32>
    %38 = arith.mulf %37, %36 : vector<16x256xf32>
    %39 = vector.extract_strided_slice %22 {offsets = [32, 0], sizes = [16, 256], strides = [1, 1]} : vector<64x256xf32> to vector<16x256xf32>
    %cst_27 = arith.constant 5.000000e-01 : f32
    %40 = vector.broadcast %cst_27 : f32 to vector<16x256xf32>
    %41 = arith.mulf %40, %39 : vector<16x256xf32>
    %42 = math.tanh %41 : vector<16x256xf32>
    %cst_28 = arith.constant 1.000000e+00 : f32
    %43 = vector.broadcast %cst_28 : f32 to vector<16x256xf32>
    %44 = arith.addf %42, %43 : vector<16x256xf32>
    %cst_29 = arith.constant 5.000000e-01 : f32
    %45 = vector.broadcast %cst_29 : f32 to vector<16x256xf32>
    %46 = arith.mulf %45, %44 : vector<16x256xf32>
    %47 = vector.extract_strided_slice %22 {offsets = [48, 0], sizes = [16, 256], strides = [1, 1]} : vector<64x256xf32> to vector<16x256xf32>
    %48 = math.tanh %47 : vector<16x256xf32>
    %49 = arith.mulf %38, %15 : vector<16x256xf32>
    %50 = arith.mulf %30, %48 : vector<16x256xf32>
    %51 = arith.addf %49, %50 : vector<16x256xf32>
    %52 = math.tanh %51 : vector<16x256xf32>
    %53 = arith.mulf %46, %52 : vector<16x256xf32>
    %c0_30 = arith.constant 0 : index
    %c0_31 = arith.constant 0 : index
    %54 = vector.load %arg11[%c0_30, %c0_31] : memref<21x256xf32, #tpu.memory_space<vmem>>, vector<16x256xf32>
    tpu.vector_store %arg11[%c0_30, %c0_31], %53 {strides = array<i32>} : memref<21x256xf32, #tpu.memory_space<vmem>>, vector<16x256xf32>,
    %cst_32 = arith.constant dense<0.000000e+00> : vector<4x256xf32>
    %55 = tpu.matmul %8, %53, %cst_32 {dimension_numbers = #tpu.dot_dimension_numbers<[1], [0], [0], [1], [0, 0, 1, 1], [], []>} : vector<4x16xf32>, vector<16x256xf32>, vector<4x256xf32> -> vector<4x256xf32>
    %56 = arith.subf %1, %55 : vector<4x256xf32>
    %c1_i32 = arith.constant 1 : i32
    %cst_33 = arith.constant dense<0.000000e+00> : vector<4x256xf32>
    %57 = tpu.matmul %6, %56, %cst_33 {dimension_numbers = #tpu.dot_dimension_numbers<[1], [0], [0], [1], [0, 0, 1, 1], [], []>} : vector<4x4xf32>, vector<4x256xf32>, vector<4x256xf32> -> vector<4x256xf32>
    %58 = arith.mulf %3, %56 : vector<4x256xf32>
    %59 = arith.addf %57, %58 : vector<4x256xf32>
    %60 = arith.subf %59, %5 : vector<4x256xf32>
    %c16_34 = arith.constant 16 : index
    %c0_35 = arith.constant 0 : index
    %61 = vector.load %arg11[%c16_34, %c0_35] : memref<21x256xf32, #tpu.memory_space<vmem>>, vector<4x256xf32>
    tpu.vector_store %arg11[%c16_34, %c0_35], %60 {strides = array<i32>} : memref<21x256xf32, #tpu.memory_space<vmem>>, vector<4x256xf32>,
    %c0_36 = arith.constant 0 : index
    %c0_37 = arith.constant 0 : index
    %62 = vector.load %arg11[%c0_36, %c0_37] : memref<21x256xf32, #tpu.memory_space<vmem>>, vector<21x256xf32>
    %cst_38 = arith.constant dense<0.000000e+00> : vector<64x256xf32>
    %63 = tpu.matmul %7, %62, %cst_38 {dimension_numbers = #tpu.dot_dimension_numbers<[1], [0], [0], [1], [0, 0, 1, 1], [], []>} : vector<64x21xf32>, vector<21x256xf32>, vector<64x256xf32> -> vector<64x256xf32>
    %64 = vector.extract_strided_slice %63 {offsets = [0, 0], sizes = [16, 256], strides = [1, 1]} : vector<64x256xf32> to vector<16x256xf32>
    %cst_39 = arith.constant 5.000000e-01 : f32
    %65 = vector.broadcast %cst_39 : f32 to vector<16x256xf32>
    %66 = arith.mulf %65, %64 : vector<16x256xf32>
    %67 = math.tanh %66 : vector<16x256xf32>
    %cst_40 = arith.constant 1.000000e+00 : f32
    %68 = vector.broadcast %cst_40 : f32 to vector<16x256xf32>
    %69 = arith.addf %67, %68 : vector<16x256xf32>
    %cst_41 = arith.constant 5.000000e-01 : f32
    %70 = vector.broadcast %cst_41 : f32 to vector<16x256xf32>
    %71 = arith.mulf %70, %69 : vector<16x256xf32>
    %72 = vector.extract_strided_slice %63 {offsets = [16, 0], sizes = [16, 256], strides = [1, 1]} : vector<64x256xf32> to vector<16x256xf32>
    %cst_42 = arith.constant 5.000000e-01 : f32
    %73 = vector.broadcast %cst_42 : f32 to vector<16x256xf32>
    %74 = arith.mulf %73, %72 : vector<16x256xf32>
    %75 = math.tanh %74 : vector<16x256xf32>
    %cst_43 = arith.constant 1.000000e+00 : f32
    %76 = vector.broadcast %cst_43 : f32 to vector<16x256xf32>
    %77 = arith.addf %75, %76 : vector<16x256xf32>
    %cst_44 = arith.constant 5.000000e-01 : f32
    %78 = vector.broadcast %cst_44 : f32 to vector<16x256xf32>
    %79 = arith.mulf %78, %77 : vector<16x256xf32>
    %80 = vector.extract_strided_slice %63 {offsets = [32, 0], sizes = [16, 256], strides = [1, 1]} : vector<64x256xf32> to vector<16x256xf32>
    %cst_45 = arith.constant 5.000000e-01 : f32
    %81 = vector.broadcast %cst_45 : f32 to vector<16x256xf32>
    %82 = arith.mulf %81, %80 : vector<16x256xf32>
    %83 = math.tanh %82 : vector<16x256xf32>
    %cst_46 = arith.constant 1.000000e+00 : f32
    %84 = vector.broadcast %cst_46 : f32 to vector<16x256xf32>
    %85 = arith.addf %83, %84 : vector<16x256xf32>
    %cst_47 = arith.constant 5.000000e-01 : f32
    %86 = vector.broadcast %cst_47 : f32 to vector<16x256xf32>
    %87 = arith.mulf %86, %85 : vector<16x256xf32>
    %88 = vector.extract_strided_slice %63 {offsets = [48, 0], sizes = [16, 256], strides = [1, 1]} : vector<64x256xf32> to vector<16x256xf32>
    %89 = math.tanh %88 : vector<16x256xf32>
    %90 = arith.mulf %79, %51 : vector<16x256xf32>
    %91 = arith.mulf %71, %89 : vector<16x256xf32>
    %92 = arith.addf %90, %91 : vector<16x256xf32>
    %93 = math.tanh %92 : vector<16x256xf32>
    %94 = arith.mulf %87, %93 : vector<16x256xf32>
    %c0_48 = arith.constant 0 : index
    %c0_49 = arith.constant 0 : index
    %95 = vector.load %arg11[%c0_48, %c0_49] : memref<21x256xf32, #tpu.memory_space<vmem>>, vector<16x256xf32>
    tpu.vector_store %arg11[%c0_48, %c0_49], %94 {strides = array<i32>} : memref<21x256xf32, #tpu.memory_space<vmem>>, vector<16x256xf32>,
    %cst_50 = arith.constant dense<0.000000e+00> : vector<4x256xf32>
    %96 = tpu.matmul %8, %94, %cst_50 {dimension_numbers = #tpu.dot_dimension_numbers<[1], [0], [0], [1], [0, 0, 1, 1], [], []>} : vector<4x16xf32>, vector<16x256xf32>, vector<4x256xf32> -> vector<4x256xf32>
    %97 = arith.subf %56, %96 : vector<4x256xf32>
    %c2_i32 = arith.constant 2 : i32
    %cst_51 = arith.constant dense<0.000000e+00> : vector<4x256xf32>
    %98 = tpu.matmul %6, %97, %cst_51 {dimension_numbers = #tpu.dot_dimension_numbers<[1], [0], [0], [1], [0, 0, 1, 1], [], []>} : vector<4x4xf32>, vector<4x256xf32>, vector<4x256xf32> -> vector<4x256xf32>
    %99 = arith.mulf %3, %97 : vector<4x256xf32>
    %100 = arith.addf %98, %99 : vector<4x256xf32>
    %101 = arith.subf %100, %5 : vector<4x256xf32>
    %c16_52 = arith.constant 16 : index
    %c0_53 = arith.constant 0 : index
    %102 = vector.load %arg11[%c16_52, %c0_53] : memref<21x256xf32, #tpu.memory_space<vmem>>, vector<4x256xf32>
    tpu.vector_store %arg11[%c16_52, %c0_53], %101 {strides = array<i32>} : memref<21x256xf32, #tpu.memory_space<vmem>>, vector<4x256xf32>,
    %c0_54 = arith.constant 0 : index
    %c0_55 = arith.constant 0 : index
    %103 = vector.load %arg11[%c0_54, %c0_55] : memref<21x256xf32, #tpu.memory_space<vmem>>, vector<21x256xf32>
    %cst_56 = arith.constant dense<0.000000e+00> : vector<64x256xf32>
    %104 = tpu.matmul %7, %103, %cst_56 {dimension_numbers = #tpu.dot_dimension_numbers<[1], [0], [0], [1], [0, 0, 1, 1], [], []>} : vector<64x21xf32>, vector<21x256xf32>, vector<64x256xf32> -> vector<64x256xf32>
    %105 = vector.extract_strided_slice %104 {offsets = [0, 0], sizes = [16, 256], strides = [1, 1]} : vector<64x256xf32> to vector<16x256xf32>
    %cst_57 = arith.constant 5.000000e-01 : f32
    %106 = vector.broadcast %cst_57 : f32 to vector<16x256xf32>
    %107 = arith.mulf %106, %105 : vector<16x256xf32>
    %108 = math.tanh %107 : vector<16x256xf32>
    %cst_58 = arith.constant 1.000000e+00 : f32
    %109 = vector.broadcast %cst_58 : f32 to vector<16x256xf32>
    %110 = arith.addf %108, %109 : vector<16x256xf32>
    %cst_59 = arith.constant 5.000000e-01 : f32
    %111 = vector.broadcast %cst_59 : f32 to vector<16x256xf32>
    %112 = arith.mulf %111, %110 : vector<16x256xf32>
    %113 = vector.extract_strided_slice %104 {offsets = [16, 0], sizes = [16, 256], strides = [1, 1]} : vector<64x256xf32> to vector<16x256xf32>
    %cst_60 = arith.constant 5.000000e-01 : f32
    %114 = vector.broadcast %cst_60 : f32 to vector<16x256xf32>
    %115 = arith.mulf %114, %113 : vector<16x256xf32>
    %116 = math.tanh %115 : vector<16x256xf32>
    %cst_61 = arith.constant 1.000000e+00 : f32
    %117 = vector.broadcast %cst_61 : f32 to vector<16x256xf32>
    %118 = arith.addf %116, %117 : vector<16x256xf32>
    %cst_62 = arith.constant 5.000000e-01 : f32
    %119 = vector.broadcast %cst_62 : f32 to vector<16x256xf32>
    %120 = arith.mulf %119, %118 : vector<16x256xf32>
    %121 = vector.extract_strided_slice %104 {offsets = [32, 0], sizes = [16, 256], strides = [1, 1]} : vector<64x256xf32> to vector<16x256xf32>
    %cst_63 = arith.constant 5.000000e-01 : f32
    %122 = vector.broadcast %cst_63 : f32 to vector<16x256xf32>
    %123 = arith.mulf %122, %121 : vector<16x256xf32>
    %124 = math.tanh %123 : vector<16x256xf32>
    %cst_64 = arith.constant 1.000000e+00 : f32
    %125 = vector.broadcast %cst_64 : f32 to vector<16x256xf32>
    %126 = arith.addf %124, %125 : vector<16x256xf32>
    %cst_65 = arith.constant 5.000000e-01 : f32
    %127 = vector.broadcast %cst_65 : f32 to vector<16x256xf32>
    %128 = arith.mulf %127, %126 : vector<16x256xf32>
    %129 = vector.extract_strided_slice %104 {offsets = [48, 0], sizes = [16, 256], strides = [1, 1]} : vector<64x256xf32> to vector<16x256xf32>
    %130 = math.tanh %129 : vector<16x256xf32>
    %131 = arith.mulf %120, %92 : vector<16x256xf32>
    %132 = arith.mulf %112, %130 : vector<16x256xf32>
    %133 = arith.addf %131, %132 : vector<16x256xf32>
    %134 = math.tanh %133 : vector<16x256xf32>
    %135 = arith.mulf %128, %134 : vector<16x256xf32>
    %c0_66 = arith.constant 0 : index
    %c0_67 = arith.constant 0 : index
    %136 = vector.load %arg11[%c0_66, %c0_67] : memref<21x256xf32, #tpu.memory_space<vmem>>, vector<16x256xf32>
    tpu.vector_store %arg11[%c0_66, %c0_67], %135 {strides = array<i32>} : memref<21x256xf32, #tpu.memory_space<vmem>>, vector<16x256xf32>,
    %cst_68 = arith.constant dense<0.000000e+00> : vector<4x256xf32>
    %137 = tpu.matmul %8, %135, %cst_68 {dimension_numbers = #tpu.dot_dimension_numbers<[1], [0], [0], [1], [0, 0, 1, 1], [], []>} : vector<4x16xf32>, vector<16x256xf32>, vector<4x256xf32> -> vector<4x256xf32>
    %138 = arith.subf %97, %137 : vector<4x256xf32>
    %c3_i32 = arith.constant 3 : i32
    %cst_69 = arith.constant dense<0.000000e+00> : vector<4x256xf32>
    %139 = tpu.matmul %6, %138, %cst_69 {dimension_numbers = #tpu.dot_dimension_numbers<[1], [0], [0], [1], [0, 0, 1, 1], [], []>} : vector<4x4xf32>, vector<4x256xf32>, vector<4x256xf32> -> vector<4x256xf32>
    %140 = arith.mulf %3, %138 : vector<4x256xf32>
    %141 = arith.addf %139, %140 : vector<4x256xf32>
    %142 = arith.subf %141, %5 : vector<4x256xf32>
    %c16_70 = arith.constant 16 : index
    %c0_71 = arith.constant 0 : index
    %143 = vector.load %arg11[%c16_70, %c0_71] : memref<21x256xf32, #tpu.memory_space<vmem>>, vector<4x256xf32>
    tpu.vector_store %arg11[%c16_70, %c0_71], %142 {strides = array<i32>} : memref<21x256xf32, #tpu.memory_space<vmem>>, vector<4x256xf32>,
    %c0_72 = arith.constant 0 : index
    %c0_73 = arith.constant 0 : index
    %144 = vector.load %arg11[%c0_72, %c0_73] : memref<21x256xf32, #tpu.memory_space<vmem>>, vector<21x256xf32>
    %cst_74 = arith.constant dense<0.000000e+00> : vector<64x256xf32>
    %145 = tpu.matmul %7, %144, %cst_74 {dimension_numbers = #tpu.dot_dimension_numbers<[1], [0], [0], [1], [0, 0, 1, 1], [], []>} : vector<64x21xf32>, vector<21x256xf32>, vector<64x256xf32> -> vector<64x256xf32>
    %146 = vector.extract_strided_slice %145 {offsets = [0, 0], sizes = [16, 256], strides = [1, 1]} : vector<64x256xf32> to vector<16x256xf32>
    %cst_75 = arith.constant 5.000000e-01 : f32
    %147 = vector.broadcast %cst_75 : f32 to vector<16x256xf32>
    %148 = arith.mulf %147, %146 : vector<16x256xf32>
    %149 = math.tanh %148 : vector<16x256xf32>
    %cst_76 = arith.constant 1.000000e+00 : f32
    %150 = vector.broadcast %cst_76 : f32 to vector<16x256xf32>
    %151 = arith.addf %149, %150 : vector<16x256xf32>
    %cst_77 = arith.constant 5.000000e-01 : f32
    %152 = vector.broadcast %cst_77 : f32 to vector<16x256xf32>
    %153 = arith.mulf %152, %151 : vector<16x256xf32>
    %154 = vector.extract_strided_slice %145 {offsets = [16, 0], sizes = [16, 256], strides = [1, 1]} : vector<64x256xf32> to vector<16x256xf32>
    %cst_78 = arith.constant 5.000000e-01 : f32
    %155 = vector.broadcast %cst_78 : f32 to vector<16x256xf32>
    %156 = arith.mulf %155, %154 : vector<16x256xf32>
    %157 = math.tanh %156 : vector<16x256xf32>
    %cst_79 = arith.constant 1.000000e+00 : f32
    %158 = vector.broadcast %cst_79 : f32 to vector<16x256xf32>
    %159 = arith.addf %157, %158 : vector<16x256xf32>
    %cst_80 = arith.constant 5.000000e-01 : f32
    %160 = vector.broadcast %cst_80 : f32 to vector<16x256xf32>
    %161 = arith.mulf %160, %159 : vector<16x256xf32>
    %162 = vector.extract_strided_slice %145 {offsets = [32, 0], sizes = [16, 256], strides = [1, 1]} : vector<64x256xf32> to vector<16x256xf32>
    %cst_81 = arith.constant 5.000000e-01 : f32
    %163 = vector.broadcast %cst_81 : f32 to vector<16x256xf32>
    %164 = arith.mulf %163, %162 : vector<16x256xf32>
    %165 = math.tanh %164 : vector<16x256xf32>
    %cst_82 = arith.constant 1.000000e+00 : f32
    %166 = vector.broadcast %cst_82 : f32 to vector<16x256xf32>
    %167 = arith.addf %165, %166 : vector<16x256xf32>
    %cst_83 = arith.constant 5.000000e-01 : f32
    %168 = vector.broadcast %cst_83 : f32 to vector<16x256xf32>
    %169 = arith.mulf %168, %167 : vector<16x256xf32>
    %170 = vector.extract_strided_slice %145 {offsets = [48, 0], sizes = [16, 256], strides = [1, 1]} : vector<64x256xf32> to vector<16x256xf32>
    %171 = math.tanh %170 : vector<16x256xf32>
    %172 = arith.mulf %161, %133 : vector<16x256xf32>
    %173 = arith.mulf %153, %171 : vector<16x256xf32>
    %174 = arith.addf %172, %173 : vector<16x256xf32>
    %175 = math.tanh %174 : vector<16x256xf32>
    %176 = arith.mulf %169, %175 : vector<16x256xf32>
    %c0_84 = arith.constant 0 : index
    %c0_85 = arith.constant 0 : index
    %177 = vector.load %arg11[%c0_84, %c0_85] : memref<21x256xf32, #tpu.memory_space<vmem>>, vector<16x256xf32>
    tpu.vector_store %arg11[%c0_84, %c0_85], %176 {strides = array<i32>} : memref<21x256xf32, #tpu.memory_space<vmem>>, vector<16x256xf32>,
    %cst_86 = arith.constant dense<0.000000e+00> : vector<4x256xf32>
    %178 = tpu.matmul %8, %176, %cst_86 {dimension_numbers = #tpu.dot_dimension_numbers<[1], [0], [0], [1], [0, 0, 1, 1], [], []>} : vector<4x16xf32>, vector<16x256xf32>, vector<4x256xf32> -> vector<4x256xf32>
    %179 = arith.subf %138, %178 : vector<4x256xf32>
    %c4_i32 = arith.constant 4 : i32
    %cst_87 = arith.constant dense<0.000000e+00> : vector<4x256xf32>
    %180 = tpu.matmul %6, %179, %cst_87 {dimension_numbers = #tpu.dot_dimension_numbers<[1], [0], [0], [1], [0, 0, 1, 1], [], []>} : vector<4x4xf32>, vector<4x256xf32>, vector<4x256xf32> -> vector<4x256xf32>
    %181 = arith.mulf %3, %179 : vector<4x256xf32>
    %182 = arith.addf %180, %181 : vector<4x256xf32>
    %183 = arith.subf %182, %5 : vector<4x256xf32>
    %c16_88 = arith.constant 16 : index
    %c0_89 = arith.constant 0 : index
    %184 = vector.load %arg11[%c16_88, %c0_89] : memref<21x256xf32, #tpu.memory_space<vmem>>, vector<4x256xf32>
    tpu.vector_store %arg11[%c16_88, %c0_89], %183 {strides = array<i32>} : memref<21x256xf32, #tpu.memory_space<vmem>>, vector<4x256xf32>,
    %c0_90 = arith.constant 0 : index
    %c0_91 = arith.constant 0 : index
    %185 = vector.load %arg11[%c0_90, %c0_91] : memref<21x256xf32, #tpu.memory_space<vmem>>, vector<21x256xf32>
    %cst_92 = arith.constant dense<0.000000e+00> : vector<64x256xf32>
    %186 = tpu.matmul %7, %185, %cst_92 {dimension_numbers = #tpu.dot_dimension_numbers<[1], [0], [0], [1], [0, 0, 1, 1], [], []>} : vector<64x21xf32>, vector<21x256xf32>, vector<64x256xf32> -> vector<64x256xf32>
    %187 = vector.extract_strided_slice %186 {offsets = [0, 0], sizes = [16, 256], strides = [1, 1]} : vector<64x256xf32> to vector<16x256xf32>
    %cst_93 = arith.constant 5.000000e-01 : f32
    %188 = vector.broadcast %cst_93 : f32 to vector<16x256xf32>
    %189 = arith.mulf %188, %187 : vector<16x256xf32>
    %190 = math.tanh %189 : vector<16x256xf32>
    %cst_94 = arith.constant 1.000000e+00 : f32
    %191 = vector.broadcast %cst_94 : f32 to vector<16x256xf32>
    %192 = arith.addf %190, %191 : vector<16x256xf32>
    %cst_95 = arith.constant 5.000000e-01 : f32
    %193 = vector.broadcast %cst_95 : f32 to vector<16x256xf32>
    %194 = arith.mulf %193, %192 : vector<16x256xf32>
    %195 = vector.extract_strided_slice %186 {offsets = [16, 0], sizes = [16, 256], strides = [1, 1]} : vector<64x256xf32> to vector<16x256xf32>
    %cst_96 = arith.constant 5.000000e-01 : f32
    %196 = vector.broadcast %cst_96 : f32 to vector<16x256xf32>
    %197 = arith.mulf %196, %195 : vector<16x256xf32>
    %198 = math.tanh %197 : vector<16x256xf32>
    %cst_97 = arith.constant 1.000000e+00 : f32
    %199 = vector.broadcast %cst_97 : f32 to vector<16x256xf32>
    %200 = arith.addf %198, %199 : vector<16x256xf32>
    %cst_98 = arith.constant 5.000000e-01 : f32
    %201 = vector.broadcast %cst_98 : f32 to vector<16x256xf32>
    %202 = arith.mulf %201, %200 : vector<16x256xf32>
    %203 = vector.extract_strided_slice %186 {offsets = [32, 0], sizes = [16, 256], strides = [1, 1]} : vector<64x256xf32> to vector<16x256xf32>
    %cst_99 = arith.constant 5.000000e-01 : f32
    %204 = vector.broadcast %cst_99 : f32 to vector<16x256xf32>
    %205 = arith.mulf %204, %203 : vector<16x256xf32>
    %206 = math.tanh %205 : vector<16x256xf32>
    %cst_100 = arith.constant 1.000000e+00 : f32
    %207 = vector.broadcast %cst_100 : f32 to vector<16x256xf32>
    %208 = arith.addf %206, %207 : vector<16x256xf32>
    %cst_101 = arith.constant 5.000000e-01 : f32
    %209 = vector.broadcast %cst_101 : f32 to vector<16x256xf32>
    %210 = arith.mulf %209, %208 : vector<16x256xf32>
    %211 = vector.extract_strided_slice %186 {offsets = [48, 0], sizes = [16, 256], strides = [1, 1]} : vector<64x256xf32> to vector<16x256xf32>
    %212 = math.tanh %211 : vector<16x256xf32>
    %213 = arith.mulf %202, %174 : vector<16x256xf32>
    %214 = arith.mulf %194, %212 : vector<16x256xf32>
    %215 = arith.addf %213, %214 : vector<16x256xf32>
    %216 = math.tanh %215 : vector<16x256xf32>
    %217 = arith.mulf %210, %216 : vector<16x256xf32>
    %c0_102 = arith.constant 0 : index
    %c0_103 = arith.constant 0 : index
    %218 = vector.load %arg11[%c0_102, %c0_103] : memref<21x256xf32, #tpu.memory_space<vmem>>, vector<16x256xf32>
    tpu.vector_store %arg11[%c0_102, %c0_103], %217 {strides = array<i32>} : memref<21x256xf32, #tpu.memory_space<vmem>>, vector<16x256xf32>,
    %cst_104 = arith.constant dense<0.000000e+00> : vector<4x256xf32>
    %219 = tpu.matmul %8, %217, %cst_104 {dimension_numbers = #tpu.dot_dimension_numbers<[1], [0], [0], [1], [0, 0, 1, 1], [], []>} : vector<4x16xf32>, vector<16x256xf32>, vector<4x256xf32> -> vector<4x256xf32>
    %220 = arith.subf %179, %219 : vector<4x256xf32>
    %c0_105 = arith.constant 0 : index
    %c0_106 = arith.constant 0 : index
    %c0_107 = arith.constant 0 : index
    %221 = vector.load %arg8[%c0_105, %c0_106, %c0_107] : memref<1x4x256xf32, #tpu.memory_space<vmem>>, vector<1x4x256xf32>
    %222 = vector.shape_cast %221 : vector<1x4x256xf32> to vector<4x256xf32>
    %223 = vector.shape_cast %220 : vector<4x256xf32> to vector<1x4x256xf32>
    tpu.vector_store %arg8[%c0_105, %c0_106, %c0_107], %223 {strides = array<i32>} : memref<1x4x256xf32, #tpu.memory_space<vmem>>, vector<1x4x256xf32>,
    %c0_108 = arith.constant 0 : index
    %c0_109 = arith.constant 0 : index
    %224 = vector.load %arg11[%c0_108, %c0_109] : memref<21x256xf32, #tpu.memory_space<vmem>>, vector<16x256xf32>
    %c0_110 = arith.constant 0 : index
    %c0_111 = arith.constant 0 : index
    %c0_112 = arith.constant 0 : index
    %225 = vector.load %arg9[%c0_110, %c0_111, %c0_112] : memref<1x16x256xf32, #tpu.memory_space<vmem>>, vector<1x16x256xf32>
    %226 = vector.shape_cast %225 : vector<1x16x256xf32> to vector<16x256xf32>
    %227 = vector.shape_cast %224 : vector<16x256xf32> to vector<1x16x256xf32>
    tpu.vector_store %arg9[%c0_110, %c0_111, %c0_112], %227 {strides = array<i32>} : memref<1x16x256xf32, #tpu.memory_space<vmem>>, vector<1x16x256xf32>,
    %c0_113 = arith.constant 0 : index
    %c0_114 = arith.constant 0 : index
    %c0_115 = arith.constant 0 : index
    %228 = vector.load %arg10[%c0_113, %c0_114, %c0_115] : memref<1x16x256xf32, #tpu.memory_space<vmem>>, vector<1x16x256xf32>
    %229 = vector.shape_cast %228 : vector<1x16x256xf32> to vector<16x256xf32>
    %230 = vector.shape_cast %215 : vector<16x256xf32> to vector<1x16x256xf32>
    tpu.vector_store %arg10[%c0_113, %c0_114, %c0_115], %230 {strides = array<i32>} : memref<1x16x256xf32, #tpu.memory_space<vmem>>, vector<1x16x256xf32>,
    return
  }
  func.func @transform_0(%arg0: i32, %arg1: i32) -> (i32, i32, i32) {
    %c0_i32 = arith.constant 0 : i32
    %c0_i32_0 = arith.constant 0 : i32
    return %arg0, %c0_i32, %arg1 : i32, i32, i32
  }
  func.func @transform_1(%arg0: i32, %arg1: i32) -> (i32, i32, i32) {
    %c0_i32 = arith.constant 0 : i32
    %c0_i32_0 = arith.constant 0 : i32
    return %arg0, %c0_i32, %arg1 : i32, i32, i32
  }
  func.func @transform_2(%arg0: i32, %arg1: i32) -> (i32, i32, i32) {
    %c0_i32 = arith.constant 0 : i32
    %c0_i32_0 = arith.constant 0 : i32
    return %arg0, %c0_i32, %arg1 : i32, i32, i32
  }
  func.func @transform_3(%arg0: i32, %arg1: i32) -> (i32, i32) {
    %c0_i32 = arith.constant 0 : i32
    %c0_i32_0 = arith.constant 0 : i32
    %c0_i32_1 = arith.constant 0 : i32
    return %c0_i32, %c0_i32_0 : i32, i32
  }
  func.func @transform_4(%arg0: i32, %arg1: i32) -> (i32, i32) {
    %c0_i32 = arith.constant 0 : i32
    %c0_i32_0 = arith.constant 0 : i32
    %c0_i32_1 = arith.constant 0 : i32
    return %c0_i32, %c0_i32_0 : i32, i32
  }
  func.func @transform_5(%arg0: i32, %arg1: i32) -> (i32, i32) {
    %c0_i32 = arith.constant 0 : i32
    %c0_i32_0 = arith.constant 0 : i32
    %c0_i32_1 = arith.constant 0 : i32
    return %c0_i32, %c0_i32_0 : i32, i32
  }
  func.func @transform_6(%arg0: i32, %arg1: i32) -> (i32, i32, i32) {
    %c0_i32 = arith.constant 0 : i32
    %c0_i32_0 = arith.constant 0 : i32
    return %arg0, %c0_i32, %arg1 : i32, i32, i32
  }
  func.func @transform_7(%arg0: i32, %arg1: i32) -> (i32, i32, i32) {
    %c0_i32 = arith.constant 0 : i32
    %c0_i32_0 = arith.constant 0 : i32
    return %arg0, %c0_i32, %arg1 : i32, i32, i32
  }
  func.func @transform_8(%arg0: i32, %arg1: i32) -> (i32, i32, i32) {
    %c0_i32 = arith.constant 0 : i32
    %c0_i32_0 = arith.constant 0 : i32
    return %arg0, %c0_i32, %arg1 : i32, i32, i32
  }
}

module attributes {stable_mosaic.version = 11 : i64} {
  func.func @_normgrad_kernel(%arg0: i32, %arg1: i32, %arg2: memref<1x4x256xf32, #tpu.memory_space<vmem>>, %arg3: memref<1x4x256xf32, #tpu.memory_space<vmem>>, %arg4: memref<1x4x256xf32, #tpu.memory_space<vmem>>, %arg5: memref<4x4xf32, #tpu.memory_space<vmem>>, %arg6: memref<1x1xf32, #tpu.memory_space<vmem>>) attributes {dimension_semantics = [#tpu.dimension_semantics<arbitrary>, #tpu.dimension_semantics<arbitrary>], iteration_bounds = array<i64: 2, 1>, scalar_prefetch = 0 : i64, scratch_operands = 0 : i64, tpu.core_type = #tpu.core_type<tc>, window_params = [{transform_indices = @transform_0, window_bounds = array<i64: 1, 4, 256>}, {transform_indices = @transform_1, window_bounds = array<i64: 1, 4, 256>}, {transform_indices = @transform_2, window_bounds = array<i64: 1, 4, 256>}, {pipeline_mode = #tpu.pipeline_mode<synchronous>, transform_indices = @transform_3, window_bounds = array<i64: 4, 4>}, {pipeline_mode = #tpu.pipeline_mode<synchronous>, transform_indices = @transform_4, window_bounds = array<i64: 1, 1>}]} {
    %c0_i32 = arith.constant 0 : i32
    %0 = arith.cmpi eq, %arg0, %c0_i32 : i32
    %c0_i32_0 = arith.constant 0 : i32
    %1 = arith.cmpi eq, %arg1, %c0_i32_0 : i32
    %2 = arith.andi %0, %1 : i1
    %3 = arith.extui %2 : i1 to i32
    %c0_i32_1 = arith.constant 0 : i32
    %4 = arith.cmpi ne, %3, %c0_i32_1 : i32
    scf.if %4 {
      %cst_17 = arith.constant 0.000000e+00 : f32
      %25 = vector.broadcast %cst_17 : f32 to vector<1x1xf32>
      %c0_18 = arith.constant 0 : index
      %c0_19 = arith.constant 0 : index
      %26 = vector.load %arg6[%c0_18, %c0_19] : memref<1x1xf32, #tpu.memory_space<vmem>>, vector<1x1xf32>
      tpu.vector_store %arg6[%c0_18, %c0_19], %25 {strides = array<i32>} : memref<1x1xf32, #tpu.memory_space<vmem>>, vector<1x1xf32>,
    } else {
    }
    %c0 = arith.constant 0 : index
    %c0_2 = arith.constant 0 : index
    %c0_3 = arith.constant 0 : index
    %5 = vector.load %arg2[%c0, %c0_2, %c0_3] : memref<1x4x256xf32, #tpu.memory_space<vmem>>, vector<1x4x256xf32>
    %6 = vector.shape_cast %5 : vector<1x4x256xf32> to vector<4x256xf32>
    %c0_4 = arith.constant 0 : index
    %c0_5 = arith.constant 0 : index
    %7 = vector.load %arg5[%c0_4, %c0_5] : memref<4x4xf32, #tpu.memory_space<vmem>>, vector<4x4xf32>
    %cst = arith.constant dense<0.000000e+00> : vector<4x256xf32>
    %8 = tpu.matmul %7, %6, %cst {dimension_numbers = #tpu.dot_dimension_numbers<[1], [0], [0], [1], [0, 0, 1, 1], [], []>} : vector<4x4xf32>, vector<4x256xf32>, vector<4x256xf32> -> vector<4x256xf32>
    %c0_6 = arith.constant 0 : index
    %c0_7 = arith.constant 0 : index
    %c0_8 = arith.constant 0 : index
    %9 = vector.load %arg3[%c0_6, %c0_7, %c0_8] : memref<1x4x256xf32, #tpu.memory_space<vmem>>, vector<1x4x256xf32>
    %10 = vector.shape_cast %9 : vector<1x4x256xf32> to vector<4x256xf32>
    %11 = arith.mulf %10, %6 : vector<4x256xf32>
    %12 = arith.addf %8, %11 : vector<4x256xf32>
    %c0_9 = arith.constant 0 : index
    %c0_10 = arith.constant 0 : index
    %c0_11 = arith.constant 0 : index
    %13 = vector.load %arg4[%c0_9, %c0_10, %c0_11] : memref<1x4x256xf32, #tpu.memory_space<vmem>>, vector<1x4x256xf32>
    %14 = vector.shape_cast %13 : vector<1x4x256xf32> to vector<4x256xf32>
    %15 = arith.subf %12, %14 : vector<4x256xf32>
    %c0_12 = arith.constant 0 : index
    %c0_13 = arith.constant 0 : index
    %16 = vector.load %arg6[%c0_12, %c0_13] : memref<1x1xf32, #tpu.memory_space<vmem>>, vector<1x1xf32>
    %17 = arith.mulf %15, %15 : vector<4x256xf32>
    %18 = vector.shape_cast %17 : vector<4x256xf32> to vector<1x4x256xf32>
    %cst_14 = arith.constant dense<0.000000e+00> : vector<1xf32>
    %19 = vector.multi_reduction <add>, %18, %cst_14 [1, 2] : vector<1x4x256xf32> to vector<1xf32>
    %20 = vector.shape_cast %19 : vector<1xf32> to vector<1x1x1xf32>
    %21 = vector.extract %20[0, 0, 0] : f32 from vector<1x1x1xf32>
    %22 = vector.broadcast %21 : f32 to vector<1x1xf32>
    %23 = arith.addf %16, %22 : vector<1x1xf32>
    %c0_15 = arith.constant 0 : index
    %c0_16 = arith.constant 0 : index
    %24 = vector.load %arg6[%c0_15, %c0_16] : memref<1x1xf32, #tpu.memory_space<vmem>>, vector<1x1xf32>
    tpu.vector_store %arg6[%c0_15, %c0_16], %23 {strides = array<i32>} : memref<1x1xf32, #tpu.memory_space<vmem>>, vector<1x1xf32>,
    return
  }
  func.func @transform_0(%arg0: i32, %arg1: i32) -> (i32, i32, i32) {
    %c0_i32 = arith.constant 0 : i32
    %c0_i32_0 = arith.constant 0 : i32
    return %arg0, %c0_i32, %arg1 : i32, i32, i32
  }
  func.func @transform_1(%arg0: i32, %arg1: i32) -> (i32, i32, i32) {
    %c0_i32 = arith.constant 0 : i32
    %c0_i32_0 = arith.constant 0 : i32
    return %arg0, %c0_i32, %arg1 : i32, i32, i32
  }
  func.func @transform_2(%arg0: i32, %arg1: i32) -> (i32, i32, i32) {
    %c0_i32 = arith.constant 0 : i32
    %c0_i32_0 = arith.constant 0 : i32
    return %arg0, %c0_i32, %arg1 : i32, i32, i32
  }
  func.func @transform_3(%arg0: i32, %arg1: i32) -> (i32, i32) {
    %c0_i32 = arith.constant 0 : i32
    %c0_i32_0 = arith.constant 0 : i32
    %c0_i32_1 = arith.constant 0 : i32
    return %c0_i32, %c0_i32_0 : i32, i32
  }
  func.func @transform_4(%arg0: i32, %arg1: i32) -> (i32, i32) {
    %c0_i32 = arith.constant 0 : i32
    %c0_i32_0 = arith.constant 0 : i32
    %c0_i32_1 = arith.constant 0 : i32
    return %c0_i32, %c0_i32_0 : i32, i32
  }
}

</mosaic_0001>

<llo_original>
// kernel: mul.1
$region0: #{mul.1}
  #allocation4 [shape = 's32[1]{0}', space=sflag, size = 0x4, scoped, tag = 'scoped memory for mul.1']
  %s0 = inlined_call_operand.hbm [shape: f32[2,4,16,16], index: 0, kind: input, shape index: {}, may-alias: {0,1}]
  %s1 = inlined_call_operand.hbm [shape: f32[2,4,16,16], index: 1, kind: input, shape index: {}, may-alias: {0,1}]
  %s2 = inlined_call_operand.vmem [shape: f32[2,4,16,16], index: 2, kind: output, shape index: {}]
  $region1: #{mul.1} parent=0
    #allocation0 [shape = 'u8[65536]{0}', space=vmem, size = 0x10000, scoped, tag = 'operand span for operand 0, may alias with: [0, 1]']
    #allocation1 [shape = 's32[1]{0}', space=sflag, size = 0x4, scoped, tag = 'scoped memory for mul.1']
    #allocation2 [shape = 'u8[65536]{0}', space=vmem, size = 0x10000, scoped, tag = 'operand span for operand 1, may alias with: [0, 1]']
    #allocation3 [shape = 's32[1]{0}', space=sflag, size = 0x4, scoped, tag = 'scoped memory for mul.1']
    %3 = vsyncpa [#allocation1], 0
    %4 = vsyncpa [#allocation3], 0
    %6 = vsyncadd [#allocation1], 0
    %s7 = sshll.u32 %s0, 4
    %s8 = int_to_ptr.hbm [resolvable:$true] %s7
    %s9 = sshll.u32 [#allocation0], 4
    %s10 = int_to_ptr.vmem [resolvable:$true] %s9
    %15 = dma.hbm_to_vmem [thread:$0]  %s8, 2048, %s10, [#allocation1], 128, 128, 8
    %17 = vsyncadd [#allocation3], 0
    %s18 = sshll.u32 %s1, 4
    %s19 = int_to_ptr.hbm [resolvable:$true] %s18
    %s20 = sshll.u32 [#allocation2], 4
    %s21 = int_to_ptr.vmem [resolvable:$true] %s20
    %26 = dma.hbm_to_vmem [thread:$0]  %s19, 2048, %s21, [#allocation3], 128, 128, 8
    %28 = dma.done [#allocation1], 2048
    %30 = dma.done [#allocation3], 2048
    %v31 = vld [vmem:[#allocation0] sm:$0xff]
    %v32 = vld [vmem:[#allocation2] sm:$0xff]
    %33 = xla_tuple %v31, %v32
    %34 = xla_tuple %33
    %v35 = vmul.f32 %v31, %v32
    %36 = xla_tuple %v35
    %37 = vst [vmem:[%s2] sm:$0xff] %v35
    %s38 = scalar_lea.vmem [#allocation0], 64
    %v39 = vld [vmem:[%s38] sm:$0xff]
    %s40 = scalar_lea.vmem [#allocation2], 64
    %v41 = vld [vmem:[%s40] sm:$0xff]
    %42 = xla_tuple %v39, %v41
    %43 = xla_tuple %42
    %v44 = vmul.f32 %v39, %v41
    %45 = xla_tuple %v44
    %s46 = scalar_lea.vmem %s2, 64
    %47 = vst [vmem:[%s46] sm:$0xff] %v44
    %s48 = scalar_lea.vmem [#allocation0], 16
    %v49 = vld [vmem:[%s48] sm:$0xff]
    %s50 = scalar_lea.vmem [#allocation2], 16
    %v51 = vld [vmem:[%s50] sm:$0xff]
    %52 = xla_tuple %v49, %v51
    %53 = xla_tuple %52
    %v54 = vmul.f32 %v49, %v51
    %55 = xla_tuple %v54
    %s56 = scalar_lea.vmem %s2, 16
    %57 = vst [vmem:[%s56] sm:$0xff] %v54
    %s58 = scalar_lea.vmem [#allocation0], 80
    %v59 = vld [vmem:[%s58] sm:$0xff]
    %s60 = scalar_lea.vmem [#allocation2], 80
    %v61 = vld [vmem:[%s60] sm:$0xff]
    %62 = xla_tuple %v59, %v61
    %63 = xla_tuple %62
    %v64 = vmul.f32 %v59, %v61
    %65 = xla_tuple %v64
    %s66 = scalar_lea.vmem %s2, 80
    %67 = vst [vmem:[%s66] sm:$0xff] %v64
    %s68 = scalar_lea.vmem [#allocation0], 32
    %v69 = vld [vmem:[%s68] sm:$0xff]
    %s70 = scalar_lea.vmem [#allocation2], 32
    %v71 = vld [vmem:[%s70] sm:$0xff]
    %72 = xla_tuple %v69, %v71
    %73 = xla_tuple %72
    %v74 = vmul.f32 %v69, %v71
    %75 = xla_tuple %v74
    %s76 = scalar_lea.vmem %s2, 32
    %77 = vst [vmem:[%s76] sm:$0xff] %v74
    %s78 = scalar_lea.vmem [#allocation0], 96
    %v79 = vld [vmem:[%s78] sm:$0xff]
    %s80 = scalar_lea.vmem [#allocation2], 96
    %v81 = vld [vmem:[%s80] sm:$0xff]
    %82 = xla_tuple %v79, %v81
    %83 = xla_tuple %82
    %v84 = vmul.f32 %v79, %v81
    %85 = xla_tuple %v84
    %s86 = scalar_lea.vmem %s2, 96
    %87 = vst [vmem:[%s86] sm:$0xff] %v84
    %s88 = scalar_lea.vmem [#allocation0], 48
    %v89 = vld [vmem:[%s88] sm:$0xff]
    %s90 = scalar_lea.vmem [#allocation2], 48
    %v91 = vld [vmem:[%s90] sm:$0xff]
    %92 = xla_tuple %v89, %v91
    %93 = xla_tuple %92
    %v94 = vmul.f32 %v89, %v91
    %95 = xla_tuple %v94
    %s96 = scalar_lea.vmem %s2, 48
    %97 = vst [vmem:[%s96] sm:$0xff] %v94
    %s98 = scalar_lea.vmem [#allocation0], 112
    %v99 = vld [vmem:[%s98] sm:$0xff]
    %s100 = scalar_lea.vmem [#allocation2], 112
    %v101 = vld [vmem:[%s100] sm:$0xff]
    %102 = xla_tuple %v99, %v101
    %103 = xla_tuple %102
    %v104 = vmul.f32 %v99, %v101
    %105 = xla_tuple %v104
    %s106 = scalar_lea.vmem %s2, 112
    %107 = vst [vmem:[%s106] sm:$0xff] %v104
    %s108 = scalar_lea.vmem [#allocation0], 8
    %v109 = vld [vmem:[%s108] sm:$0xff]
    %s110 = scalar_lea.vmem [#allocation2], 8
    %v111 = vld [vmem:[%s110] sm:$0xff]
    %112 = xla_tuple %v109, %v111
    %113 = xla_tuple %112
    %v114 = vmul.f32 %v109, %v111
    %115 = xla_tuple %v114
    %s116 = scalar_lea.vmem %s2, 8
    %117 = vst [vmem:[%s116] sm:$0xff] %v114
    %s118 = scalar_lea.vmem [#allocation0], 72
    %v119 = vld [vmem:[%s118] sm:$0xff]
    %s120 = scalar_lea.vmem [#allocation2], 72
    %v121 = vld [vmem:[%s120] sm:$0xff]
    %122 = xla_tuple %v119, %v121
    %123 = xla_tuple %122
    %v124 = vmul.f32 %v119, %v121
    %125 = xla_tuple %v124
    %s126 = scalar_lea.vmem %s2, 72
    %127 = vst [vmem:[%s126] sm:$0xff] %v124
    %s128 = scalar_lea.vmem [#allocation0], 24
    %v129 = vld [vmem:[%s128] sm:$0xff]
    %s130 = scalar_lea.vmem [#allocation2], 24
    %v131 = vld [vmem:[%s130] sm:$0xff]
    %132 = xla_tuple %v129, %v131
    %133 = xla_tuple %132
    %v134 = vmul.f32 %v129, %v131
    %135 = xla_tuple %v134
    %s136 = scalar_lea.vmem %s2, 24
    %137 = vst [vmem:[%s136] sm:$0xff] %v134
    %s138 = scalar_lea.vmem [#allocation0], 88
    %v139 = vld [vmem:[%s138] sm:$0xff]
    %s140 = scalar_lea.vmem [#allocation2], 88
    %v141 = vld [vmem:[%s140] sm:$0xff]
    %142 = xla_tuple %v139, %v141
    %143 = xla_tuple %142
    %v144 = vmul.f32 %v139, %v141
    %145 = xla_tuple %v144
    %s146 = scalar_lea.vmem %s2, 88
    %147 = vst [vmem:[%s146] sm:$0xff] %v144
    %s148 = scalar_lea.vmem [#allocation0], 40
    %v149 = vld [vmem:[%s148] sm:$0xff]
    %s150 = scalar_lea.vmem [#allocation2], 40
    %v151 = vld [vmem:[%s150] sm:$0xff]
    %152 = xla_tuple %v149, %v151
    %153 = xla_tuple %152
    %v154 = vmul.f32 %v149, %v151
    %155 = xla_tuple %v154
    %s156 = scalar_lea.vmem %s2, 40
    %157 = vst [vmem:[%s156] sm:$0xff] %v154
    %s158 = scalar_lea.vmem [#allocation0], 104
    %v159 = vld [vmem:[%s158] sm:$0xff]
    %s160 = scalar_lea.vmem [#allocation2], 104
    %v161 = vld [vmem:[%s160] sm:$0xff]
    %162 = xla_tuple %v159, %v161
    %163 = xla_tuple %162
    %v164 = vmul.f32 %v159, %v161
    %165 = xla_tuple %v164
    %s166 = scalar_lea.vmem %s2, 104
    %167 = vst [vmem:[%s166] sm:$0xff] %v164
    %s168 = scalar_lea.vmem [#allocation0], 56
    %v169 = vld [vmem:[%s168] sm:$0xff]
    %s170 = scalar_lea.vmem [#allocation2], 56
    %v171 = vld [vmem:[%s170] sm:$0xff]
    %172 = xla_tuple %v169, %v171
    %173 = xla_tuple %172
    %v174 = vmul.f32 %v169, %v171
    %175 = xla_tuple %v174
    %s176 = scalar_lea.vmem %s2, 56
    %177 = vst [vmem:[%s176] sm:$0xff] %v174
    %s178 = scalar_lea.vmem [#allocation0], 120
    %v179 = vld [vmem:[%s178] sm:$0xff]
    %s180 = scalar_lea.vmem [#allocation2], 120
    %v181 = vld [vmem:[%s180] sm:$0xff]
    %182 = xla_tuple %v179, %v181
    %183 = xla_tuple %182
    %v184 = vmul.f32 %v179, %v181
    %185 = xla_tuple %v184
    %s186 = scalar_lea.vmem %s2, 120
    %187 = vst [vmem:[%s186] sm:$0xff] %v184
    %188 = vsyncpa [#allocation1], 1
    %189 = vsyncpa [#allocation3], 1

// kernel: solver_grad_4dvarnn.2
$region0: #{solver_grad_4dvarnn.2}
  #allocation0 [shape = 'u32[]', space=smem, size = 0x4, offset = 0x4, fixed_abs, tag = 'smem constant byte address 0x4 - core index']
  #allocation1 [shape = 'u32[72,128]{1,0:T(1,128)}', space=vmem, size = 0x9000, scoped, tag = 'internal scratch']
  %s0 = inlined_call_operand.vmem [shape: f32[2,4,256], index: 0, kind: input, shape index: {}]
  %s1 = inlined_call_operand.vmem [shape: f32[2,4,256], index: 1, kind: input, shape index: {}]
  %s2 = inlined_call_operand.vmem [shape: f32[2,4,256], index: 2, kind: input, shape index: {}]
  %s3 = inlined_call_operand.vmem [shape: f32[4,4], index: 3, kind: input, shape index: {}]
  %s4 = inlined_call_operand.hbm [shape: f32[1,1], index: 4, kind: output, shape index: {}]
  %s5 = sld [smem:[#allocation0]]
  $region53: #{solver_grad_4dvarnn.2} parent=0
    _
  %s7 = ssub.s32 1, %s5
  %s8 = scalar_select 0, %s7, %s5
  $region1: #{solver_grad_4dvarnn.2} parent=0
    #allocation2 [shape = 'u8[512]{0}', space=vmem, size = 0x400, scoped, tag = 'output window, operand 0, single buffered']
    #allocation3 [shape = 's32[2]{0}', space=sflag, size = 0x8, scoped, tag = 'scoped memory for solver_grad_4dvarnn.2']
    %9 = vsyncpa [#allocation3], 0
    loop: start=0, step=1, limit=4
    $region2: #{solver_grad_4dvarnn.2} parent=1 // loop_pre_header
      _
    $region3: #{solver_grad_4dvarnn.2} parent=1 // loop_header
      %s11 = sphi 0, %s15
      %p12 = scmp.ge.s32.totalorder %s11, 4
      %s18 = sphi 0, %s30
      %s19 = sphi 0, %s26
      %s20 = sphi 0, %s18
      %s21 = sphi 0, %s19
      %s22 = sphi 0, %s20
      %s23 = sphi 0, %s21
      %s35 = sphi 0, %s37
      %s38 = sphi 0, %s35
      %s39 = sphi 0, %s38
      %s55 = sphi 0, %s39
      %s63 = sphi 0, %s65
      %s66 = sphi 0, %s63
      %s67 = sphi 0, %s66
      %s83 = sphi 0, %s67
      %s91 = sphi 0, %s93
      %s94 = sphi 0, %s91
      %s95 = sphi 0, %s94
      %s111 = sphi 0, %s95
      %s115 = sphi 0, %s115
      %s117 = sphi 0, %s115
      %s118 = sphi 0, %s117
      %s132 = sphi 0, %s118
      %s136 = sphi 0, %s136
      %s138 = sphi 0, %s136
      %s139 = sphi 0, %s138
      %s153 = sphi 0, %s139
    $region4: #{solver_grad_4dvarnn.2} parent=1 // loop_header_branch
      %14 = sbr.rel (%p12) target = $region8
    $region5: #{solver_grad_4dvarnn.2} parent=1 // loop_body
      %s16 = ssub.s32 %s11, 1
      %s17 = ssub.s32 %s11, 2
      %s24 = sadd.s32 1, %s19
      %p25 = scmp.ge.s32.totalorder %s24, 1
      %s26 = scalar_select %p25, 0, %s24
      %s27 = sadd.s32 1, %s18
      %s28 = scalar_select %p25, %s27, %s18
      %p29 = scmp.ge.s32.totalorder %s28, 2
      %s30 = scalar_select %p29, 0, %s28
      %s31 = ssub.s32 %s18, %s30
      %s32 = ssub.s32 %s19, %s26
      %s33 = sor.u32 %s31, %s32
      %p34 = scmp.eq.s32.totalorder %s33, 0
      %s36 = sadd.s32 %s35, 1
      %s37 = scalar_select %p34, %s35, %s36
      %p40 = pneg %p34
      %p41 = scmp.eq.s32.totalorder %s11, 1
      %p42 = por %p40, %p41
      %p43 = scmp.ne.s32.totalorder %s35, %s38
      %p44 = scmp.eq.s32.totalorder %s11, 0
      %p45 = por %p43, %p44
      %p46 = scmp.ne.s32.totalorder %s35, %s38
      %p47 = scmp.eq.s32.totalorder %s16, 1
      %p48 = por %p46, %p47
      %p49 = scmp.ne.s32.totalorder %s38, %s39
      %p50 = scmp.eq.s32.totalorder %s16, 0
      %p51 = por %p49, %p50
      %p52 = scmp.ne.s32.totalorder %s38, %s39
      %p53 = scmp.eq.s32.totalorder %s17, 1
      %p54 = por %p52, %p53
      %p56 = scmp.ne.s32.totalorder %s39, %s55
      %p57 = scmp.eq.s32.totalorder %s17, 0
      %p58 = por %p56, %p57
      %s59 = ssub.s32 %s18, %s30
      %s60 = ssub.s32 %s19, %s26
      %s61 = sor.u32 %s59, %s60
      %p62 = scmp.eq.s32.totalorder %s61, 0
      %s64 = sadd.s32 %s63, 1
      %s65 = scalar_select %p62, %s63, %s64
      %p68 = pneg %p62
      %p69 = scmp.eq.s32.totalorder %s11, 1
      %p70 = por %p68, %p69
      %p71 = scmp.ne.s32.totalorder %s63, %s66
      %p72 = scmp.eq.s32.totalorder %s11, 0
      %p73 = por %p71, %p72
      %p74 = scmp.ne.s32.totalorder %s63, %s66
      %p75 = scmp.eq.s32.totalorder %s16, 1
      %p76 = por %p74, %p75
      %p77 = scmp.ne.s32.totalorder %s66, %s67
      %p78 = scmp.eq.s32.totalorder %s16, 0
      %p79 = por %p77, %p78
      %p80 = scmp.ne.s32.totalorder %s66, %s67
      %p81 = scmp.eq.s32.totalorder %s17, 1
      %p82 = por %p80, %p81
      %p84 = scmp.ne.s32.totalorder %s67, %s83
      %p85 = scmp.eq.s32.totalorder %s17, 0
      %p86 = por %p84, %p85
      %s87 = ssub.s32 %s18, %s30
      %s88 = ssub.s32 %s19, %s26
      %s89 = sor.u32 %s87, %s88
      %p90 = scmp.eq.s32.totalorder %s89, 0
      %s92 = sadd.s32 %s91, 1
      %s93 = scalar_select %p90, %s91, %s92
      %p96 = pneg %p90
      %p97 = scmp.eq.s32.totalorder %s11, 1
      %p98 = por %p96, %p97
      %p99 = scmp.ne.s32.totalorder %s91, %s94
      %p100 = scmp.eq.s32.totalorder %s11, 0
      %p101 = por %p99, %p100
      %p102 = scmp.ne.s32.totalorder %s91, %s94
      %p103 = scmp.eq.s32.totalorder %s16, 1
      %p104 = por %p102, %p103
      %p105 = scmp.ne.s32.totalorder %s94, %s95
      %p106 = scmp.eq.s32.totalorder %s16, 0
      %p107 = por %p105, %p106
      %p108 = scmp.ne.s32.totalorder %s94, %s95
      %p109 = scmp.eq.s32.totalorder %s17, 1
      %p110 = por %p108, %p109
      %p112 = scmp.ne.s32.totalorder %s95, %s111
      %p113 = scmp.eq.s32.totalorder %s17, 0
      %p114 = por %p112, %p113
      %s116 = sadd.s32 %s115, 1
      %p119 = scmp.eq.s32.totalorder %s11, 1
      %p120 = scmp.ne.s32.totalorder %s115, %s117
      %p121 = scmp.eq.s32.totalorder %s11, 0
      %p122 = por %p120, %p121
      %p123 = scmp.ne.s32.totalorder %s115, %s117
      %p124 = scmp.eq.s32.totalorder %s16, 1
      %p125 = por %p123, %p124
      %p126 = scmp.ne.s32.totalorder %s117, %s118
      %p127 = scmp.eq.s32.totalorder %s16, 0
      %p128 = por %p126, %p127
      %p129 = scmp.ne.s32.totalorder %s117, %s118
      %p130 = scmp.eq.s32.totalorder %s17, 1
      %p131 = por %p129, %p130
      %p133 = scmp.ne.s32.totalorder %s118, %s132
      %p134 = scmp.eq.s32.totalorder %s17, 0
      %p135 = por %p133, %p134
      %s137 = sadd.s32 %s136, 1
      %p140 = scmp.eq.s32.totalorder %s11, 1
      %p141 = scmp.ne.s32.totalorder %s136, %s138
      %p142 = scmp.eq.s32.totalorder %s11, 0
      %p143 = por %p141, %p142
      %p144 = scmp.ne.s32.totalorder %s136, %s138
      %p145 = scmp.eq.s32.totalorder %s16, 1
      %p146 = por %p144, %p145
      %p147 = scmp.ne.s32.totalorder %s138, %s139
      %p148 = scmp.eq.s32.totalorder %s16, 0
      %p149 = por %p147, %p148
      %p150 = scmp.ne.s32.totalorder %s138, %s139
      %p151 = scmp.eq.s32.totalorder %s17, 1
      %p152 = por %p150, %p151
      %p154 = scmp.ne.s32.totalorder %s139, %s153
      %p155 = scmp.eq.s32.totalorder %s17, 0
      %p156 = por %p154, %p155
      %p157 = scmp.le.s32.totalorder 1, %s11
      %p158 = scmp.lt.s32.totalorder %s11, 3
      %p159 = pnand %p157, %p158
      %p160 = pneg %p159
      // Predicated region
      $region9: #{solver_grad_4dvarnn.2} parent=5 // pred_check
        _
      $region10: #{solver_grad_4dvarnn.2} parent=5 // pred_check_branch
        %162 = sbr.rel (%p159) target = $region12
      $region11: #{solver_grad_4dvarnn.2} parent=5 // pred_region
        %s163 = ssub.s32 %s11, 1
        // Predicated region
        $region13: #{solver_grad_4dvarnn.2} parent=11 // pred_check
          %p164 = pneg %p128
        $region14: #{solver_grad_4dvarnn.2} parent=11 // pred_check_branch
          %166 = sbr.rel (%p164) target = $region16
        $region15: #{solver_grad_4dvarnn.2} parent=11 // pred_region
          _
        $region16: #{solver_grad_4dvarnn.2} parent=11 // pred_fallthru
          _
      $region12: #{solver_grad_4dvarnn.2} parent=5 // pred_fallthru
        _
      %p167 = scmp.lt.s32.totalorder %s11, 2
      // Predicated region
      $region17: #{solver_grad_4dvarnn.2} parent=5 // pred_check
        %p168 = pneg %p167
      $region18: #{solver_grad_4dvarnn.2} parent=5 // pred_check_branch
        %170 = sbr.rel (%p168) target = $region20
      $region19: #{solver_grad_4dvarnn.2} parent=5 // pred_region
        // Predicated region
        $region21: #{solver_grad_4dvarnn.2} parent=19 // pred_check
          %p171 = pneg %p45
        $region22: #{solver_grad_4dvarnn.2} parent=19 // pred_check_branch
          %173 = sbr.rel (%p171) target = $region24
        $region23: #{solver_grad_4dvarnn.2} parent=19 // pred_region
          %s174 = smul.u32 2, %s19
          %p175 = scmp.lt.s32.totalorder %s18, 1
          %s176 = scalar_select %p175, %s18, 1
          %p177 = scmp.lt.s32.totalorder %s174, 1
          %s178 = scalar_select %p177, %s174, 1
          %s179 = smul.addr %s176, 2
          %s180 = sadd.s32 %s178, %s179
          %s181 = smul.addr %s180, 4
          %s182 = scalar_lea.vmem %s0, %s181
          %s183 = smul.u32 2, %s19
        $region24: #{solver_grad_4dvarnn.2} parent=19 // pred_fallthru
          _
        // Predicated region
        $region25: #{solver_grad_4dvarnn.2} parent=19 // pred_check
          %p184 = pneg %p73
        $region26: #{solver_grad_4dvarnn.2} parent=19 // pred_check_branch
          %186 = sbr.rel (%p184) target = $region28
        $region27: #{solver_grad_4dvarnn.2} parent=19 // pred_region
          %s187 = smul.u32 2, %s19
          %p188 = scmp.lt.s32.totalorder %s18, 1
          %s189 = scalar_select %p188, %s18, 1
          %p190 = scmp.lt.s32.totalorder %s187, 1
          %s191 = scalar_select %p190, %s187, 1
          %s192 = smul.addr %s189, 2
          %s193 = sadd.s32 %s191, %s192
          %s194 = smul.addr %s193, 4
          %s195 = scalar_lea.vmem %s1, %s194
          %s196 = smul.u32 2, %s19
        $region28: #{solver_grad_4dvarnn.2} parent=19 // pred_fallthru
          _
        // Predicated region
        $region29: #{solver_grad_4dvarnn.2} parent=19 // pred_check
          %p197 = pneg %p101
        $region30: #{solver_grad_4dvarnn.2} parent=19 // pred_check_branch
          %199 = sbr.rel (%p197) target = $region32
        $region31: #{solver_grad_4dvarnn.2} parent=19 // pred_region
          %s200 = smul.u32 2, %s19
          %p201 = scmp.lt.s32.totalorder %s18, 1
          %s202 = scalar_select %p201, %s18, 1
          %p203 = scmp.lt.s32.totalorder %s200, 1
          %s204 = scalar_select %p203, %s200, 1
          %s205 = smul.addr %s202, 2
          %s206 = sadd.s32 %s204, %s205
          %s207 = smul.addr %s206, 4
          %s208 = scalar_lea.vmem %s2, %s207
          %s209 = smul.u32 2, %s19
        $region32: #{solver_grad_4dvarnn.2} parent=19 // pred_fallthru
          _
      $region20: #{solver_grad_4dvarnn.2} parent=5 // pred_fallthru
        _
      %p210 = scmp.le.s32.totalorder 1, %s11
      %p211 = scmp.lt.s32.totalorder %s11, 3
      %p212 = pnand %p210, %p211
      %p213 = pneg %p212
      // Predicated region
      $region33: #{solver_grad_4dvarnn.2} parent=5 // pred_check
        _
      $region34: #{solver_grad_4dvarnn.2} parent=5 // pred_check_branch
        %215 = sbr.rel (%p212) target = $region36
      $region35: #{solver_grad_4dvarnn.2} parent=5 // pred_region
        %s216 = ssub.s32 %s11, 1
        %s217 = smul.u32 2, %s21
        %p218 = scmp.lt.s32.totalorder %s20, 1
        %s219 = scalar_select %p218, %s20, 1
        %p220 = scmp.lt.s32.totalorder %s217, 1
        %s221 = scalar_select %p220, %s217, 1
        %s222 = smul.addr %s219, 2
        %s223 = sadd.s32 %s221, %s222
        %s224 = smul.addr %s223, 4
        %s225 = scalar_lea.vmem %s0, %s224
        %p226 = pneg %p51
        %p227 = pneg %p48
        %s228 = smul.u32 2, %s21
        %p229 = scmp.lt.s32.totalorder %s20, 1
        %s230 = scalar_select %p229, %s20, 1
        %p231 = scmp.lt.s32.totalorder %s228, 1
        %s232 = scalar_select %p231, %s228, 1
        %s233 = smul.addr %s230, 2
        %s234 = sadd.s32 %s232, %s233
        %s235 = smul.addr %s234, 4
        %s236 = scalar_lea.vmem %s1, %s235
        %p237 = pneg %p79
        %p238 = pneg %p76
        %s239 = smul.u32 2, %s21
        %p240 = scmp.lt.s32.totalorder %s20, 1
        %s241 = scalar_select %p240, %s20, 1
        %p242 = scmp.lt.s32.totalorder %s239, 1
        %s243 = scalar_select %p242, %s239, 1
        %s244 = smul.addr %s241, 2
        %s245 = sadd.s32 %s243, %s244
        %s246 = smul.addr %s245, 4
        %s247 = scalar_lea.vmem %s2, %s246
        %p248 = pneg %p107
        %p249 = pneg %p104
        %p250 = pneg %p128
        %p251 = pneg %p125
        %p252 = pneg %p149
        %p253 = pneg %p146
        %s254 = smul.u32 2, %s21
        %p255 = scmp.lt.s32.totalorder %s20, 1
        %s256 = scalar_select %p255, %s20, 1
        %p257 = scmp.lt.s32.totalorder %s254, 1
        %s258 = scalar_select %p257, %s254, 1
        %s259 = smul.addr %s256, 2
        %s260 = sadd.s32 %s258, %s259
        %s261 = smul.addr %s260, 4
        %s262 = scalar_lea.vmem %s0, %s261
        %s263 = smul.u32 2, %s21
        %s264 = smul.u32 2, %s21
        %p265 = scmp.lt.s32.totalorder %s20, 1
        %s266 = scalar_select %p265, %s20, 1
        %p267 = scmp.lt.s32.totalorder %s264, 1
        %s268 = scalar_select %p267, %s264, 1
        %s269 = smul.addr %s266, 2
        %s270 = sadd.s32 %s268, %s269
        %s271 = smul.addr %s270, 4
        %s272 = scalar_lea.vmem %s1, %s271
        %s273 = smul.u32 2, %s21
        %s274 = smul.u32 2, %s21
        %p275 = scmp.lt.s32.totalorder %s20, 1
        %s276 = scalar_select %p275, %s20, 1
        %p277 = scmp.lt.s32.totalorder %s274, 1
        %s278 = scalar_select %p277, %s274, 1
        %s279 = smul.addr %s276, 2
        %s280 = sadd.s32 %s278, %s279
        %s281 = smul.addr %s280, 4
        %s282 = scalar_lea.vmem %s2, %s281
        %s283 = smul.u32 2, %s21
        %p284 = scmp.eq.s32.totalorder %s20, 0
        %p285 = scmp.eq.s32.totalorder %s21, 0
        %p286 = pnand %p284, %p285
        %p287 = pneg %p286
        // Predicated region
        $region37: #{solver_grad_4dvarnn.2} parent=35 // pred_check
          _
        $region38: #{solver_grad_4dvarnn.2} parent=35 // pred_check_branch
          %289 = sbr.rel (%p286) target = $region40
        $region39: #{solver_grad_4dvarnn.2} parent=35 // pred_region
          %vm290 = vcmask 0
          %291 = vst.msk [vmem:[#allocation2] sm:$0x1] %vm290, 0.0
        $region40: #{solver_grad_4dvarnn.2} parent=35 // pred_fallthru
          _
        %v292 = vld [vmem:[%s262] sm:$0xff]
        %v293 = vld [vmem:[%s3] sm:$0xf]
        %v294 = vld [vmem:[%s272] sm:$0xff]
        %v295 = vmul.f32 %v294, %v292
        %297 = vst [vmem:[#allocation1] ss:$2 sm:$0xff] %v292
        %v298 = vld.sshfl [vmem:[#allocation1] sm:$0xff pattern:$0x75316420]
        %v299 = vld.sshfl [vmem:[#allocation1 + $0x8] sm:$0xff pattern:$0x75316420]
        %301 = vst [vmem:[#allocation1] ss:$2 sm:$0xff] %v295
        %v302 = vld.sshfl [vmem:[#allocation1] sm:$0xff pattern:$0x75316420]
        %v303 = vld.sshfl [vmem:[#allocation1 + $0x8] sm:$0xff pattern:$0x75316420]
        %vm306 = vcmask 31744
        %v308 = vsel %vm306, %v293, 0
        %vm310 = vcmask 1043456
        %v311 = vsel %vm310, %v298, 0
        %v313 = vsel %vm310, %v299, 0
        %315 = vmatpush.msra.mxu0 0.0
        %316 = vmatpush.msra.mxu0 0.0
        %317 = vmatpush.msra.mxu0 0.0
        %318 = vmatpush.msra.mxu0 0.0
        %319 = vmatpush.msra.mxu0 0.0
        %320 = vmatpush.msra.mxu0 0.0
        %321 = vmatpush.msra.mxu0 0.0
        %322 = vmatpush.msra.mxu0 0.0
        %323 = vmatpush.msra.mxu0 0.0
        %324 = vmatpush.msra.mxu0 0.0
        %325 = vmatpush.msra.mxu0 0.0
        %326 = vmatpush.msra.mxu0 0.0
        %327 = vmatpush.msra.mxu0 0.0
        %328 = vmatpush.msra.mxu0 0.0
        %329 = vmatpush.msra.mxu0 0.0
        %330 = vmatpush.msra.mxu0 %v311
        %331 = vmatmul.f32.gmra.mxu0 %v308
        %v332 = vpop.f32.mrf.mxu0
        %v333 = vadd.f32 %v302, %v332
        %334 = vdwg.mxu0
        %335 = vmatpush.msra.mxu0 0.0
        %336 = vmatpush.msra.mxu0 0.0
        %337 = vmatpush.msra.mxu0 0.0
        %338 = vmatpush.msra.mxu0 0.0
        %339 = vmatpush.msra.mxu0 0.0
        %340 = vmatpush.msra.mxu0 0.0
        %341 = vmatpush.msra.mxu0 0.0
        %342 = vmatpush.msra.mxu0 0.0
        %343 = vmatpush.msra.mxu0 0.0
        %344 = vmatpush.msra.mxu0 0.0
        %345 = vmatpush.msra.mxu0 0.0
        %346 = vmatpush.msra.mxu0 0.0
        %347 = vmatpush.msra.mxu0 0.0
        %348 = vmatpush.msra.mxu0 0.0
        %349 = vmatpush.msra.mxu0 0.0
        %350 = vmatpush.msra.mxu0 %v313
        %351 = vmatmul.f32.gmra.mxu0 %v308
        %v352 = vpop.f32.mrf.mxu0
        %v353 = vadd.f32 %v303, %v352
        %354 = vdwg.mxu0
        %v355 = vld [vmem:[%s282] sm:$0xff]
        %357 = vst [vmem:[#allocation1] ss:$2 sm:$0xff] %v355
        %v358 = vld.sshfl [vmem:[#allocation1] sm:$0xff pattern:$0x75316420]
        %v359 = vld.sshfl [vmem:[#allocation1 + $0x8] sm:$0xff pattern:$0x75316420]
        %v362 = vsub.f32 %v333, %v358
        %v363 = vsub.f32 %v353, %v359
        %v364 = vld [vmem:[#allocation2] sm:$0x1]
        %v365 = vmul.f32 %v362, %v362
        %v366 = vmul.f32 %v363, %v363
        %v367 = vsel %vm310, %v365, 0.0
        %v368 = vsel %vm310, %v366, 0.0
        %v369 = vadd.f32 %v367, %v368
        %370 = vadd.xlane.f32.xlu0 %v369
        %v371 = vpop.xlane.xlu0 %370
        %v372 = vrot.slane %v371, 4
        %v373 = vadd.f32 %v371, %v372
        %v374 = vrot.slane %v373, 2
        %v375 = vadd.f32 %v373, %v374
        %v376 = vrot.slane %v375, 1
        %v377 = vadd.f32 %v375, %v376
        %s378 = vtos %v377
        %v379 = vstv %s378
        %v380 = vadd.f32 %v364, %v379
        %vm381 = vcmask 0
        %382 = vst.msk [vmem:[#allocation2] sm:$0x1] %vm381, %v380
        // Predicated region
        $region41: #{solver_grad_4dvarnn.2} parent=35 // pred_check
          %p383 = pneg %p146
        $region42: #{solver_grad_4dvarnn.2} parent=35 // pred_check_branch
          %385 = sbr.rel (%p383) target = $region44
        $region43: #{solver_grad_4dvarnn.2} parent=35 // pred_region
          %387 = vsyncadd [#allocation3], 0
          %s389 = sshll.u32 [#allocation2], 4
          %s390 = int_to_ptr.vmem [resolvable:$true] %s389
          %s391 = sshll.u32 %s4, 4
          %s392 = int_to_ptr.hbm [resolvable:$true] %s391
          %394 = dma.vmem_to_hbm [thread:$0]  %s390, 16, %s392, [#allocation3]
        $region44: #{solver_grad_4dvarnn.2} parent=35 // pred_fallthru
          _
        // Predicated region
        $region45: #{solver_grad_4dvarnn.2} parent=35 // pred_check
          %p395 = pneg %p146
        $region46: #{solver_grad_4dvarnn.2} parent=35 // pred_check_branch
          %397 = sbr.rel (%p395) target = $region48
        $region47: #{solver_grad_4dvarnn.2} parent=35 // pred_region
          %399 = dma.done [#allocation3], 16
        $region48: #{solver_grad_4dvarnn.2} parent=35 // pred_fallthru
          _
      $region36: #{solver_grad_4dvarnn.2} parent=5 // pred_fallthru
        _
      %p400 = scmp.le.s32.totalorder 2, %s11
      // Predicated region
      $region49: #{solver_grad_4dvarnn.2} parent=5 // pred_check
        %p401 = pneg %p400
      $region50: #{solver_grad_4dvarnn.2} parent=5 // pred_check_branch
        %403 = sbr.rel (%p401) target = $region52
      $region51: #{solver_grad_4dvarnn.2} parent=5 // pred_region
        %s404 = ssub.s32 %s11, 2
      $region52: #{solver_grad_4dvarnn.2} parent=5 // pred_fallthru
        _
    $region6: #{solver_grad_4dvarnn.2} parent=1 // loop_footer
      %s15 = sadd.s32 1, %s11
    $region7: #{solver_grad_4dvarnn.2} parent=1 // loop_footer_branch
      %10 = sbr.rel target = $region3
    $region8: #{solver_grad_4dvarnn.2} parent=1 // loop_exit
      _
    %405 = vsyncpa [#allocation3], 1
    %s406 = scalar_lea.sflag [#allocation3], 1
    %407 = vsyncpa %s406, 1

// kernel: solver_grad_4dvarnn.3
$region0: #{solver_grad_4dvarnn.3}
  #allocation0 [shape = 'u32[]', space=smem, size = 0x4, offset = 0x4, fixed_abs, tag = 'smem constant byte address 0x4 - core index']
  #allocation1 [shape = 'u32[72,128]{1,0:T(1,128)}', space=vmem, size = 0x9000, scoped, tag = 'internal scratch']
  #allocation2 [shape = 'f32[21,256]{1,0:T(8,128)}', space=vmem, size = 0x6000, scoped, tag = 'scratch operand']
  %s0 = inlined_call_operand.vmem [shape: f32[2,4,256], index: 0, kind: input, shape index: {}]
  %s1 = inlined_call_operand.vmem [shape: f32[2,4,256], index: 1, kind: input, shape index: {}]
  %s2 = inlined_call_operand.vmem [shape: f32[2,4,256], index: 2, kind: input, shape index: {}]
  %s3 = inlined_call_operand.vmem [shape: f32[4,4], index: 3, kind: input, shape index: {}]
  %s4 = inlined_call_operand.vmem [shape: f32[64,21], index: 4, kind: input, shape index: {}]
  %s5 = inlined_call_operand.vmem [shape: f32[4,16], index: 5, kind: input, shape index: {}]
  %s6 = inlined_call_operand.vmem [shape: f32[2,4,256], index: 6, kind: output, shape index: {0}]
  %s7 = inlined_call_operand.vmem [shape: f32[2,16,256], index: 7, kind: output, shape index: {1}]
  %s8 = inlined_call_operand.vmem [shape: f32[2,16,256], index: 8, kind: output, shape index: {2}]
  %9 = xla_tuple %s6, %s7, %s8
  %s10 = sld [smem:[#allocation0]]
  $region73: #{solver_grad_4dvarnn.3} parent=0
    _
  %s12 = ssub.s32 1, %s10
  %s13 = scalar_select 0, %s12, %s10
  loop: start=0, step=1, limit=4
  $region2: #{solver_grad_4dvarnn.3} parent=0 // loop_pre_header
    _
  $region3: #{solver_grad_4dvarnn.3} parent=0 // loop_header
    %s15 = sphi 0, %s19
    %p16 = scmp.ge.s32.totalorder %s15, 4
    %s22 = sphi 0, %s34
    %s23 = sphi 0, %s30
    %s24 = sphi 0, %s22
    %s25 = sphi 0, %s23
    %s26 = sphi 0, %s24
    %s27 = sphi 0, %s25
    %s39 = sphi 0, %s41
    %s42 = sphi 0, %s39
    %s43 = sphi 0, %s42
    %s59 = sphi 0, %s43
    %s67 = sphi 0, %s69
    %s70 = sphi 0, %s67
    %s71 = sphi 0, %s70
    %s87 = sphi 0, %s71
    %s95 = sphi 0, %s97
    %s98 = sphi 0, %s95
    %s99 = sphi 0, %s98
    %s115 = sphi 0, %s99
    %s119 = sphi 0, %s119
    %s121 = sphi 0, %s119
    %s122 = sphi 0, %s121
    %s136 = sphi 0, %s122
    %s140 = sphi 0, %s140
    %s142 = sphi 0, %s140
    %s143 = sphi 0, %s142
    %s157 = sphi 0, %s143
    %s161 = sphi 0, %s161
    %s163 = sphi 0, %s161
    %s164 = sphi 0, %s163
    %s178 = sphi 0, %s164
    %s186 = sphi 0, %s188
    %s189 = sphi 0, %s186
    %s190 = sphi 0, %s189
    %s206 = sphi 0, %s190
    %s214 = sphi 0, %s216
    %s217 = sphi 0, %s214
    %s218 = sphi 0, %s217
    %s234 = sphi 0, %s218
    %s242 = sphi 0, %s244
    %s245 = sphi 0, %s242
    %s246 = sphi 0, %s245
    %s262 = sphi 0, %s246
  $region4: #{solver_grad_4dvarnn.3} parent=0 // loop_header_branch
    %18 = sbr.rel (%p16) target = $region8
  $region5: #{solver_grad_4dvarnn.3} parent=0 // loop_body
    %s20 = ssub.s32 %s15, 1
    %s21 = ssub.s32 %s15, 2
    %s28 = sadd.s32 1, %s23
    %p29 = scmp.ge.s32.totalorder %s28, 1
    %s30 = scalar_select %p29, 0, %s28
    %s31 = sadd.s32 1, %s22
    %s32 = scalar_select %p29, %s31, %s22
    %p33 = scmp.ge.s32.totalorder %s32, 2
    %s34 = scalar_select %p33, 0, %s32
    %s35 = ssub.s32 %s22, %s34
    %s36 = ssub.s32 %s23, %s30
    %s37 = sor.u32 %s35, %s36
    %p38 = scmp.eq.s32.totalorder %s37, 0
    %s40 = sadd.s32 %s39, 1
    %s41 = scalar_select %p38, %s39, %s40
    %p44 = pneg %p38
    %p45 = scmp.eq.s32.totalorder %s15, 1
    %p46 = por %p44, %p45
    %p47 = scmp.ne.s32.totalorder %s39, %s42
    %p48 = scmp.eq.s32.totalorder %s15, 0
    %p49 = por %p47, %p48
    %p50 = scmp.ne.s32.totalorder %s39, %s42
    %p51 = scmp.eq.s32.totalorder %s20, 1
    %p52 = por %p50, %p51
    %p53 = scmp.ne.s32.totalorder %s42, %s43
    %p54 = scmp.eq.s32.totalorder %s20, 0
    %p55 = por %p53, %p54
    %p56 = scmp.ne.s32.totalorder %s42, %s43
    %p57 = scmp.eq.s32.totalorder %s21, 1
    %p58 = por %p56, %p57
    %p60 = scmp.ne.s32.totalorder %s43, %s59
    %p61 = scmp.eq.s32.totalorder %s21, 0
    %p62 = por %p60, %p61
    %s63 = ssub.s32 %s22, %s34
    %s64 = ssub.s32 %s23, %s30
    %s65 = sor.u32 %s63, %s64
    %p66 = scmp.eq.s32.totalorder %s65, 0
    %s68 = sadd.s32 %s67, 1
    %s69 = scalar_select %p66, %s67, %s68
    %p72 = pneg %p66
    %p73 = scmp.eq.s32.totalorder %s15, 1
    %p74 = por %p72, %p73
    %p75 = scmp.ne.s32.totalorder %s67, %s70
    %p76 = scmp.eq.s32.totalorder %s15, 0
    %p77 = por %p75, %p76
    %p78 = scmp.ne.s32.totalorder %s67, %s70
    %p79 = scmp.eq.s32.totalorder %s20, 1
    %p80 = por %p78, %p79
    %p81 = scmp.ne.s32.totalorder %s70, %s71
    %p82 = scmp.eq.s32.totalorder %s20, 0
    %p83 = por %p81, %p82
    %p84 = scmp.ne.s32.totalorder %s70, %s71
    %p85 = scmp.eq.s32.totalorder %s21, 1
    %p86 = por %p84, %p85
    %p88 = scmp.ne.s32.totalorder %s71, %s87
    %p89 = scmp.eq.s32.totalorder %s21, 0
    %p90 = por %p88, %p89
    %s91 = ssub.s32 %s22, %s34
    %s92 = ssub.s32 %s23, %s30
    %s93 = sor.u32 %s91, %s92
    %p94 = scmp.eq.s32.totalorder %s93, 0
    %s96 = sadd.s32 %s95, 1
    %s97 = scalar_select %p94, %s95, %s96
    %p100 = pneg %p94
    %p101 = scmp.eq.s32.totalorder %s15, 1
    %p102 = por %p100, %p101
    %p103 = scmp.ne.s32.totalorder %s95, %s98
    %p104 = scmp.eq.s32.totalorder %s15, 0
    %p105 = por %p103, %p104
    %p106 = scmp.ne.s32.totalorder %s95, %s98
    %p107 = scmp.eq.s32.totalorder %s20, 1
    %p108 = por %p106, %p107
    %p109 = scmp.ne.s32.totalorder %s98, %s99
    %p110 = scmp.eq.s32.totalorder %s20, 0
    %p111 = por %p109, %p110
    %p112 = scmp.ne.s32.totalorder %s98, %s99
    %p113 = scmp.eq.s32.totalorder %s21, 1
    %p114 = por %p112, %p113
    %p116 = scmp.ne.s32.totalorder %s99, %s115
    %p117 = scmp.eq.s32.totalorder %s21, 0
    %p118 = por %p116, %p117
    %s120 = sadd.s32 %s119, 1
    %p123 = scmp.eq.s32.totalorder %s15, 1
    %p124 = scmp.ne.s32.totalorder %s119, %s121
    %p125 = scmp.eq.s32.totalorder %s15, 0
    %p126 = por %p124, %p125
    %p127 = scmp.ne.s32.totalorder %s119, %s121
    %p128 = scmp.eq.s32.totalorder %s20, 1
    %p129 = por %p127, %p128
    %p130 = scmp.ne.s32.totalorder %s121, %s122
    %p131 = scmp.eq.s32.totalorder %s20, 0
    %p132 = por %p130, %p131
    %p133 = scmp.ne.s32.totalorder %s121, %s122
    %p134 = scmp.eq.s32.totalorder %s21, 1
    %p135 = por %p133, %p134
    %p137 = scmp.ne.s32.totalorder %s122, %s136
    %p138 = scmp.eq.s32.totalorder %s21, 0
    %p139 = por %p137, %p138
    %s141 = sadd.s32 %s140, 1
    %p144 = scmp.eq.s32.totalorder %s15, 1
    %p145 = scmp.ne.s32.totalorder %s140, %s142
    %p146 = scmp.eq.s32.totalorder %s15, 0
    %p147 = por %p145, %p146
    %p148 = scmp.ne.s32.totalorder %s140, %s142
    %p149 = scmp.eq.s32.totalorder %s20, 1
    %p150 = por %p148, %p149
    %p151 = scmp.ne.s32.totalorder %s142, %s143
    %p152 = scmp.eq.s32.totalorder %s20, 0
    %p153 = por %p151, %p152
    %p154 = scmp.ne.s32.totalorder %s142, %s143
    %p155 = scmp.eq.s32.totalorder %s21, 1
    %p156 = por %p154, %p155
    %p158 = scmp.ne.s32.totalorder %s143, %s157
    %p159 = scmp.eq.s32.totalorder %s21, 0
    %p160 = por %p158, %p159
    %s162 = sadd.s32 %s161, 1
    %p165 = scmp.eq.s32.totalorder %s15, 1
    %p166 = scmp.ne.s32.totalorder %s161, %s163
    %p167 = scmp.eq.s32.totalorder %s15, 0
    %p168 = por %p166, %p167
    %p169 = scmp.ne.s32.totalorder %s161, %s163
    %p170 = scmp.eq.s32.totalorder %s20, 1
    %p171 = por %p169, %p170
    %p172 = scmp.ne.s32.totalorder %s163, %s164
    %p173 = scmp.eq.s32.totalorder %s20, 0
    %p174 = por %p172, %p173
    %p175 = scmp.ne.s32.totalorder %s163, %s164
    %p176 = scmp.eq.s32.totalorder %s21, 1
    %p177 = por %p175, %p176
    %p179 = scmp.ne.s32.totalorder %s164, %s178
    %p180 = scmp.eq.s32.totalorder %s21, 0
    %p181 = por %p179, %p180
    %s182 = ssub.s32 %s22, %s34
    %s183 = ssub.s32 %s23, %s30
    %s184 = sor.u32 %s182, %s183
    %p185 = scmp.eq.s32.totalorder %s184, 0
    %s187 = sadd.s32 %s186, 1
    %s188 = scalar_select %p185, %s186, %s187
    %p191 = pneg %p185
    %p192 = scmp.eq.s32.totalorder %s15, 1
    %p193 = por %p191, %p192
    %p194 = scmp.ne.s32.totalorder %s186, %s189
    %p195 = scmp.eq.s32.totalorder %s15, 0
    %p196 = por %p194, %p195
    %p197 = scmp.ne.s32.totalorder %s186, %s189
    %p198 = scmp.eq.s32.totalorder %s20, 1
    %p199 = por %p197, %p198
    %p200 = scmp.ne.s32.totalorder %s189, %s190
    %p201 = scmp.eq.s32.totalorder %s20, 0
    %p202 = por %p200, %p201
    %p203 = scmp.ne.s32.totalorder %s189, %s190
    %p204 = scmp.eq.s32.totalorder %s21, 1
    %p205 = por %p203, %p204
    %p207 = scmp.ne.s32.totalorder %s190, %s206
    %p208 = scmp.eq.s32.totalorder %s21, 0
    %p209 = por %p207, %p208
    %s210 = ssub.s32 %s22, %s34
    %s211 = ssub.s32 %s23, %s30
    %s212 = sor.u32 %s210, %s211
    %p213 = scmp.eq.s32.totalorder %s212, 0
    %s215 = sadd.s32 %s214, 1
    %s216 = scalar_select %p213, %s214, %s215
    %p219 = pneg %p213
    %p220 = scmp.eq.s32.totalorder %s15, 1
    %p221 = por %p219, %p220
    %p222 = scmp.ne.s32.totalorder %s214, %s217
    %p223 = scmp.eq.s32.totalorder %s15, 0
    %p224 = por %p222, %p223
    %p225 = scmp.ne.s32.totalorder %s214, %s217
    %p226 = scmp.eq.s32.totalorder %s20, 1
    %p227 = por %p225, %p226
    %p228 = scmp.ne.s32.totalorder %s217, %s218
    %p229 = scmp.eq.s32.totalorder %s20, 0
    %p230 = por %p228, %p229
    %p231 = scmp.ne.s32.totalorder %s217, %s218
    %p232 = scmp.eq.s32.totalorder %s21, 1
    %p233 = por %p231, %p232
    %p235 = scmp.ne.s32.totalorder %s218, %s234
    %p236 = scmp.eq.s32.totalorder %s21, 0
    %p237 = por %p235, %p236
    %s238 = ssub.s32 %s22, %s34
    %s239 = ssub.s32 %s23, %s30
    %s240 = sor.u32 %s238, %s239
    %p241 = scmp.eq.s32.totalorder %s240, 0
    %s243 = sadd.s32 %s242, 1
    %s244 = scalar_select %p241, %s242, %s243
    %p247 = pneg %p241
    %p248 = scmp.eq.s32.totalorder %s15, 1
    %p249 = por %p247, %p248
    %p250 = scmp.ne.s32.totalorder %s242, %s245
    %p251 = scmp.eq.s32.totalorder %s15, 0
    %p252 = por %p250, %p251
    %p253 = scmp.ne.s32.totalorder %s242, %s245
    %p254 = scmp.eq.s32.totalorder %s20, 1
    %p255 = por %p253, %p254
    %p256 = scmp.ne.s32.totalorder %s245, %s246
    %p257 = scmp.eq.s32.totalorder %s20, 0
    %p258 = por %p256, %p257
    %p259 = scmp.ne.s32.totalorder %s245, %s246
    %p260 = scmp.eq.s32.totalorder %s21, 1
    %p261 = por %p259, %p260
    %p263 = scmp.ne.s32.totalorder %s246, %s262
    %p264 = scmp.eq.s32.totalorder %s21, 0
    %p265 = por %p263, %p264
    %p266 = scmp.le.s32.totalorder 1, %s15
    %p267 = scmp.lt.s32.totalorder %s15, 3
    %p268 = pnand %p266, %p267
    %p269 = pneg %p268
    // Predicated region
    $region9: #{solver_grad_4dvarnn.3} parent=5 // pred_check
      _
    $region10: #{solver_grad_4dvarnn.3} parent=5 // pred_check_branch
      %271 = sbr.rel (%p268) target = $region12
    $region11: #{solver_grad_4dvarnn.3} parent=5 // pred_region
      %s272 = ssub.s32 %s15, 1
      // Predicated region
      $region13: #{solver_grad_4dvarnn.3} parent=11 // pred_check
        %p273 = pneg %p132
      $region14: #{solver_grad_4dvarnn.3} parent=11 // pred_check_branch
        %275 = sbr.rel (%p273) target = $region16
      $region15: #{solver_grad_4dvarnn.3} parent=11 // pred_region
        _
      $region16: #{solver_grad_4dvarnn.3} parent=11 // pred_fallthru
        _
      // Predicated region
      $region17: #{solver_grad_4dvarnn.3} parent=11 // pred_check
        %p276 = pneg %p153
      $region18: #{solver_grad_4dvarnn.3} parent=11 // pred_check_branch
        %278 = sbr.rel (%p276) target = $region20
      $region19: #{solver_grad_4dvarnn.3} parent=11 // pred_region
        _
      $region20: #{solver_grad_4dvarnn.3} parent=11 // pred_fallthru
        _
      // Predicated region
      $region21: #{solver_grad_4dvarnn.3} parent=11 // pred_check
        %p279 = pneg %p174
      $region22: #{solver_grad_4dvarnn.3} parent=11 // pred_check_branch
        %281 = sbr.rel (%p279) target = $region24
      $region23: #{solver_grad_4dvarnn.3} parent=11 // pred_region
        _
      $region24: #{solver_grad_4dvarnn.3} parent=11 // pred_fallthru
        _
    $region12: #{solver_grad_4dvarnn.3} parent=5 // pred_fallthru
      _
    %p282 = scmp.lt.s32.totalorder %s15, 2
    // Predicated region
    $region25: #{solver_grad_4dvarnn.3} parent=5 // pred_check
      %p283 = pneg %p282
    $region26: #{solver_grad_4dvarnn.3} parent=5 // pred_check_branch
      %285 = sbr.rel (%p283) target = $region28
    $region27: #{solver_grad_4dvarnn.3} parent=5 // pred_region
      // Predicated region
      $region29: #{solver_grad_4dvarnn.3} parent=27 // pred_check
        %p286 = pneg %p49
      $region30: #{solver_grad_4dvarnn.3} parent=27 // pred_check_branch
        %288 = sbr.rel (%p286) target = $region32
      $region31: #{solver_grad_4dvarnn.3} parent=27 // pred_region
        %s289 = smul.u32 2, %s23
        %p290 = scmp.lt.s32.totalorder %s22, 1
        %s291 = scalar_select %p290, %s22, 1
        %p292 = scmp.lt.s32.totalorder %s289, 1
        %s293 = scalar_select %p292, %s289, 1
        %s294 = smul.addr %s291, 2
        %s295 = sadd.s32 %s293, %s294
        %s296 = smul.addr %s295, 4
        %s297 = scalar_lea.vmem %s0, %s296
        %s298 = smul.u32 2, %s23
      $region32: #{solver_grad_4dvarnn.3} parent=27 // pred_fallthru
        _
      // Predicated region
      $region33: #{solver_grad_4dvarnn.3} parent=27 // pred_check
        %p299 = pneg %p77
      $region34: #{solver_grad_4dvarnn.3} parent=27 // pred_check_branch
        %301 = sbr.rel (%p299) target = $region36
      $region35: #{solver_grad_4dvarnn.3} parent=27 // pred_region
        %s302 = smul.u32 2, %s23
        %p303 = scmp.lt.s32.totalorder %s22, 1
        %s304 = scalar_select %p303, %s22, 1
        %p305 = scmp.lt.s32.totalorder %s302, 1
        %s306 = scalar_select %p305, %s302, 1
        %s307 = smul.addr %s304, 2
        %s308 = sadd.s32 %s306, %s307
        %s309 = smul.addr %s308, 4
        %s310 = scalar_lea.vmem %s1, %s309
        %s311 = smul.u32 2, %s23
      $region36: #{solver_grad_4dvarnn.3} parent=27 // pred_fallthru
        _
      // Predicated region
      $region37: #{solver_grad_4dvarnn.3} parent=27 // pred_check
        %p312 = pneg %p105
      $region38: #{solver_grad_4dvarnn.3} parent=27 // pred_check_branch
        %314 = sbr.rel (%p312) target = $region40
      $region39: #{solver_grad_4dvarnn.3} parent=27 // pred_region
        %s315 = smul.u32 2, %s23
        %p316 = scmp.lt.s32.totalorder %s22, 1
        %s317 = scalar_select %p316, %s22, 1
        %p318 = scmp.lt.s32.totalorder %s315, 1
        %s319 = scalar_select %p318, %s315, 1
        %s320 = smul.addr %s317, 2
        %s321 = sadd.s32 %s319, %s320
        %s322 = smul.addr %s321, 4
        %s323 = scalar_lea.vmem %s2, %s322
        %s324 = smul.u32 2, %s23
      $region40: #{solver_grad_4dvarnn.3} parent=27 // pred_fallthru
        _
    $region28: #{solver_grad_4dvarnn.3} parent=5 // pred_fallthru
      _
    %p325 = scmp.le.s32.totalorder 1, %s15
    %p326 = scmp.lt.s32.totalorder %s15, 3
    %p327 = pnand %p325, %p326
    %p328 = pneg %p327
    // Predicated region
    $region41: #{solver_grad_4dvarnn.3} parent=5 // pred_check
      _
    $region42: #{solver_grad_4dvarnn.3} parent=5 // pred_check_branch
      %330 = sbr.rel (%p327) target = $region44
    $region43: #{solver_grad_4dvarnn.3} parent=5 // pred_region
      %s331 = ssub.s32 %s15, 1
      %s332 = smul.u32 2, %s25
      %p333 = scmp.lt.s32.totalorder %s24, 1
      %s334 = scalar_select %p333, %s24, 1
      %p335 = scmp.lt.s32.totalorder %s332, 1
      %s336 = scalar_select %p335, %s332, 1
      %s337 = smul.addr %s334, 2
      %s338 = sadd.s32 %s336, %s337
      %s339 = smul.addr %s338, 4
      %s340 = scalar_lea.vmem %s0, %s339
      %p341 = pneg %p55
      %p342 = pneg %p52
      %s343 = smul.u32 2, %s25
      %p344 = scmp.lt.s32.totalorder %s24, 1
      %s345 = scalar_select %p344, %s24, 1
      %p346 = scmp.lt.s32.totalorder %s343, 1
      %s347 = scalar_select %p346, %s343, 1
      %s348 = smul.addr %s345, 2
      %s349 = sadd.s32 %s347, %s348
      %s350 = smul.addr %s349, 4
      %s351 = scalar_lea.vmem %s1, %s350
      %p352 = pneg %p83
      %p353 = pneg %p80
      %s354 = smul.u32 2, %s25
      %p355 = scmp.lt.s32.totalorder %s24, 1
      %s356 = scalar_select %p355, %s24, 1
      %p357 = scmp.lt.s32.totalorder %s354, 1
      %s358 = scalar_select %p357, %s354, 1
      %s359 = smul.addr %s356, 2
      %s360 = sadd.s32 %s358, %s359
      %s361 = smul.addr %s360, 4
      %s362 = scalar_lea.vmem %s2, %s361
      %p363 = pneg %p111
      %p364 = pneg %p108
      %p365 = pneg %p132
      %p366 = pneg %p129
      %p367 = pneg %p153
      %p368 = pneg %p150
      %p369 = pneg %p174
      %p370 = pneg %p171
      %p371 = pneg %p202
      %p372 = pneg %p199
      %s373 = smul.u32 2, %s25
      %p374 = scmp.lt.s32.totalorder %s24, 1
      %s375 = scalar_select %p374, %s24, 1
      %p376 = scmp.lt.s32.totalorder %s373, 1
      %s377 = scalar_select %p376, %s373, 1
      %s378 = smul.addr %s375, 2
      %s379 = sadd.s32 %s377, %s378
      %s380 = smul.addr %s379, 4
      %s381 = scalar_lea.vmem %s6, %s380
      %p382 = pneg %p230
      %p383 = pneg %p227
      %s384 = smul.u32 2, %s25
      %p385 = scmp.lt.s32.totalorder %s24, 1
      %s386 = scalar_select %p385, %s24, 1
      %p387 = scmp.lt.s32.totalorder %s384, 1
      %s388 = scalar_select %p387, %s384, 1
      %s389 = smul.addr %s386, 4
      %s390 = sadd.s32 %s388, %s389
      %s391 = smul.addr %s390, 8
      %s392 = scalar_lea.vmem %s7, %s391
      %p393 = pneg %p258
      %p394 = pneg %p255
      %s395 = smul.u32 2, %s25
      %p396 = scmp.lt.s32.totalorder %s24, 1
      %s397 = scalar_select %p396, %s24, 1
      %p398 = scmp.lt.s32.totalorder %s395, 1
      %s399 = scalar_select %p398, %s395, 1
      %s400 = smul.addr %s397, 4
      %s401 = sadd.s32 %s399, %s400
      %s402 = smul.addr %s401, 8
      %s403 = scalar_lea.vmem %s8, %s402
      %s404 = smul.u32 2, %s25
      %p405 = scmp.lt.s32.totalorder %s24, 1
      %s406 = scalar_select %p405, %s24, 1
      %p407 = scmp.lt.s32.totalorder %s404, 1
      %s408 = scalar_select %p407, %s404, 1
      %s409 = smul.addr %s406, 2
      %s410 = sadd.s32 %s408, %s409
      %s411 = smul.addr %s410, 4
      %s412 = scalar_lea.vmem %s0, %s411
      %s413 = smul.u32 2, %s25
      %s414 = smul.u32 2, %s25
      %p415 = scmp.lt.s32.totalorder %s24, 1
      %s416 = scalar_select %p415, %s24, 1
      %p417 = scmp.lt.s32.totalorder %s414, 1
      %s418 = scalar_select %p417, %s414, 1
      %s419 = smul.addr %s416, 2
      %s420 = sadd.s32 %s418, %s419
      %s421 = smul.addr %s420, 4
      %s422 = scalar_lea.vmem %s1, %s421
      %s423 = smul.u32 2, %s25
      %s424 = smul.u32 2, %s25
      %p425 = scmp.lt.s32.totalorder %s24, 1
      %s426 = scalar_select %p425, %s24, 1
      %p427 = scmp.lt.s32.totalorder %s424, 1
      %s428 = scalar_select %p427, %s424, 1
      %s429 = smul.addr %s426, 2
      %s430 = sadd.s32 %s428, %s429
      %s431 = smul.addr %s430, 4
      %s432 = scalar_lea.vmem %s2, %s431
      %s433 = smul.u32 2, %s25
      %s434 = smul.u32 2, %s25
      %p435 = scmp.lt.s32.totalorder %s24, 1
      %s436 = scalar_select %p435, %s24, 1
      %p437 = scmp.lt.s32.totalorder %s434, 1
      %s438 = scalar_select %p437, %s434, 1
      %s439 = smul.addr %s436, 2
      %s440 = sadd.s32 %s438, %s439
      %s441 = smul.addr %s440, 4
      %s442 = scalar_lea.vmem %s6, %s441
      %s443 = smul.u32 2, %s25
      %s444 = smul.u32 2, %s25
      %p445 = scmp.lt.s32.totalorder %s24, 1
      %s446 = scalar_select %p445, %s24, 1
      %p447 = scmp.lt.s32.totalorder %s444, 1
      %s448 = scalar_select %p447, %s444, 1
      %s449 = smul.addr %s446, 4
      %s450 = sadd.s32 %s448, %s449
      %s451 = smul.addr %s450, 8
      %s452 = scalar_lea.vmem %s7, %s451
      %s453 = smul.u32 2, %s25
      %s454 = smul.u32 2, %s25
      %p455 = scmp.lt.s32.totalorder %s24, 1
      %s456 = scalar_select %p455, %s24, 1
      %p457 = scmp.lt.s32.totalorder %s454, 1
      %s458 = scalar_select %p457, %s454, 1
      %s459 = smul.addr %s456, 4
      %s460 = sadd.s32 %s458, %s459
      %s461 = smul.addr %s460, 8
      %s462 = scalar_lea.vmem %s8, %s461
      %s463 = smul.u32 2, %s25
      %v464 = vld [vmem:[%s412] sm:$0xff]
      %v465 = vld [vmem:[%s422] sm:$0xff]
      %v466 = vld [vmem:[%s432] sm:$0xff]
      %v467 = vld [vmem:[%s3] sm:$0xf]
      %v468 = vld [vmem:[%s4] sm:$0xff]
      %v469 = vld [vmem:[%s4 + $0x8] sm:$0xff]
      %v470 = vld [vmem:[%s4 + $0x10] sm:$0xff]
      %v471 = vld [vmem:[%s4 + $0x18] sm:$0xff]
      %v472 = vld [vmem:[%s4 + $0x20] sm:$0xff]
      %v473 = vld [vmem:[%s4 + $0x28] sm:$0xff]
      %v474 = vld [vmem:[%s4 + $0x30] sm:$0xff]
      %v475 = vld [vmem:[%s4 + $0x38] sm:$0xff]
      %v476 = vld [vmem:[%s5] sm:$0xf]
      %v477 = vlaneseq
      %v478 = vshrl.u32 %v477, 7
      %v479 = vadd.s32 %v478, 8
      %v480 = vadd.s32 %v478, 16
      %vm481 = vcmp.eq.s32.totalorder %v478, 20
      %vm482 = vcmp.eq.s32.totalorder %v479, 20
      %vm483 = vcmp.eq.s32.totalorder %v480, 20
      %v484 = vsel %vm481, 1, 0
      %v485 = vsel %vm482, 1, 0
      %v486 = vsel %vm483, 1, 0
      %v487 = vcvt.s32.f32 %v484
      %v488 = vcvt.s32.f32 %v485
      %v489 = vcvt.s32.f32 %v486
      %490 = vst [vmem:[#allocation2] sm:$0xff] %v487
      %491 = vst [vmem:[#allocation2 + $0x8] sm:$0xff] %v487
      %492 = vst [vmem:[#allocation2 + $0x10] sm:$0xff] %v488
      %493 = vst [vmem:[#allocation2 + $0x18] sm:$0xff] %v488
      %494 = vst [vmem:[#allocation2 + $0x20] sm:$0x1f] %v489
      %495 = vst [vmem:[#allocation2 + $0x28] sm:$0x1f] %v489
      %v496 = vmul.f32 %v465, %v464
      %498 = vst [vmem:[#allocation1] ss:$2 sm:$0xff] %v464
      %v499 = vld.sshfl [vmem:[#allocation1] sm:$0xff pattern:$0x75316420]
      %v500 = vld.sshfl [vmem:[#allocation1 + $0x8] sm:$0xff pattern:$0x75316420]
      %502 = vst [vmem:[#allocation1] ss:$2 sm:$0xff] %v496
      %v503 = vld.sshfl [vmem:[#allocation1] sm:$0xff pattern:$0x75316420]
      %v504 = vld.sshfl [vmem:[#allocation1 + $0x8] sm:$0xff pattern:$0x75316420]
      %vm507 = vcmask 31744
      %v509 = vsel %vm507, %v467, 0
      %vm511 = vcmask 1043456
      %v512 = vsel %vm511, %v499, 0
      %v514 = vsel %vm511, %v500, 0
      %516 = vmatpush.msra.mxu0 0.0
      %517 = vmatpush.msra.mxu0 0.0
      %518 = vmatpush.msra.mxu0 0.0
      %519 = vmatpush.msra.mxu0 0.0
      %520 = vmatpush.msra.mxu0 0.0
      %521 = vmatpush.msra.mxu0 0.0
      %522 = vmatpush.msra.mxu0 0.0
      %523 = vmatpush.msra.mxu0 0.0
      %524 = vmatpush.msra.mxu0 0.0
      %525 = vmatpush.msra.mxu0 0.0
      %526 = vmatpush.msra.mxu0 0.0
      %527 = vmatpush.msra.mxu0 0.0
      %528 = vmatpush.msra.mxu0 0.0
      %529 = vmatpush.msra.mxu0 0.0
      %530 = vmatpush.msra.mxu0 0.0
      %531 = vmatpush.msra.mxu0 %v512
      %532 = vmatmul.f32.gmra.mxu0 %v509
      %v533 = vpop.f32.mrf.mxu0
      %v534 = vadd.f32 %v503, %v533
      %535 = vdwg.mxu0
      %536 = vmatpush.msra.mxu0 0.0
      %537 = vmatpush.msra.mxu0 0.0
      %538 = vmatpush.msra.mxu0 0.0
      %539 = vmatpush.msra.mxu0 0.0
      %540 = vmatpush.msra.mxu0 0.0
      %541 = vmatpush.msra.mxu0 0.0
      %542 = vmatpush.msra.mxu0 0.0
      %543 = vmatpush.msra.mxu0 0.0
      %544 = vmatpush.msra.mxu0 0.0
      %545 = vmatpush.msra.mxu0 0.0
      %546 = vmatpush.msra.mxu0 0.0
      %547 = vmatpush.msra.mxu0 0.0
      %548 = vmatpush.msra.mxu0 0.0
      %549 = vmatpush.msra.mxu0 0.0
      %550 = vmatpush.msra.mxu0 0.0
      %551 = vmatpush.msra.mxu0 %v514
      %552 = vmatmul.f32.gmra.mxu0 %v509
      %v553 = vpop.f32.mrf.mxu0
      %v554 = vadd.f32 %v504, %v553
      %555 = vdwg.mxu0
      %557 = vst [vmem:[#allocation1] ss:$2 sm:$0xff] %v466
      %v558 = vld.sshfl [vmem:[#allocation1] sm:$0xff pattern:$0x75316420]
      %v559 = vld.sshfl [vmem:[#allocation1 + $0x8] sm:$0xff pattern:$0x75316420]
      %v562 = vsub.f32 %v534, %v558
      %v563 = vsub.f32 %v554, %v559
      %564 = vst [vmem:[#allocation2 + $0x20] sm:$0xf] %v562
      %565 = vst [vmem:[#allocation2 + $0x28] sm:$0xf] %v563
      %v566 = vld [vmem:[#allocation2] sm:$0xff]
      %v567 = vld [vmem:[#allocation2 + $0x8] sm:$0xff]
      %v568 = vld [vmem:[#allocation2 + $0x10] sm:$0xff]
      %v569 = vld [vmem:[#allocation2 + $0x18] sm:$0xff]
      %v570 = vld [vmem:[#allocation2 + $0x20] sm:$0x1f]
      %v571 = vld [vmem:[#allocation2 + $0x28] sm:$0x1f]
      %vm572 = vcmask 171008
      %v574 = vsel %vm572, %v468, 0
      %v577 = vsel %vm572, %v469, 0
      %v580 = vsel %vm572, %v470, 0
      %v583 = vsel %vm572, %v471, 0
      %v586 = vsel %vm572, %v472, 0
      %v589 = vsel %vm572, %v473, 0
      %v592 = vsel %vm572, %v474, 0
      %v595 = vsel %vm572, %v475, 0
      %vm597 = vcmask 1044480
      %v599 = vsel %vm597, %v570, 0
      %v602 = vsel %vm597, %v571, 0
      %604 = vmatpush.msra.mxu0 0.0
      %605 = vmatpush.msra.mxu0 0.0
      %606 = vmatpush.msra.mxu0 0.0
      %607 = vmatpush.msra.mxu0 0.0
      %608 = vmatpush.msra.mxu0 0.0
      %609 = vmatpush.msra.mxu0 0.0
      %610 = vmatpush.msra.mxu0 0.0
      %611 = vmatpush.msra.mxu0 0.0
      %612 = vmatpush.msra.mxu0 0.0
      %613 = vmatpush.msra.mxu0 0.0
      %614 = vmatpush.msra.mxu0 0.0
      %615 = vmatpush.msra.mxu0 0.0
      %616 = vmatpush.msra.mxu0 0.0
      %617 = vmatpush.msra.mxu0 %v599
      %618 = vmatpush.msra.mxu0 %v568
      %619 = vmatpush.msra.mxu0 %v566
      %620 = vmatmul.f32.gmra.mxu0 %v574
      %v621 = vpop.f32.mrf.mxu0
      %v622 = vadd.f32 0.0, %v621
      %623 = vmatmul.f32.gmra.mxu0 %v577
      %v624 = vpop.f32.mrf.mxu0
      %v625 = vadd.f32 0.0, %v624
      %626 = vmatmul.f32.gmra.mxu0 %v580
      %v627 = vpop.f32.mrf.mxu0
      %v628 = vadd.f32 0.0, %v627
      %629 = vmatmul.f32.gmra.mxu0 %v583
      %v630 = vpop.f32.mrf.mxu0
      %v631 = vadd.f32 0.0, %v630
      %632 = vmatmul.f32.gmra.mxu0 %v586
      %v633 = vpop.f32.mrf.mxu0
      %v634 = vadd.f32 0.0, %v633
      %635 = vmatmul.f32.gmra.mxu0 %v589
      %v636 = vpop.f32.mrf.mxu0
      %v637 = vadd.f32 0.0, %v636
      %638 = vmatmul.f32.gmra.mxu0 %v592
      %v639 = vpop.f32.mrf.mxu0
      %v640 = vadd.f32 0.0, %v639
      %641 = vmatmul.f32.gmra.mxu0 %v595
      %v642 = vpop.f32.mrf.mxu0
      %v643 = vadd.f32 0.0, %v642
      %644 = vdwg.mxu0
      %645 = vmatpush.msra.mxu0 0.0
      %646 = vmatpush.msra.mxu0 0.0
      %647 = vmatpush.msra.mxu0 0.0
      %648 = vmatpush.msra.mxu0 0.0
      %649 = vmatpush.msra.mxu0 0.0
      %650 = vmatpush.msra.mxu0 0.0
      %651 = vmatpush.msra.mxu0 0.0
      %652 = vmatpush.msra.mxu0 0.0
      %653 = vmatpush.msra.mxu0 0.0
      %654 = vmatpush.msra.mxu0 0.0
      %655 = vmatpush.msra.mxu0 0.0
      %656 = vmatpush.msra.mxu0 0.0
      %657 = vmatpush.msra.mxu0 0.0
      %658 = vmatpush.msra.mxu0 %v602
      %659 = vmatpush.msra.mxu0 %v569
      %660 = vmatpush.msra.mxu0 %v567
      %661 = vmatmul.f32.gmra.mxu0 %v574
      %v662 = vpop.f32.mrf.mxu0
      %v663 = vadd.f32 0.0, %v662
      %664 = vmatmul.f32.gmra.mxu0 %v577
      %v665 = vpop.f32.mrf.mxu0
      %v666 = vadd.f32 0.0, %v665
      %667 = vmatmul.f32.gmra.mxu0 %v580
      %v668 = vpop.f32.mrf.mxu0
      %v669 = vadd.f32 0.0, %v668
      %670 = vmatmul.f32.gmra.mxu0 %v583
      %v671 = vpop.f32.mrf.mxu0
      %v672 = vadd.f32 0.0, %v671
      %673 = vmatmul.f32.gmra.mxu0 %v586
      %v674 = vpop.f32.mrf.mxu0
      %v675 = vadd.f32 0.0, %v674
      %676 = vmatmul.f32.gmra.mxu0 %v589
      %v677 = vpop.f32.mrf.mxu0
      %v678 = vadd.f32 0.0, %v677
      %679 = vmatmul.f32.gmra.mxu0 %v592
      %v680 = vpop.f32.mrf.mxu0
      %v681 = vadd.f32 0.0, %v680
      %682 = vmatmul.f32.gmra.mxu0 %v595
      %v683 = vpop.f32.mrf.mxu0
      %v684 = vadd.f32 0.0, %v683
      %685 = vdwg.mxu0
      %v686 = vmul.f32 %v622, 0.5
      %v687 = vmul.f32 %v663, 0.5
      %v688 = vmul.f32 %v625, 0.5
      %v689 = vmul.f32 %v666, 0.5
      %v690 = vtanh.pop %v686
      %v691 = vtanh.pop %v687
      %v692 = vtanh.pop %v688
      %v693 = vtanh.pop %v689
      %v694 = vadd.f32 %v690, 1.0
      %v695 = vadd.f32 %v691, 1.0
      %v696 = vadd.f32 %v692, 1.0
      %v697 = vadd.f32 %v693, 1.0
      %v698 = vmul.f32 %v694, 0.5
      %v699 = vmul.f32 %v695, 0.5
      %v700 = vmul.f32 %v696, 0.5
      %v701 = vmul.f32 %v697, 0.5
      %v702 = vmul.f32 %v628, 0.5
      %v703 = vmul.f32 %v669, 0.5
      %v704 = vmul.f32 %v631, 0.5
      %v705 = vmul.f32 %v672, 0.5
      %v706 = vtanh.pop %v702
      %v707 = vtanh.pop %v703
      %v708 = vtanh.pop %v704
      %v709 = vtanh.pop %v705
      %v710 = vadd.f32 %v706, 1.0
      %v711 = vadd.f32 %v707, 1.0
      %v712 = vadd.f32 %v708, 1.0
      %v713 = vadd.f32 %v709, 1.0
      %v714 = vmul.f32 %v710, 0.5
      %v715 = vmul.f32 %v711, 0.5
      %v716 = vmul.f32 %v712, 0.5
      %v717 = vmul.f32 %v713, 0.5
      %v718 = vmul.f32 %v634, 0.5
      %v719 = vmul.f32 %v675, 0.5
      %v720 = vmul.f32 %v637, 0.5
      %v721 = vmul.f32 %v678, 0.5
      %v722 = vtanh.pop %v718
      %v723 = vtanh.pop %v719
      %v724 = vtanh.pop %v720
      %v725 = vtanh.pop %v721
      %v726 = vadd.f32 %v722, 1.0
      %v727 = vadd.f32 %v723, 1.0
      %v728 = vadd.f32 %v724, 1.0
      %v729 = vadd.f32 %v725, 1.0
      %v730 = vmul.f32 %v726, 0.5
      %v731 = vmul.f32 %v727, 0.5
      %v732 = vmul.f32 %v728, 0.5
      %v733 = vmul.f32 %v729, 0.5
      %v734 = vtanh.pop %v640
      %v735 = vtanh.pop %v681
      %v736 = vtanh.pop %v643
      %v737 = vtanh.pop %v684
      %v738 = vmul.f32 %v714, 0.0
      %v739 = vmul.f32 %v715, 0.0
      %v740 = vmul.f32 %v716, 0.0
      %v741 = vmul.f32 %v717, 0.0
      %v742 = vmul.f32 %v698, %v734
      %v743 = vmul.f32 %v699, %v735
      %v744 = vmul.f32 %v700, %v736
      %v745 = vmul.f32 %v701, %v737
      %v746 = vadd.f32 %v738, %v742
      %v747 = vadd.f32 %v739, %v743
      %v748 = vadd.f32 %v740, %v744
      %v749 = vadd.f32 %v741, %v745
      %v750 = vtanh.pop %v746
      %v751 = vtanh.pop %v747
      %v752 = vtanh.pop %v748
      %v753 = vtanh.pop %v749
      %v754 = vmul.f32 %v730, %v750
      %v755 = vmul.f32 %v731, %v751
      %v756 = vmul.f32 %v732, %v752
      %v757 = vmul.f32 %v733, %v753
      %758 = vst [vmem:[#allocation2] sm:$0xff] %v754
      %759 = vst [vmem:[#allocation2 + $0x8] sm:$0xff] %v755
      %760 = vst [vmem:[#allocation2 + $0x10] sm:$0xff] %v756
      %761 = vst [vmem:[#allocation2 + $0x18] sm:$0xff] %v757
      %vm762 = vcmask 130048
      %v764 = vsel %vm762, %v476, 0
      %766 = vmatpush.msra.mxu0 0.0
      %767 = vmatpush.msra.mxu0 0.0
      %768 = vmatpush.msra.mxu0 0.0
      %769 = vmatpush.msra.mxu0 0.0
      %770 = vmatpush.msra.mxu0 0.0
      %771 = vmatpush.msra.mxu0 0.0
      %772 = vmatpush.msra.mxu0 0.0
      %773 = vmatpush.msra.mxu0 0.0
      %774 = vmatpush.msra.mxu0 0.0
      %775 = vmatpush.msra.mxu0 0.0
      %776 = vmatpush.msra.mxu0 0.0
      %777 = vmatpush.msra.mxu0 0.0
      %778 = vmatpush.msra.mxu0 0.0
      %779 = vmatpush.msra.mxu0 0.0
      %780 = vmatpush.msra.mxu0 %v756
      %781 = vmatpush.msra.mxu0 %v754
      %782 = vmatmul.f32.gmra.mxu0 %v764
      %v783 = vpop.f32.mrf.mxu0
      %v784 = vadd.f32 0.0, %v783
      %785 = vdwg.mxu0
      %786 = vmatpush.msra.mxu0 0.0
      %787 = vmatpush.msra.mxu0 0.0
      %788 = vmatpush.msra.mxu0 0.0
      %789 = vmatpush.msra.mxu0 0.0
      %790 = vmatpush.msra.mxu0 0.0
      %791 = vmatpush.msra.mxu0 0.0
      %792 = vmatpush.msra.mxu0 0.0
      %793 = vmatpush.msra.mxu0 0.0
      %794 = vmatpush.msra.mxu0 0.0
      %795 = vmatpush.msra.mxu0 0.0
      %796 = vmatpush.msra.mxu0 0.0
      %797 = vmatpush.msra.mxu0 0.0
      %798 = vmatpush.msra.mxu0 0.0
      %799 = vmatpush.msra.mxu0 0.0
      %800 = vmatpush.msra.mxu0 %v757
      %801 = vmatpush.msra.mxu0 %v755
      %802 = vmatmul.f32.gmra.mxu0 %v764
      %v803 = vpop.f32.mrf.mxu0
      %v804 = vadd.f32 0.0, %v803
      %805 = vdwg.mxu0
      %v808 = vrot.slane %v804, 4
      %v809 = vsel %vm511, %v784, %v808
      %v811 = vsub.f32 %v464, %v809
      %v812 = vmul.f32 %v465, %v811
      %814 = vst [vmem:[#allocation1] ss:$2 sm:$0xff] %v811
      %v815 = vld.sshfl [vmem:[#allocation1] sm:$0xff pattern:$0x75316420]
      %v816 = vld.sshfl [vmem:[#allocation1 + $0x8] sm:$0xff pattern:$0x75316420]
      %818 = vst [vmem:[#allocation1] ss:$2 sm:$0xff] %v812
      %v819 = vld.sshfl [vmem:[#allocation1] sm:$0xff pattern:$0x75316420]
      %v820 = vld.sshfl [vmem:[#allocation1 + $0x8] sm:$0xff pattern:$0x75316420]
      %v823 = vsel %vm511, %v815, 0
      %v825 = vsel %vm511, %v816, 0
      %827 = vmatpush.msra.mxu0 0.0
      %828 = vmatpush.msra.mxu0 0.0
      %829 = vmatpush.msra.mxu0 0.0
      %830 = vmatpush.msra.mxu0 0.0
      %831 = vmatpush.msra.mxu0 0.0
      %832 = vmatpush.msra.mxu0 0.0
      %833 = vmatpush.msra.mxu0 0.0
      %834 = vmatpush.msra.mxu0 0.0
      %835 = vmatpush.msra.mxu0 0.0
      %836 = vmatpush.msra.mxu0 0.0
      %837 = vmatpush.msra.mxu0 0.0
      %838 = vmatpush.msra.mxu0 0.0
      %839 = vmatpush.msra.mxu0 0.0
      %840 = vmatpush.msra.mxu0 0.0
      %841 = vmatpush.msra.mxu0 0.0
      %842 = vmatpush.msra.mxu0 %v823
      %843 = vmatmul.f32.gmra.mxu0 %v509
      %v844 = vpop.f32.mrf.mxu0
      %v845 = vadd.f32 %v819, %v844
      %846 = vdwg.mxu0
      %847 = vmatpush.msra.mxu0 0.0
      %848 = vmatpush.msra.mxu0 0.0
      %849 = vmatpush.msra.mxu0 0.0
      %850 = vmatpush.msra.mxu0 0.0
      %851 = vmatpush.msra.mxu0 0.0
      %852 = vmatpush.msra.mxu0 0.0
      %853 = vmatpush.msra.mxu0 0.0
      %854 = vmatpush.msra.mxu0 0.0
      %855 = vmatpush.msra.mxu0 0.0
      %856 = vmatpush.msra.mxu0 0.0
      %857 = vmatpush.msra.mxu0 0.0
      %858 = vmatpush.msra.mxu0 0.0
      %859 = vmatpush.msra.mxu0 0.0
      %860 = vmatpush.msra.mxu0 0.0
      %861 = vmatpush.msra.mxu0 0.0
      %862 = vmatpush.msra.mxu0 %v825
      %863 = vmatmul.f32.gmra.mxu0 %v509
      %v864 = vpop.f32.mrf.mxu0
      %v865 = vadd.f32 %v820, %v864
      %866 = vdwg.mxu0
      %867 = vst [vmem:[#allocation1] ss:$2 sm:$0xff] %v466
      %v868 = vld.sshfl [vmem:[#allocation1] sm:$0xff pattern:$0x75316420]
      %v869 = vld.sshfl [vmem:[#allocation1 + $0x8] sm:$0xff pattern:$0x75316420]
      %v872 = vsub.f32 %v845, %v868
      %v873 = vsub.f32 %v865, %v869
      %874 = vst [vmem:[#allocation2 + $0x20] sm:$0xf] %v872
      %875 = vst [vmem:[#allocation2 + $0x28] sm:$0xf] %v873
      %v876 = vld [vmem:[#allocation2] sm:$0xff]
      %v877 = vld [vmem:[#allocation2 + $0x8] sm:$0xff]
      %v878 = vld [vmem:[#allocation2 + $0x10] sm:$0xff]
      %v879 = vld [vmem:[#allocation2 + $0x18] sm:$0xff]
      %v880 = vld [vmem:[#allocation2 + $0x20] sm:$0x1f]
      %v881 = vld [vmem:[#allocation2 + $0x28] sm:$0x1f]
      %v883 = vsel %vm597, %v880, 0
      %v886 = vsel %vm597, %v881, 0
      %888 = vmatpush.msra.mxu0 0.0
      %889 = vmatpush.msra.mxu0 0.0
      %890 = vmatpush.msra.mxu0 0.0
      %891 = vmatpush.msra.mxu0 0.0
      %892 = vmatpush.msra.mxu0 0.0
      %893 = vmatpush.msra.mxu0 0.0
      %894 = vmatpush.msra.mxu0 0.0
      %895 = vmatpush.msra.mxu0 0.0
      %896 = vmatpush.msra.mxu0 0.0
      %897 = vmatpush.msra.mxu0 0.0
      %898 = vmatpush.msra.mxu0 0.0
      %899 = vmatpush.msra.mxu0 0.0
      %900 = vmatpush.msra.mxu0 0.0
      %901 = vmatpush.msra.mxu0 %v883
      %902 = vmatpush.msra.mxu0 %v878
      %903 = vmatpush.msra.mxu0 %v876
      %904 = vmatmul.f32.gmra.mxu0 %v574
      %v905 = vpop.f32.mrf.mxu0
      %v906 = vadd.f32 0.0, %v905
      %907 = vmatmul.f32.gmra.mxu0 %v577
      %v908 = vpop.f32.mrf.mxu0
      %v909 = vadd.f32 0.0, %v908
      %910 = vmatmul.f32.gmra.mxu0 %v580
      %v911 = vpop.f32.mrf.mxu0
      %v912 = vadd.f32 0.0, %v911
      %913 = vmatmul.f32.gmra.mxu0 %v583
      %v914 = vpop.f32.mrf.mxu0
      %v915 = vadd.f32 0.0, %v914
      %916 = vmatmul.f32.gmra.mxu0 %v586
      %v917 = vpop.f32.mrf.mxu0
      %v918 = vadd.f32 0.0, %v917
      %919 = vmatmul.f32.gmra.mxu0 %v589
      %v920 = vpop.f32.mrf.mxu0
      %v921 = vadd.f32 0.0, %v920
      %922 = vmatmul.f32.gmra.mxu0 %v592
      %v923 = vpop.f32.mrf.mxu0
      %v924 = vadd.f32 0.0, %v923
      %925 = vmatmul.f32.gmra.mxu0 %v595
      %v926 = vpop.f32.mrf.mxu0
      %v927 = vadd.f32 0.0, %v926
      %928 = vdwg.mxu0
      %929 = vmatpush.msra.mxu0 0.0
      %930 = vmatpush.msra.mxu0 0.0
      %931 = vmatpush.msra.mxu0 0.0
      %932 = vmatpush.msra.mxu0 0.0
      %933 = vmatpush.msra.mxu0 0.0
      %934 = vmatpush.msra.mxu0 0.0
      %935 = vmatpush.msra.mxu0 0.0
      %936 = vmatpush.msra.mxu0 0.0
      %937 = vmatpush.msra.mxu0 0.0
      %938 = vmatpush.msra.mxu0 0.0
      %939 = vmatpush.msra.mxu0 0.0
      %940 = vmatpush.msra.mxu0 0.0
      %941 = vmatpush.msra.mxu0 0.0
      %942 = vmatpush.msra.mxu0 %v886
      %943 = vmatpush.msra.mxu0 %v879
      %944 = vmatpush.msra.mxu0 %v877
      %945 = vmatmul.f32.gmra.mxu0 %v574
      %v946 = vpop.f32.mrf.mxu0
      %v947 = vadd.f32 0.0, %v946
      %948 = vmatmul.f32.gmra.mxu0 %v577
      %v949 = vpop.f32.mrf.mxu0
      %v950 = vadd.f32 0.0, %v949
      %951 = vmatmul.f32.gmra.mxu0 %v580
      %v952 = vpop.f32.mrf.mxu0
      %v953 = vadd.f32 0.0, %v952
      %954 = vmatmul.f32.gmra.mxu0 %v583
      %v955 = vpop.f32.mrf.mxu0
      %v956 = vadd.f32 0.0, %v955
      %957 = vmatmul.f32.gmra.mxu0 %v586
      %v958 = vpop.f32.mrf.mxu0
      %v959 = vadd.f32 0.0, %v958
      %960 = vmatmul.f32.gmra.mxu0 %v589
      %v961 = vpop.f32.mrf.mxu0
      %v962 = vadd.f32 0.0, %v961
      %963 = vmatmul.f32.gmra.mxu0 %v592
      %v964 = vpop.f32.mrf.mxu0
      %v965 = vadd.f32 0.0, %v964
      %966 = vmatmul.f32.gmra.mxu0 %v595
      %v967 = vpop.f32.mrf.mxu0
      %v968 = vadd.f32 0.0, %v967
      %969 = vdwg.mxu0
      %v970 = vmul.f32 %v906, 0.5
      %v971 = vmul.f32 %v947, 0.5
      %v972 = vmul.f32 %v909, 0.5
      %v973 = vmul.f32 %v950, 0.5
      %v974 = vtanh.pop %v970
      %v975 = vtanh.pop %v971
      %v976 = vtanh.pop %v972
      %v977 = vtanh.pop %v973
      %v978 = vadd.f32 %v974, 1.0
      %v979 = vadd.f32 %v975, 1.0
      %v980 = vadd.f32 %v976, 1.0
      %v981 = vadd.f32 %v977, 1.0
      %v982 = vmul.f32 %v978, 0.5
      %v983 = vmul.f32 %v979, 0.5
      %v984 = vmul.f32 %v980, 0.5
      %v985 = vmul.f32 %v981, 0.5
      %v986 = vmul.f32 %v912, 0.5
      %v987 = vmul.f32 %v953, 0.5
      %v988 = vmul.f32 %v915, 0.5
      %v989 = vmul.f32 %v956, 0.5
      %v990 = vtanh.pop %v986
      %v991 = vtanh.pop %v987
      %v992 = vtanh.pop %v988
      %v993 = vtanh.pop %v989
      %v994 = vadd.f32 %v990, 1.0
      %v995 = vadd.f32 %v991, 1.0
      %v996 = vadd.f32 %v992, 1.0
      %v997 = vadd.f32 %v993, 1.0
      %v998 = vmul.f32 %v994, 0.5
      %v999 = vmul.f32 %v995, 0.5
      %v1000 = vmul.f32 %v996, 0.5
      %v1001 = vmul.f32 %v997, 0.5
      %v1002 = vmul.f32 %v918, 0.5
      %v1003 = vmul.f32 %v959, 0.5
      %v1004 = vmul.f32 %v921, 0.5
      %v1005 = vmul.f32 %v962, 0.5
      %v1006 = vtanh.pop %v1002
      %v1007 = vtanh.pop %v1003
      %v1008 = vtanh.pop %v1004
      %v1009 = vtanh.pop %v1005
      %v1010 = vadd.f32 %v1006, 1.0
      %v1011 = vadd.f32 %v1007, 1.0
      %v1012 = vadd.f32 %v1008, 1.0
      %v1013 = vadd.f32 %v1009, 1.0
      %v1014 = vmul.f32 %v1010, 0.5
      %v1015 = vmul.f32 %v1011, 0.5
      %v1016 = vmul.f32 %v1012, 0.5
      %v1017 = vmul.f32 %v1013, 0.5
      %v1018 = vtanh.pop %v924
      %v1019 = vtanh.pop %v965
      %v1020 = vtanh.pop %v927
      %v1021 = vtanh.pop %v968
      %v1022 = vmul.f32 %v998, %v746
      %v1023 = vmul.f32 %v999, %v747
      %v1024 = vmul.f32 %v1000, %v748
      %v1025 = vmul.f32 %v1001, %v749
      %v1026 = vmul.f32 %v982, %v1018
      %v1027 = vmul.f32 %v983, %v1019
      %v1028 = vmul.f32 %v984, %v1020
      %v1029 = vmul.f32 %v985, %v1021
      %v1030 = vadd.f32 %v1022, %v1026
      %v1031 = vadd.f32 %v1023, %v1027
      %v1032 = vadd.f32 %v1024, %v1028
      %v1033 = vadd.f32 %v1025, %v1029
      %v1034 = vtanh.pop %v1030
      %v1035 = vtanh.pop %v1031
      %v1036 = vtanh.pop %v1032
      %v1037 = vtanh.pop %v1033
      %v1038 = vmul.f32 %v1014, %v1034
      %v1039 = vmul.f32 %v1015, %v1035
      %v1040 = vmul.f32 %v1016, %v1036
      %v1041 = vmul.f32 %v1017, %v1037
      %1042 = vst [vmem:[#allocation2] sm:$0xff] %v1038
      %1043 = vst [vmem:[#allocation2 + $0x8] sm:$0xff] %v1039
      %1044 = vst [vmem:[#allocation2 + $0x10] sm:$0xff] %v1040
      %1045 = vst [vmem:[#allocation2 + $0x18] sm:$0xff] %v1041
      %1046 = vmatpush.msra.mxu0 0.0
      %1047 = vmatpush.msra.mxu0 0.0
      %1048 = vmatpush.msra.mxu0 0.0
      %1049 = vmatpush.msra.mxu0 0.0
      %1050 = vmatpush.msra.mxu0 0.0
      %1051 = vmatpush.msra.mxu0 0.0
      %1052 = vmatpush.msra.mxu0 0.0
      %1053 = vmatpush.msra.mxu0 0.0
      %1054 = vmatpush.msra.mxu0 0.0
      %1055 = vmatpush.msra.mxu0 0.0
      %1056 = vmatpush.msra.mxu0 0.0
      %1057 = vmatpush.msra.mxu0 0.0
      %1058 = vmatpush.msra.mxu0 0.0
      %1059 = vmatpush.msra.mxu0 0.0
      %1060 = vmatpush.msra.mxu0 %v1040
      %1061 = vmatpush.msra.mxu0 %v1038
      %1062 = vmatmul.f32.gmra.mxu0 %v764
      %v1063 = vpop.f32.mrf.mxu0
      %v1064 = vadd.f32 0.0, %v1063
      %1065 = vdwg.mxu0
      %1066 = vmatpush.msra.mxu0 0.0
      %1067 = vmatpush.msra.mxu0 0.0
      %1068 = vmatpush.msra.mxu0 0.0
      %1069 = vmatpush.msra.mxu0 0.0
      %1070 = vmatpush.msra.mxu0 0.0
      %1071 = vmatpush.msra.mxu0 0.0
      %1072 = vmatpush.msra.mxu0 0.0
      %1073 = vmatpush.msra.mxu0 0.0
      %1074 = vmatpush.msra.mxu0 0.0
      %1075 = vmatpush.msra.mxu0 0.0
      %1076 = vmatpush.msra.mxu0 0.0
      %1077 = vmatpush.msra.mxu0 0.0
      %1078 = vmatpush.msra.mxu0 0.0
      %1079 = vmatpush.msra.mxu0 0.0
      %1080 = vmatpush.msra.mxu0 %v1041
      %1081 = vmatpush.msra.mxu0 %v1039
      %1082 = vmatmul.f32.gmra.mxu0 %v764
      %v1083 = vpop.f32.mrf.mxu0
      %v1084 = vadd.f32 0.0, %v1083
      %1085 = vdwg.mxu0
      %v1088 = vrot.slane %v1084, 4
      %v1089 = vsel %vm511, %v1064, %v1088
      %v1091 = vsub.f32 %v811, %v1089
      %v1092 = vmul.f32 %v465, %v1091
      %1094 = vst [vmem:[#allocation1] ss:$2 sm:$0xff] %v1091
      %v1095 = vld.sshfl [vmem:[#allocation1] sm:$0xff pattern:$0x75316420]
      %v1096 = vld.sshfl [vmem:[#allocation1 + $0x8] sm:$0xff pattern:$0x75316420]
      %1098 = vst [vmem:[#allocation1] ss:$2 sm:$0xff] %v1092
      %v1099 = vld.sshfl [vmem:[#allocation1] sm:$0xff pattern:$0x75316420]
      %v1100 = vld.sshfl [vmem:[#allocation1 + $0x8] sm:$0xff pattern:$0x75316420]
      %v1103 = vsel %vm511, %v1095, 0
      %v1105 = vsel %vm511, %v1096, 0
      %1107 = vmatpush.msra.mxu0 0.0
      %1108 = vmatpush.msra.mxu0 0.0
      %1109 = vmatpush.msra.mxu0 0.0
      %1110 = vmatpush.msra.mxu0 0.0
      %1111 = vmatpush.msra.mxu0 0.0
      %1112 = vmatpush.msra.mxu0 0.0
      %1113 = vmatpush.msra.mxu0 0.0
      %1114 = vmatpush.msra.mxu0 0.0
      %1115 = vmatpush.msra.mxu0 0.0
      %1116 = vmatpush.msra.mxu0 0.0
      %1117 = vmatpush.msra.mxu0 0.0
      %1118 = vmatpush.msra.mxu0 0.0
      %1119 = vmatpush.msra.mxu0 0.0
      %1120 = vmatpush.msra.mxu0 0.0
      %1121 = vmatpush.msra.mxu0 0.0
      %1122 = vmatpush.msra.mxu0 %v1103
      %1123 = vmatmul.f32.gmra.mxu0 %v509
      %v1124 = vpop.f32.mrf.mxu0
      %v1125 = vadd.f32 %v1099, %v1124
      %1126 = vdwg.mxu0
      %1127 = vmatpush.msra.mxu0 0.0
      %1128 = vmatpush.msra.mxu0 0.0
      %1129 = vmatpush.msra.mxu0 0.0
      %1130 = vmatpush.msra.mxu0 0.0
      %1131 = vmatpush.msra.mxu0 0.0
      %1132 = vmatpush.msra.mxu0 0.0
      %1133 = vmatpush.msra.mxu0 0.0
      %1134 = vmatpush.msra.mxu0 0.0
      %1135 = vmatpush.msra.mxu0 0.0
      %1136 = vmatpush.msra.mxu0 0.0
      %1137 = vmatpush.msra.mxu0 0.0
      %1138 = vmatpush.msra.mxu0 0.0
      %1139 = vmatpush.msra.mxu0 0.0
      %1140 = vmatpush.msra.mxu0 0.0
      %1141 = vmatpush.msra.mxu0 0.0
      %1142 = vmatpush.msra.mxu0 %v1105
      %1143 = vmatmul.f32.gmra.mxu0 %v509
      %v1144 = vpop.f32.mrf.mxu0
      %v1145 = vadd.f32 %v1100, %v1144
      %1146 = vdwg.mxu0
      %1147 = vst [vmem:[#allocation1] ss:$2 sm:$0xff] %v466
      %v1148 = vld.sshfl [vmem:[#allocation1] sm:$0xff pattern:$0x75316420]
      %v1149 = vld.sshfl [vmem:[#allocation1 + $0x8] sm:$0xff pattern:$0x75316420]
      %v1152 = vsub.f32 %v1125, %v1148
      %v1153 = vsub.f32 %v1145, %v1149
      %1154 = vst [vmem:[#allocation2 + $0x20] sm:$0xf] %v1152
      %1155 = vst [vmem:[#allocation2 + $0x28] sm:$0xf] %v1153
      %v1156 = vld [vmem:[#allocation2] sm:$0xff]
      %v1157 = vld [vmem:[#allocation2 + $0x8] sm:$0xff]
      %v1158 = vld [vmem:[#allocation2 + $0x10] sm:$0xff]
      %v1159 = vld [vmem:[#allocation2 + $0x18] sm:$0xff]
      %v1160 = vld [vmem:[#allocation2 + $0x20] sm:$0x1f]
      %v1161 = vld [vmem:[#allocation2 + $0x28] sm:$0x1f]
      %v1163 = vsel %vm597, %v1160, 0
      %v1166 = vsel %vm597, %v1161, 0
      %1168 = vmatpush.msra.mxu0 0.0
      %1169 = vmatpush.msra.mxu0 0.0
      %1170 = vmatpush.msra.mxu0 0.0
      %1171 = vmatpush.msra.mxu0 0.0
      %1172 = vmatpush.msra.mxu0 0.0
      %1173 = vmatpush.msra.mxu0 0.0
      %1174 = vmatpush.msra.mxu0 0.0
      %1175 = vmatpush.msra.mxu0 0.0
      %1176 = vmatpush.msra.mxu0 0.0
      %1177 = vmatpush.msra.mxu0 0.0
      %1178 = vmatpush.msra.mxu0 0.0
      %1179 = vmatpush.msra.mxu0 0.0
      %1180 = vmatpush.msra.mxu0 0.0
      %1181 = vmatpush.msra.mxu0 %v1163
      %1182 = vmatpush.msra.mxu0 %v1158
      %1183 = vmatpush.msra.mxu0 %v1156
      %1184 = vmatmul.f32.gmra.mxu0 %v574
      %v1185 = vpop.f32.mrf.mxu0
      %v1186 = vadd.f32 0.0, %v1185
      %1187 = vmatmul.f32.gmra.mxu0 %v577
      %v1188 = vpop.f32.mrf.mxu0
      %v1189 = vadd.f32 0.0, %v1188
      %1190 = vmatmul.f32.gmra.mxu0 %v580
      %v1191 = vpop.f32.mrf.mxu0
      %v1192 = vadd.f32 0.0, %v1191
      %1193 = vmatmul.f32.gmra.mxu0 %v583
      %v1194 = vpop.f32.mrf.mxu0
      %v1195 = vadd.f32 0.0, %v1194
      %1196 = vmatmul.f32.gmra.mxu0 %v586
      %v1197 = vpop.f32.mrf.mxu0
      %v1198 = vadd.f32 0.0, %v1197
      %1199 = vmatmul.f32.gmra.mxu0 %v589
      %v1200 = vpop.f32.mrf.mxu0
      %v1201 = vadd.f32 0.0, %v1200
      %1202 = vmatmul.f32.gmra.mxu0 %v592
      %v1203 = vpop.f32.mrf.mxu0
      %v1204 = vadd.f32 0.0, %v1203
      %1205 = vmatmul.f32.gmra.mxu0 %v595
      %v1206 = vpop.f32.mrf.mxu0
      %v1207 = vadd.f32 0.0, %v1206
      %1208 = vdwg.mxu0
      %1209 = vmatpush.msra.mxu0 0.0
      %1210 = vmatpush.msra.mxu0 0.0
      %1211 = vmatpush.msra.mxu0 0.0
      %1212 = vmatpush.msra.mxu0 0.0
      %1213 = vmatpush.msra.mxu0 0.0
      %1214 = vmatpush.msra.mxu0 0.0
      %1215 = vmatpush.msra.mxu0 0.0
      %1216 = vmatpush.msra.mxu0 0.0
      %1217 = vmatpush.msra.mxu0 0.0
      %1218 = vmatpush.msra.mxu0 0.0
      %1219 = vmatpush.msra.mxu0 0.0
      %1220 = vmatpush.msra.mxu0 0.0
      %1221 = vmatpush.msra.mxu0 0.0
      %1222 = vmatpush.msra.mxu0 %v1166
      %1223 = vmatpush.msra.mxu0 %v1159
      %1224 = vmatpush.msra.mxu0 %v1157
      %1225 = vmatmul.f32.gmra.mxu0 %v574
      %v1226 = vpop.f32.mrf.mxu0
      %v1227 = vadd.f32 0.0, %v1226
      %1228 = vmatmul.f32.gmra.mxu0 %v577
      %v1229 = vpop.f32.mrf.mxu0
      %v1230 = vadd.f32 0.0, %v1229
      %1231 = vmatmul.f32.gmra.mxu0 %v580
      %v1232 = vpop.f32.mrf.mxu0
      %v1233 = vadd.f32 0.0, %v1232
      %1234 = vmatmul.f32.gmra.mxu0 %v583
      %v1235 = vpop.f32.mrf.mxu0
      %v1236 = vadd.f32 0.0, %v1235
      %1237 = vmatmul.f32.gmra.mxu0 %v586
      %v1238 = vpop.f32.mrf.mxu0
      %v1239 = vadd.f32 0.0, %v1238
      %1240 = vmatmul.f32.gmra.mxu0 %v589
      %v1241 = vpop.f32.mrf.mxu0
      %v1242 = vadd.f32 0.0, %v1241
      %1243 = vmatmul.f32.gmra.mxu0 %v592
      %v1244 = vpop.f32.mrf.mxu0
      %v1245 = vadd.f32 0.0, %v1244
      %1246 = vmatmul.f32.gmra.mxu0 %v595
      %v1247 = vpop.f32.mrf.mxu0
      %v1248 = vadd.f32 0.0, %v1247
      %1249 = vdwg.mxu0
      %v1250 = vmul.f32 %v1186, 0.5
      %v1251 = vmul.f32 %v1227, 0.5
      %v1252 = vmul.f32 %v1189, 0.5
      %v1253 = vmul.f32 %v1230, 0.5
      %v1254 = vtanh.pop %v1250
      %v1255 = vtanh.pop %v1251
      %v1256 = vtanh.pop %v1252
      %v1257 = vtanh.pop %v1253
      %v1258 = vadd.f32 %v1254, 1.0
      %v1259 = vadd.f32 %v1255, 1.0
      %v1260 = vadd.f32 %v1256, 1.0
      %v1261 = vadd.f32 %v1257, 1.0
      %v1262 = vmul.f32 %v1258, 0.5
      %v1263 = vmul.f32 %v1259, 0.5
      %v1264 = vmul.f32 %v1260, 0.5
      %v1265 = vmul.f32 %v1261, 0.5
      %v1266 = vmul.f32 %v1192, 0.5
      %v1267 = vmul.f32 %v1233, 0.5
      %v1268 = vmul.f32 %v1195, 0.5
      %v1269 = vmul.f32 %v1236, 0.5
      %v1270 = vtanh.pop %v1266
      %v1271 = vtanh.pop %v1267
      %v1272 = vtanh.pop %v1268
      %v1273 = vtanh.pop %v1269
      %v1274 = vadd.f32 %v1270, 1.0
      %v1275 = vadd.f32 %v1271, 1.0
      %v1276 = vadd.f32 %v1272, 1.0
      %v1277 = vadd.f32 %v1273, 1.0
      %v1278 = vmul.f32 %v1274, 0.5
      %v1279 = vmul.f32 %v1275, 0.5
      %v1280 = vmul.f32 %v1276, 0.5
      %v1281 = vmul.f32 %v1277, 0.5
      %v1282 = vmul.f32 %v1198, 0.5
      %v1283 = vmul.f32 %v1239, 0.5
      %v1284 = vmul.f32 %v1201, 0.5
      %v1285 = vmul.f32 %v1242, 0.5
      %v1286 = vtanh.pop %v1282
      %v1287 = vtanh.pop %v1283
      %v1288 = vtanh.pop %v1284
      %v1289 = vtanh.pop %v1285
      %v1290 = vadd.f32 %v1286, 1.0
      %v1291 = vadd.f32 %v1287, 1.0
      %v1292 = vadd.f32 %v1288, 1.0
      %v1293 = vadd.f32 %v1289, 1.0
      %v1294 = vmul.f32 %v1290, 0.5
      %v1295 = vmul.f32 %v1291, 0.5
      %v1296 = vmul.f32 %v1292, 0.5
      %v1297 = vmul.f32 %v1293, 0.5
      %v1298 = vtanh.pop %v1204
      %v1299 = vtanh.pop %v1245
      %v1300 = vtanh.pop %v1207
      %v1301 = vtanh.pop %v1248
      %v1302 = vmul.f32 %v1278, %v1030
      %v1303 = vmul.f32 %v1279, %v1031
      %v1304 = vmul.f32 %v1280, %v1032
      %v1305 = vmul.f32 %v1281, %v1033
      %v1306 = vmul.f32 %v1262, %v1298
      %v1307 = vmul.f32 %v1263, %v1299
      %v1308 = vmul.f32 %v1264, %v1300
      %v1309 = vmul.f32 %v1265, %v1301
      %v1310 = vadd.f32 %v1302, %v1306
      %v1311 = vadd.f32 %v1303, %v1307
      %v1312 = vadd.f32 %v1304, %v1308
      %v1313 = vadd.f32 %v1305, %v1309
      %v1314 = vtanh.pop %v1310
      %v1315 = vtanh.pop %v1311
      %v1316 = vtanh.pop %v1312
      %v1317 = vtanh.pop %v1313
      %v1318 = vmul.f32 %v1294, %v1314
      %v1319 = vmul.f32 %v1295, %v1315
      %v1320 = vmul.f32 %v1296, %v1316
      %v1321 = vmul.f32 %v1297, %v1317
      %1322 = vst [vmem:[#allocation2] sm:$0xff] %v1318
      %1323 = vst [vmem:[#allocation2 + $0x8] sm:$0xff] %v1319
      %1324 = vst [vmem:[#allocation2 + $0x10] sm:$0xff] %v1320
      %1325 = vst [vmem:[#allocation2 + $0x18] sm:$0xff] %v1321
      %1326 = vmatpush.msra.mxu0 0.0
      %1327 = vmatpush.msra.mxu0 0.0
      %1328 = vmatpush.msra.mxu0 0.0
      %1329 = vmatpush.msra.mxu0 0.0
      %1330 = vmatpush.msra.mxu0 0.0
      %1331 = vmatpush.msra.mxu0 0.0
      %1332 = vmatpush.msra.mxu0 0.0
      %1333 = vmatpush.msra.mxu0 0.0
      %1334 = vmatpush.msra.mxu0 0.0
      %1335 = vmatpush.msra.mxu0 0.0
      %1336 = vmatpush.msra.mxu0 0.0
      %1337 = vmatpush.msra.mxu0 0.0
      %1338 = vmatpush.msra.mxu0 0.0
      %1339 = vmatpush.msra.mxu0 0.0
      %1340 = vmatpush.msra.mxu0 %v1320
      %1341 = vmatpush.msra.mxu0 %v1318
      %1342 = vmatmul.f32.gmra.mxu0 %v764
      %v1343 = vpop.f32.mrf.mxu0
      %v1344 = vadd.f32 0.0, %v1343
      %1345 = vdwg.mxu0
      %1346 = vmatpush.msra.mxu0 0.0
      %1347 = vmatpush.msra.mxu0 0.0
      %1348 = vmatpush.msra.mxu0 0.0
      %1349 = vmatpush.msra.mxu0 0.0
      %1350 = vmatpush.msra.mxu0 0.0
      %1351 = vmatpush.msra.mxu0 0.0
      %1352 = vmatpush.msra.mxu0 0.0
      %1353 = vmatpush.msra.mxu0 0.0
      %1354 = vmatpush.msra.mxu0 0.0
      %1355 = vmatpush.msra.mxu0 0.0
      %1356 = vmatpush.msra.mxu0 0.0
      %1357 = vmatpush.msra.mxu0 0.0
      %1358 = vmatpush.msra.mxu0 0.0
      %1359 = vmatpush.msra.mxu0 0.0
      %1360 = vmatpush.msra.mxu0 %v1321
      %1361 = vmatpush.msra.mxu0 %v1319
      %1362 = vmatmul.f32.gmra.mxu0 %v764
      %v1363 = vpop.f32.mrf.mxu0
      %v1364 = vadd.f32 0.0, %v1363
      %1365 = vdwg.mxu0
      %v1368 = vrot.slane %v1364, 4
      %v1369 = vsel %vm511, %v1344, %v1368
      %v1371 = vsub.f32 %v1091, %v1369
      %v1372 = vmul.f32 %v465, %v1371
      %1374 = vst [vmem:[#allocation1] ss:$2 sm:$0xff] %v1371
      %v1375 = vld.sshfl [vmem:[#allocation1] sm:$0xff pattern:$0x75316420]
      %v1376 = vld.sshfl [vmem:[#allocation1 + $0x8] sm:$0xff pattern:$0x75316420]
      %1378 = vst [vmem:[#allocation1] ss:$2 sm:$0xff] %v1372
      %v1379 = vld.sshfl [vmem:[#allocation1] sm:$0xff pattern:$0x75316420]
      %v1380 = vld.sshfl [vmem:[#allocation1 + $0x8] sm:$0xff pattern:$0x75316420]
      %v1383 = vsel %vm511, %v1375, 0
      %v1385 = vsel %vm511, %v1376, 0
      %1387 = vmatpush.msra.mxu0 0.0
      %1388 = vmatpush.msra.mxu0 0.0
      %1389 = vmatpush.msra.mxu0 0.0
      %1390 = vmatpush.msra.mxu0 0.0
      %1391 = vmatpush.msra.mxu0 0.0
      %1392 = vmatpush.msra.mxu0 0.0
      %1393 = vmatpush.msra.mxu0 0.0
      %1394 = vmatpush.msra.mxu0 0.0
      %1395 = vmatpush.msra.mxu0 0.0
      %1396 = vmatpush.msra.mxu0 0.0
      %1397 = vmatpush.msra.mxu0 0.0
      %1398 = vmatpush.msra.mxu0 0.0
      %1399 = vmatpush.msra.mxu0 0.0
      %1400 = vmatpush.msra.mxu0 0.0
      %1401 = vmatpush.msra.mxu0 0.0
      %1402 = vmatpush.msra.mxu0 %v1383
      %1403 = vmatmul.f32.gmra.mxu0 %v509
      %v1404 = vpop.f32.mrf.mxu0
      %v1405 = vadd.f32 %v1379, %v1404
      %1406 = vdwg.mxu0
      %1407 = vmatpush.msra.mxu0 0.0
      %1408 = vmatpush.msra.mxu0 0.0
      %1409 = vmatpush.msra.mxu0 0.0
      %1410 = vmatpush.msra.mxu0 0.0
      %1411 = vmatpush.msra.mxu0 0.0
      %1412 = vmatpush.msra.mxu0 0.0
      %1413 = vmatpush.msra.mxu0 0.0
      %1414 = vmatpush.msra.mxu0 0.0
      %1415 = vmatpush.msra.mxu0 0.0
      %1416 = vmatpush.msra.mxu0 0.0
      %1417 = vmatpush.msra.mxu0 0.0
      %1418 = vmatpush.msra.mxu0 0.0
      %1419 = vmatpush.msra.mxu0 0.0
      %1420 = vmatpush.msra.mxu0 0.0
      %1421 = vmatpush.msra.mxu0 0.0
      %1422 = vmatpush.msra.mxu0 %v1385
      %1423 = vmatmul.f32.gmra.mxu0 %v509
      %v1424 = vpop.f32.mrf.mxu0
      %v1425 = vadd.f32 %v1380, %v1424
      %1426 = vdwg.mxu0
      %1427 = vst [vmem:[#allocation1] ss:$2 sm:$0xff] %v466
      %v1428 = vld.sshfl [vmem:[#allocation1] sm:$0xff pattern:$0x75316420]
      %v1429 = vld.sshfl [vmem:[#allocation1 + $0x8] sm:$0xff pattern:$0x75316420]
      %v1432 = vsub.f32 %v1405, %v1428
      %v1433 = vsub.f32 %v1425, %v1429
      %1434 = vst [vmem:[#allocation2 + $0x20] sm:$0xf] %v1432
      %1435 = vst [vmem:[#allocation2 + $0x28] sm:$0xf] %v1433
      %v1436 = vld [vmem:[#allocation2] sm:$0xff]
      %v1437 = vld [vmem:[#allocation2 + $0x8] sm:$0xff]
      %v1438 = vld [vmem:[#allocation2 + $0x10] sm:$0xff]
      %v1439 = vld [vmem:[#allocation2 + $0x18] sm:$0xff]
      %v1440 = vld [vmem:[#allocation2 + $0x20] sm:$0x1f]
      %v1441 = vld [vmem:[#allocation2 + $0x28] sm:$0x1f]
      %v1443 = vsel %vm597, %v1440, 0
      %v1446 = vsel %vm597, %v1441, 0
      %1448 = vmatpush.msra.mxu0 0.0
      %1449 = vmatpush.msra.mxu0 0.0
      %1450 = vmatpush.msra.mxu0 0.0
      %1451 = vmatpush.msra.mxu0 0.0
      %1452 = vmatpush.msra.mxu0 0.0
      %1453 = vmatpush.msra.mxu0 0.0
      %1454 = vmatpush.msra.mxu0 0.0
      %1455 = vmatpush.msra.mxu0 0.0
      %1456 = vmatpush.msra.mxu0 0.0
      %1457 = vmatpush.msra.mxu0 0.0
      %1458 = vmatpush.msra.mxu0 0.0
      %1459 = vmatpush.msra.mxu0 0.0
      %1460 = vmatpush.msra.mxu0 0.0
      %1461 = vmatpush.msra.mxu0 %v1443
      %1462 = vmatpush.msra.mxu0 %v1438
      %1463 = vmatpush.msra.mxu0 %v1436
      %1464 = vmatmul.f32.gmra.mxu0 %v574
      %v1465 = vpop.f32.mrf.mxu0
      %v1466 = vadd.f32 0.0, %v1465
      %1467 = vmatmul.f32.gmra.mxu0 %v577
      %v1468 = vpop.f32.mrf.mxu0
      %v1469 = vadd.f32 0.0, %v1468
      %1470 = vmatmul.f32.gmra.mxu0 %v580
      %v1471 = vpop.f32.mrf.mxu0
      %v1472 = vadd.f32 0.0, %v1471
      %1473 = vmatmul.f32.gmra.mxu0 %v583
      %v1474 = vpop.f32.mrf.mxu0
      %v1475 = vadd.f32 0.0, %v1474
      %1476 = vmatmul.f32.gmra.mxu0 %v586
      %v1477 = vpop.f32.mrf.mxu0
      %v1478 = vadd.f32 0.0, %v1477
      %1479 = vmatmul.f32.gmra.mxu0 %v589
      %v1480 = vpop.f32.mrf.mxu0
      %v1481 = vadd.f32 0.0, %v1480
      %1482 = vmatmul.f32.gmra.mxu0 %v592
      %v1483 = vpop.f32.mrf.mxu0
      %v1484 = vadd.f32 0.0, %v1483
      %1485 = vmatmul.f32.gmra.mxu0 %v595
      %v1486 = vpop.f32.mrf.mxu0
      %v1487 = vadd.f32 0.0, %v1486
      %1488 = vdwg.mxu0
      %1489 = vmatpush.msra.mxu0 0.0
      %1490 = vmatpush.msra.mxu0 0.0
      %1491 = vmatpush.msra.mxu0 0.0
      %1492 = vmatpush.msra.mxu0 0.0
      %1493 = vmatpush.msra.mxu0 0.0
      %1494 = vmatpush.msra.mxu0 0.0
      %1495 = vmatpush.msra.mxu0 0.0
      %1496 = vmatpush.msra.mxu0 0.0
      %1497 = vmatpush.msra.mxu0 0.0
      %1498 = vmatpush.msra.mxu0 0.0
      %1499 = vmatpush.msra.mxu0 0.0
      %1500 = vmatpush.msra.mxu0 0.0
      %1501 = vmatpush.msra.mxu0 0.0
      %1502 = vmatpush.msra.mxu0 %v1446
      %1503 = vmatpush.msra.mxu0 %v1439
      %1504 = vmatpush.msra.mxu0 %v1437
      %1505 = vmatmul.f32.gmra.mxu0 %v574
      %v1506 = vpop.f32.mrf.mxu0
      %v1507 = vadd.f32 0.0, %v1506
      %1508 = vmatmul.f32.gmra.mxu0 %v577
      %v1509 = vpop.f32.mrf.mxu0
      %v1510 = vadd.f32 0.0, %v1509
      %1511 = vmatmul.f32.gmra.mxu0 %v580
      %v1512 = vpop.f32.mrf.mxu0
      %v1513 = vadd.f32 0.0, %v1512
      %1514 = vmatmul.f32.gmra.mxu0 %v583
      %v1515 = vpop.f32.mrf.mxu0
      %v1516 = vadd.f32 0.0, %v1515
      %1517 = vmatmul.f32.gmra.mxu0 %v586
      %v1518 = vpop.f32.mrf.mxu0
      %v1519 = vadd.f32 0.0, %v1518
      %1520 = vmatmul.f32.gmra.mxu0 %v589
      %v1521 = vpop.f32.mrf.mxu0
      %v1522 = vadd.f32 0.0, %v1521
      %1523 = vmatmul.f32.gmra.mxu0 %v592
      %v1524 = vpop.f32.mrf.mxu0
      %v1525 = vadd.f32 0.0, %v1524
      %1526 = vmatmul.f32.gmra.mxu0 %v595
      %v1527 = vpop.f32.mrf.mxu0
      %v1528 = vadd.f32 0.0, %v1527
      %1529 = vdwg.mxu0
      %v1530 = vmul.f32 %v1466, 0.5
      %v1531 = vmul.f32 %v1507, 0.5
      %v1532 = vmul.f32 %v1469, 0.5
      %v1533 = vmul.f32 %v1510, 0.5
      %v1534 = vtanh.pop %v1530
      %v1535 = vtanh.pop %v1531
      %v1536 = vtanh.pop %v1532
      %v1537 = vtanh.pop %v1533
      %v1538 = vadd.f32 %v1534, 1.0
      %v1539 = vadd.f32 %v1535, 1.0
      %v1540 = vadd.f32 %v1536, 1.0
      %v1541 = vadd.f32 %v1537, 1.0
      %v1542 = vmul.f32 %v1538, 0.5
      %v1543 = vmul.f32 %v1539, 0.5
      %v1544 = vmul.f32 %v1540, 0.5
      %v1545 = vmul.f32 %v1541, 0.5
      %v1546 = vmul.f32 %v1472, 0.5
      %v1547 = vmul.f32 %v1513, 0.5
      %v1548 = vmul.f32 %v1475, 0.5
      %v1549 = vmul.f32 %v1516, 0.5
      %v1550 = vtanh.pop %v1546
      %v1551 = vtanh.pop %v1547
      %v1552 = vtanh.pop %v1548
      %v1553 = vtanh.pop %v1549
      %v1554 = vadd.f32 %v1550, 1.0
      %v1555 = vadd.f32 %v1551, 1.0
      %v1556 = vadd.f32 %v1552, 1.0
      %v1557 = vadd.f32 %v1553, 1.0
      %v1558 = vmul.f32 %v1554, 0.5
      %v1559 = vmul.f32 %v1555, 0.5
      %v1560 = vmul.f32 %v1556, 0.5
      %v1561 = vmul.f32 %v1557, 0.5
      %v1562 = vmul.f32 %v1478, 0.5
      %v1563 = vmul.f32 %v1519, 0.5
      %v1564 = vmul.f32 %v1481, 0.5
      %v1565 = vmul.f32 %v1522, 0.5
      %v1566 = vtanh.pop %v1562
      %v1567 = vtanh.pop %v1563
      %v1568 = vtanh.pop %v1564
      %v1569 = vtanh.pop %v1565
      %v1570 = vadd.f32 %v1566, 1.0
      %v1571 = vadd.f32 %v1567, 1.0
      %v1572 = vadd.f32 %v1568, 1.0
      %v1573 = vadd.f32 %v1569, 1.0
      %v1574 = vmul.f32 %v1570, 0.5
      %v1575 = vmul.f32 %v1571, 0.5
      %v1576 = vmul.f32 %v1572, 0.5
      %v1577 = vmul.f32 %v1573, 0.5
      %v1578 = vtanh.pop %v1484
      %v1579 = vtanh.pop %v1525
      %v1580 = vtanh.pop %v1487
      %v1581 = vtanh.pop %v1528
      %v1582 = vmul.f32 %v1558, %v1310
      %v1583 = vmul.f32 %v1559, %v1311
      %v1584 = vmul.f32 %v1560, %v1312
      %v1585 = vmul.f32 %v1561, %v1313
      %v1586 = vmul.f32 %v1542, %v1578
      %v1587 = vmul.f32 %v1543, %v1579
      %v1588 = vmul.f32 %v1544, %v1580
      %v1589 = vmul.f32 %v1545, %v1581
      %v1590 = vadd.f32 %v1582, %v1586
      %v1591 = vadd.f32 %v1583, %v1587
      %v1592 = vadd.f32 %v1584, %v1588
      %v1593 = vadd.f32 %v1585, %v1589
      %v1594 = vtanh.pop %v1590
      %v1595 = vtanh.pop %v1591
      %v1596 = vtanh.pop %v1592
      %v1597 = vtanh.pop %v1593
      %v1598 = vmul.f32 %v1574, %v1594
      %v1599 = vmul.f32 %v1575, %v1595
      %v1600 = vmul.f32 %v1576, %v1596
      %v1601 = vmul.f32 %v1577, %v1597
      %1602 = vst [vmem:[#allocation2] sm:$0xff] %v1598
      %1603 = vst [vmem:[#allocation2 + $0x8] sm:$0xff] %v1599
      %1604 = vst [vmem:[#allocation2 + $0x10] sm:$0xff] %v1600
      %1605 = vst [vmem:[#allocation2 + $0x18] sm:$0xff] %v1601
      %1606 = vmatpush.msra.mxu0 0.0
      %1607 = vmatpush.msra.mxu0 0.0
      %1608 = vmatpush.msra.mxu0 0.0
      %1609 = vmatpush.msra.mxu0 0.0
      %1610 = vmatpush.msra.mxu0 0.0
      %1611 = vmatpush.msra.mxu0 0.0
      %1612 = vmatpush.msra.mxu0 0.0
      %1613 = vmatpush.msra.mxu0 0.0
      %1614 = vmatpush.msra.mxu0 0.0
      %1615 = vmatpush.msra.mxu0 0.0
      %1616 = vmatpush.msra.mxu0 0.0
      %1617 = vmatpush.msra.mxu0 0.0
      %1618 = vmatpush.msra.mxu0 0.0
      %1619 = vmatpush.msra.mxu0 0.0
      %1620 = vmatpush.msra.mxu0 %v1600
      %1621 = vmatpush.msra.mxu0 %v1598
      %1622 = vmatmul.f32.gmra.mxu0 %v764
      %v1623 = vpop.f32.mrf.mxu0
      %v1624 = vadd.f32 0.0, %v1623
      %1625 = vdwg.mxu0
      %1626 = vmatpush.msra.mxu0 0.0
      %1627 = vmatpush.msra.mxu0 0.0
      %1628 = vmatpush.msra.mxu0 0.0
      %1629 = vmatpush.msra.mxu0 0.0
      %1630 = vmatpush.msra.mxu0 0.0
      %1631 = vmatpush.msra.mxu0 0.0
      %1632 = vmatpush.msra.mxu0 0.0
      %1633 = vmatpush.msra.mxu0 0.0
      %1634 = vmatpush.msra.mxu0 0.0
      %1635 = vmatpush.msra.mxu0 0.0
      %1636 = vmatpush.msra.mxu0 0.0
      %1637 = vmatpush.msra.mxu0 0.0
      %1638 = vmatpush.msra.mxu0 0.0
      %1639 = vmatpush.msra.mxu0 0.0
      %1640 = vmatpush.msra.mxu0 %v1601
      %1641 = vmatpush.msra.mxu0 %v1599
      %1642 = vmatmul.f32.gmra.mxu0 %v764
      %v1643 = vpop.f32.mrf.mxu0
      %v1644 = vadd.f32 0.0, %v1643
      %1645 = vdwg.mxu0
      %v1648 = vrot.slane %v1644, 4
      %v1649 = vsel %vm511, %v1624, %v1648
      %v1651 = vsub.f32 %v1371, %v1649
      %v1652 = vmul.f32 %v465, %v1651
      %1654 = vst [vmem:[#allocation1] ss:$2 sm:$0xff] %v1651
      %v1655 = vld.sshfl [vmem:[#allocation1] sm:$0xff pattern:$0x75316420]
      %v1656 = vld.sshfl [vmem:[#allocation1 + $0x8] sm:$0xff pattern:$0x75316420]
      %1658 = vst [vmem:[#allocation1] ss:$2 sm:$0xff] %v1652
      %v1659 = vld.sshfl [vmem:[#allocation1] sm:$0xff pattern:$0x75316420]
      %v1660 = vld.sshfl [vmem:[#allocation1 + $0x8] sm:$0xff pattern:$0x75316420]
      %v1663 = vsel %vm511, %v1655, 0
      %v1665 = vsel %vm511, %v1656, 0
      %1667 = vmatpush.msra.mxu0 0.0
      %1668 = vmatpush.msra.mxu0 0.0
      %1669 = vmatpush.msra.mxu0 0.0
      %1670 = vmatpush.msra.mxu0 0.0
      %1671 = vmatpush.msra.mxu0 0.0
      %1672 = vmatpush.msra.mxu0 0.0
      %1673 = vmatpush.msra.mxu0 0.0
      %1674 = vmatpush.msra.mxu0 0.0
      %1675 = vmatpush.msra.mxu0 0.0
      %1676 = vmatpush.msra.mxu0 0.0
      %1677 = vmatpush.msra.mxu0 0.0
      %1678 = vmatpush.msra.mxu0 0.0
      %1679 = vmatpush.msra.mxu0 0.0
      %1680 = vmatpush.msra.mxu0 0.0
      %1681 = vmatpush.msra.mxu0 0.0
      %1682 = vmatpush.msra.mxu0 %v1663
      %1683 = vmatmul.f32.gmra.mxu0 %v509
      %v1684 = vpop.f32.mrf.mxu0
      %v1685 = vadd.f32 %v1659, %v1684
      %1686 = vdwg.mxu0
      %1687 = vmatpush.msra.mxu0 0.0
      %1688 = vmatpush.msra.mxu0 0.0
      %1689 = vmatpush.msra.mxu0 0.0
      %1690 = vmatpush.msra.mxu0 0.0
      %1691 = vmatpush.msra.mxu0 0.0
      %1692 = vmatpush.msra.mxu0 0.0
      %1693 = vmatpush.msra.mxu0 0.0
      %1694 = vmatpush.msra.mxu0 0.0
      %1695 = vmatpush.msra.mxu0 0.0
      %1696 = vmatpush.msra.mxu0 0.0
      %1697 = vmatpush.msra.mxu0 0.0
      %1698 = vmatpush.msra.mxu0 0.0
      %1699 = vmatpush.msra.mxu0 0.0
      %1700 = vmatpush.msra.mxu0 0.0
      %1701 = vmatpush.msra.mxu0 0.0
      %1702 = vmatpush.msra.mxu0 %v1665
      %1703 = vmatmul.f32.gmra.mxu0 %v509
      %v1704 = vpop.f32.mrf.mxu0
      %v1705 = vadd.f32 %v1660, %v1704
      %1706 = vdwg.mxu0
      %1707 = vst [vmem:[#allocation1] ss:$2 sm:$0xff] %v466
      %v1708 = vld.sshfl [vmem:[#allocation1] sm:$0xff pattern:$0x75316420]
      %v1709 = vld.sshfl [vmem:[#allocation1 + $0x8] sm:$0xff pattern:$0x75316420]
      %v1712 = vsub.f32 %v1685, %v1708
      %v1713 = vsub.f32 %v1705, %v1709
      %1714 = vst [vmem:[#allocation2 + $0x20] sm:$0xf] %v1712
      %1715 = vst [vmem:[#allocation2 + $0x28] sm:$0xf] %v1713
      %v1716 = vld [vmem:[#allocation2] sm:$0xff]
      %v1717 = vld [vmem:[#allocation2 + $0x8] sm:$0xff]
      %v1718 = vld [vmem:[#allocation2 + $0x10] sm:$0xff]
      %v1719 = vld [vmem:[#allocation2 + $0x18] sm:$0xff]
      %v1720 = vld [vmem:[#allocation2 + $0x20] sm:$0x1f]
      %v1721 = vld [vmem:[#allocation2 + $0x28] sm:$0x1f]
      %v1723 = vsel %vm597, %v1720, 0
      %v1726 = vsel %vm597, %v1721, 0
      %1728 = vmatpush.msra.mxu0 0.0
      %1729 = vmatpush.msra.mxu0 0.0
      %1730 = vmatpush.msra.mxu0 0.0
      %1731 = vmatpush.msra.mxu0 0.0
      %1732 = vmatpush.msra.mxu0 0.0
      %1733 = vmatpush.msra.mxu0 0.0
      %1734 = vmatpush.msra.mxu0 0.0
      %1735 = vmatpush.msra.mxu0 0.0
      %1736 = vmatpush.msra.mxu0 0.0
      %1737 = vmatpush.msra.mxu0 0.0
      %1738 = vmatpush.msra.mxu0 0.0
      %1739 = vmatpush.msra.mxu0 0.0
      %1740 = vmatpush.msra.mxu0 0.0
      %1741 = vmatpush.msra.mxu0 %v1723
      %1742 = vmatpush.msra.mxu0 %v1718
      %1743 = vmatpush.msra.mxu0 %v1716
      %1744 = vmatmul.f32.gmra.mxu0 %v574
      %v1745 = vpop.f32.mrf.mxu0
      %v1746 = vadd.f32 0.0, %v1745
      %1747 = vmatmul.f32.gmra.mxu0 %v577
      %v1748 = vpop.f32.mrf.mxu0
      %v1749 = vadd.f32 0.0, %v1748
      %1750 = vmatmul.f32.gmra.mxu0 %v580
      %v1751 = vpop.f32.mrf.mxu0
      %v1752 = vadd.f32 0.0, %v1751
      %1753 = vmatmul.f32.gmra.mxu0 %v583
      %v1754 = vpop.f32.mrf.mxu0
      %v1755 = vadd.f32 0.0, %v1754
      %1756 = vmatmul.f32.gmra.mxu0 %v586
      %v1757 = vpop.f32.mrf.mxu0
      %v1758 = vadd.f32 0.0, %v1757
      %1759 = vmatmul.f32.gmra.mxu0 %v589
      %v1760 = vpop.f32.mrf.mxu0
      %v1761 = vadd.f32 0.0, %v1760
      %1762 = vmatmul.f32.gmra.mxu0 %v592
      %v1763 = vpop.f32.mrf.mxu0
      %v1764 = vadd.f32 0.0, %v1763
      %1765 = vmatmul.f32.gmra.mxu0 %v595
      %v1766 = vpop.f32.mrf.mxu0
      %v1767 = vadd.f32 0.0, %v1766
      %1768 = vdwg.mxu0
      %1769 = vmatpush.msra.mxu0 0.0
      %1770 = vmatpush.msra.mxu0 0.0
      %1771 = vmatpush.msra.mxu0 0.0
      %1772 = vmatpush.msra.mxu0 0.0
      %1773 = vmatpush.msra.mxu0 0.0
      %1774 = vmatpush.msra.mxu0 0.0
      %1775 = vmatpush.msra.mxu0 0.0
      %1776 = vmatpush.msra.mxu0 0.0
      %1777 = vmatpush.msra.mxu0 0.0
      %1778 = vmatpush.msra.mxu0 0.0
      %1779 = vmatpush.msra.mxu0 0.0
      %1780 = vmatpush.msra.mxu0 0.0
      %1781 = vmatpush.msra.mxu0 0.0
      %1782 = vmatpush.msra.mxu0 %v1726
      %1783 = vmatpush.msra.mxu0 %v1719
      %1784 = vmatpush.msra.mxu0 %v1717
      %1785 = vmatmul.f32.gmra.mxu0 %v574
      %v1786 = vpop.f32.mrf.mxu0
      %v1787 = vadd.f32 0.0, %v1786
      %1788 = vmatmul.f32.gmra.mxu0 %v577
      %v1789 = vpop.f32.mrf.mxu0
      %v1790 = vadd.f32 0.0, %v1789
      %1791 = vmatmul.f32.gmra.mxu0 %v580
      %v1792 = vpop.f32.mrf.mxu0
      %v1793 = vadd.f32 0.0, %v1792
      %1794 = vmatmul.f32.gmra.mxu0 %v583
      %v1795 = vpop.f32.mrf.mxu0
      %v1796 = vadd.f32 0.0, %v1795
      %1797 = vmatmul.f32.gmra.mxu0 %v586
      %v1798 = vpop.f32.mrf.mxu0
      %v1799 = vadd.f32 0.0, %v1798
      %1800 = vmatmul.f32.gmra.mxu0 %v589
      %v1801 = vpop.f32.mrf.mxu0
      %v1802 = vadd.f32 0.0, %v1801
      %1803 = vmatmul.f32.gmra.mxu0 %v592
      %v1804 = vpop.f32.mrf.mxu0
      %v1805 = vadd.f32 0.0, %v1804
      %1806 = vmatmul.f32.gmra.mxu0 %v595
      %v1807 = vpop.f32.mrf.mxu0
      %v1808 = vadd.f32 0.0, %v1807
      %1809 = vdwg.mxu0
      %v1810 = vmul.f32 %v1746, 0.5
      %v1811 = vmul.f32 %v1787, 0.5
      %v1812 = vmul.f32 %v1749, 0.5
      %v1813 = vmul.f32 %v1790, 0.5
      %v1814 = vtanh.pop %v1810
      %v1815 = vtanh.pop %v1811
      %v1816 = vtanh.pop %v1812
      %v1817 = vtanh.pop %v1813
      %v1818 = vadd.f32 %v1814, 1.0
      %v1819 = vadd.f32 %v1815, 1.0
      %v1820 = vadd.f32 %v1816, 1.0
      %v1821 = vadd.f32 %v1817, 1.0
      %v1822 = vmul.f32 %v1818, 0.5
      %v1823 = vmul.f32 %v1819, 0.5
      %v1824 = vmul.f32 %v1820, 0.5
      %v1825 = vmul.f32 %v1821, 0.5
      %v1826 = vmul.f32 %v1752, 0.5
      %v1827 = vmul.f32 %v1793, 0.5
      %v1828 = vmul.f32 %v1755, 0.5
      %v1829 = vmul.f32 %v1796, 0.5
      %v1830 = vtanh.pop %v1826
      %v1831 = vtanh.pop %v1827
      %v1832 = vtanh.pop %v1828
      %v1833 = vtanh.pop %v1829
      %v1834 = vadd.f32 %v1830, 1.0
      %v1835 = vadd.f32 %v1831, 1.0
      %v1836 = vadd.f32 %v1832, 1.0
      %v1837 = vadd.f32 %v1833, 1.0
      %v1838 = vmul.f32 %v1834, 0.5
      %v1839 = vmul.f32 %v1835, 0.5
      %v1840 = vmul.f32 %v1836, 0.5
      %v1841 = vmul.f32 %v1837, 0.5
      %v1842 = vmul.f32 %v1758, 0.5
      %v1843 = vmul.f32 %v1799, 0.5
      %v1844 = vmul.f32 %v1761, 0.5
      %v1845 = vmul.f32 %v1802, 0.5
      %v1846 = vtanh.pop %v1842
      %v1847 = vtanh.pop %v1843
      %v1848 = vtanh.pop %v1844
      %v1849 = vtanh.pop %v1845
      %v1850 = vadd.f32 %v1846, 1.0
      %v1851 = vadd.f32 %v1847, 1.0
      %v1852 = vadd.f32 %v1848, 1.0
      %v1853 = vadd.f32 %v1849, 1.0
      %v1854 = vmul.f32 %v1850, 0.5
      %v1855 = vmul.f32 %v1851, 0.5
      %v1856 = vmul.f32 %v1852, 0.5
      %v1857 = vmul.f32 %v1853, 0.5
      %v1858 = vtanh.pop %v1764
      %v1859 = vtanh.pop %v1805
      %v1860 = vtanh.pop %v1767
      %v1861 = vtanh.pop %v1808
      %v1862 = vmul.f32 %v1838, %v1590
      %v1863 = vmul.f32 %v1839, %v1591
      %v1864 = vmul.f32 %v1840, %v1592
      %v1865 = vmul.f32 %v1841, %v1593
      %v1866 = vmul.f32 %v1822, %v1858
      %v1867 = vmul.f32 %v1823, %v1859
      %v1868 = vmul.f32 %v1824, %v1860
      %v1869 = vmul.f32 %v1825, %v1861
      %v1870 = vadd.f32 %v1862, %v1866
      %v1871 = vadd.f32 %v1863, %v1867
      %v1872 = vadd.f32 %v1864, %v1868
      %v1873 = vadd.f32 %v1865, %v1869
      %v1874 = vtanh.pop %v1870
      %v1875 = vtanh.pop %v1871
      %v1876 = vtanh.pop %v1872
      %v1877 = vtanh.pop %v1873
      %v1878 = vmul.f32 %v1854, %v1874
      %v1879 = vmul.f32 %v1855, %v1875
      %v1880 = vmul.f32 %v1856, %v1876
      %v1881 = vmul.f32 %v1857, %v1877
      %1882 = vst [vmem:[#allocation2] sm:$0xff] %v1878
      %1883 = vst [vmem:[#allocation2 + $0x8] sm:$0xff] %v1879
      %1884 = vst [vmem:[#allocation2 + $0x10] sm:$0xff] %v1880
      %1885 = vst [vmem:[#allocation2 + $0x18] sm:$0xff] %v1881
      %1886 = vmatpush.msra.mxu0 0.0
      %1887 = vmatpush.msra.mxu0 0.0
      %1888 = vmatpush.msra.mxu0 0.0
      %1889 = vmatpush.msra.mxu0 0.0
      %1890 = vmatpush.msra.mxu0 0.0
      %1891 = vmatpush.msra.mxu0 0.0
      %1892 = vmatpush.msra.mxu0 0.0
      %1893 = vmatpush.msra.mxu0 0.0
      %1894 = vmatpush.msra.mxu0 0.0
      %1895 = vmatpush.msra.mxu0 0.0
      %1896 = vmatpush.msra.mxu0 0.0
      %1897 = vmatpush.msra.mxu0 0.0
      %1898 = vmatpush.msra.mxu0 0.0
      %1899 = vmatpush.msra.mxu0 0.0
      %1900 = vmatpush.msra.mxu0 %v1880
      %1901 = vmatpush.msra.mxu0 %v1878
      %1902 = vmatmul.f32.gmra.mxu0 %v764
      %v1903 = vpop.f32.mrf.mxu0
      %v1904 = vadd.f32 0.0, %v1903
      %1905 = vdwg.mxu0
      %1906 = vmatpush.msra.mxu0 0.0
      %1907 = vmatpush.msra.mxu0 0.0
      %1908 = vmatpush.msra.mxu0 0.0
      %1909 = vmatpush.msra.mxu0 0.0
      %1910 = vmatpush.msra.mxu0 0.0
      %1911 = vmatpush.msra.mxu0 0.0
      %1912 = vmatpush.msra.mxu0 0.0
      %1913 = vmatpush.msra.mxu0 0.0
      %1914 = vmatpush.msra.mxu0 0.0
      %1915 = vmatpush.msra.mxu0 0.0
      %1916 = vmatpush.msra.mxu0 0.0
      %1917 = vmatpush.msra.mxu0 0.0
      %1918 = vmatpush.msra.mxu0 0.0
      %1919 = vmatpush.msra.mxu0 0.0
      %1920 = vmatpush.msra.mxu0 %v1881
      %1921 = vmatpush.msra.mxu0 %v1879
      %1922 = vmatmul.f32.gmra.mxu0 %v764
      %v1923 = vpop.f32.mrf.mxu0
      %v1924 = vadd.f32 0.0, %v1923
      %1925 = vdwg.mxu0
      %v1928 = vrot.slane %v1924, 4
      %v1929 = vsel %vm511, %v1904, %v1928
      %v1931 = vsub.f32 %v1651, %v1929
      %1932 = vst [vmem:[%s442] sm:$0xff] %v1931
      %v1933 = vld [vmem:[#allocation2] sm:$0xff]
      %v1934 = vld [vmem:[#allocation2 + $0x8] sm:$0xff]
      %v1935 = vld [vmem:[#allocation2 + $0x10] sm:$0xff]
      %v1936 = vld [vmem:[#allocation2 + $0x18] sm:$0xff]
      %1937 = vst [vmem:[%s452] sm:$0xff] %v1933
      %1938 = vst [vmem:[%s452 + $0x8] sm:$0xff] %v1934
      %1939 = vst [vmem:[%s452 + $0x10] sm:$0xff] %v1935
      %1940 = vst [vmem:[%s452 + $0x18] sm:$0xff] %v1936
      %1941 = vst [vmem:[%s462] sm:$0xff] %v1870
      %1942 = vst [vmem:[%s462 + $0x8] sm:$0xff] %v1871
      %1943 = vst [vmem:[%s462 + $0x10] sm:$0xff] %v1872
      %1944 = vst [vmem:[%s462 + $0x18] sm:$0xff] %v1873
      %s1945 = smul.u32 2, %s25
      %p1946 = scmp.lt.s32.totalorder %s24, 1
      %s1947 = scalar_select %p1946, %s24, 1
      %p1948 = scmp.lt.s32.totalorder %s1945, 1
      %s1949 = scalar_select %p1948, %s1945, 1
      %s1950 = smul.addr %s1947, 2
      %s1951 = sadd.s32 %s1949, %s1950
      %s1952 = smul.addr %s1951, 4
      %s1953 = scalar_lea.vmem %s6, %s1952
      %s1954 = smul.u32 2, %s25
      %p1955 = scmp.lt.s32.totalorder %s24, 1
      %s1956 = scalar_select %p1955, %s24, 1
      %p1957 = scmp.lt.s32.totalorder %s1954, 1
      %s1958 = scalar_select %p1957, %s1954, 1
      %s1959 = smul.addr %s1956, 4
      %s1960 = sadd.s32 %s1958, %s1959
      %s1961 = smul.addr %s1960, 8
      %s1962 = scalar_lea.vmem %s7, %s1961
      %s1963 = smul.u32 2, %s25
      %p1964 = scmp.lt.s32.totalorder %s24, 1
      %s1965 = scalar_select %p1964, %s24, 1
      %p1966 = scmp.lt.s32.totalorder %s1963, 1
      %s1967 = scalar_select %p1966, %s1963, 1
      %s1968 = smul.addr %s1965, 4
      %s1969 = sadd.s32 %s1967, %s1968
      %s1970 = smul.addr %s1969, 8
      %s1971 = scalar_lea.vmem %s8, %s1970
      // Predicated region
      $region45: #{solver_grad_4dvarnn.3} parent=43 // pred_check
        %p1972 = pneg %p199
      $region46: #{solver_grad_4dvarnn.3} parent=43 // pred_check_branch
        %1974 = sbr.rel (%p1972) target = $region48
      $region47: #{solver_grad_4dvarnn.3} parent=43 // pred_region
        %s1975 = smul.u32 2, %s25
      $region48: #{solver_grad_4dvarnn.3} parent=43 // pred_fallthru
        _
      // Predicated region
      $region49: #{solver_grad_4dvarnn.3} parent=43 // pred_check
        %p1976 = pneg %p227
      $region50: #{solver_grad_4dvarnn.3} parent=43 // pred_check_branch
        %1978 = sbr.rel (%p1976) target = $region52
      $region51: #{solver_grad_4dvarnn.3} parent=43 // pred_region
        %s1979 = smul.u32 2, %s25
      $region52: #{solver_grad_4dvarnn.3} parent=43 // pred_fallthru
        _
      // Predicated region
      $region53: #{solver_grad_4dvarnn.3} parent=43 // pred_check
        %p1980 = pneg %p255
      $region54: #{solver_grad_4dvarnn.3} parent=43 // pred_check_branch
        %1982 = sbr.rel (%p1980) target = $region56
      $region55: #{solver_grad_4dvarnn.3} parent=43 // pred_region
        %s1983 = smul.u32 2, %s25
      $region56: #{solver_grad_4dvarnn.3} parent=43 // pred_fallthru
        _
    $region44: #{solver_grad_4dvarnn.3} parent=5 // pred_fallthru
      _
    %p1984 = scmp.le.s32.totalorder 2, %s15
    // Predicated region
    $region57: #{solver_grad_4dvarnn.3} parent=5 // pred_check
      %p1985 = pneg %p1984
    $region58: #{solver_grad_4dvarnn.3} parent=5 // pred_check_branch
      %1987 = sbr.rel (%p1985) target = $region60
    $region59: #{solver_grad_4dvarnn.3} parent=5 // pred_region
      %s1988 = ssub.s32 %s15, 2
      // Predicated region
      $region61: #{solver_grad_4dvarnn.3} parent=59 // pred_check
        %p1989 = pneg %p205
      $region62: #{solver_grad_4dvarnn.3} parent=59 // pred_check_branch
        %1991 = sbr.rel (%p1989) target = $region64
      $region63: #{solver_grad_4dvarnn.3} parent=59 // pred_region
        %s1992 = smul.u32 2, %s27
        %p1993 = scmp.lt.s32.totalorder %s26, 1
        %s1994 = scalar_select %p1993, %s26, 1
        %p1995 = scmp.lt.s32.totalorder %s1992, 1
        %s1996 = scalar_select %p1995, %s1992, 1
        %s1997 = smul.addr %s1994, 2
        %s1998 = sadd.s32 %s1996, %s1997
        %s1999 = smul.addr %s1998, 4
        %s2000 = scalar_lea.vmem %s6, %s1999
      $region64: #{solver_grad_4dvarnn.3} parent=59 // pred_fallthru
        _
      // Predicated region
      $region65: #{solver_grad_4dvarnn.3} parent=59 // pred_check
        %p2001 = pneg %p233
      $region66: #{solver_grad_4dvarnn.3} parent=59 // pred_check_branch
        %2003 = sbr.rel (%p2001) target = $region68
      $region67: #{solver_grad_4dvarnn.3} parent=59 // pred_region
        %s2004 = smul.u32 2, %s27
        %p2005 = scmp.lt.s32.totalorder %s26, 1
        %s2006 = scalar_select %p2005, %s26, 1
        %p2007 = scmp.lt.s32.totalorder %s2004, 1
        %s2008 = scalar_select %p2007, %s2004, 1
        %s2009 = smul.addr %s2006, 4
        %s2010 = sadd.s32 %s2008, %s2009
        %s2011 = smul.addr %s2010, 8
        %s2012 = scalar_lea.vmem %s7, %s2011
      $region68: #{solver_grad_4dvarnn.3} parent=59 // pred_fallthru
        _
      // Predicated region
      $region69: #{solver_grad_4dvarnn.3} parent=59 // pred_check
        %p2013 = pneg %p261
      $region70: #{solver_grad_4dvarnn.3} parent=59 // pred_check_branch
        %2015 = sbr.rel (%p2013) target = $region72
      $region71: #{solver_grad_4dvarnn.3} parent=59 // pred_region
        %s2016 = smul.u32 2, %s27
        %p2017 = scmp.lt.s32.totalorder %s26, 1
        %s2018 = scalar_select %p2017, %s26, 1
        %p2019 = scmp.lt.s32.totalorder %s2016, 1
        %s2020 = scalar_select %p2019, %s2016, 1
        %s2021 = smul.addr %s2018, 4
        %s2022 = sadd.s32 %s2020, %s2021
        %s2023 = smul.addr %s2022, 8
        %s2024 = scalar_lea.vmem %s8, %s2023
      $region72: #{solver_grad_4dvarnn.3} parent=59 // pred_fallthru
        _
    $region60: #{solver_grad_4dvarnn.3} parent=5 // pred_fallthru
      _
  $region6: #{solver_grad_4dvarnn.3} parent=0 // loop_footer
    %s19 = sadd.s32 1, %s15
  $region7: #{solver_grad_4dvarnn.3} parent=0 // loop_footer_branch
    %14 = sbr.rel target = $region3
  $region8: #{solver_grad_4dvarnn.3} parent=0 // loop_exit
    _

</llo_original>
